<compile_context>
chip_gen: v5e
topology: v5e:2x2
jax: 0.10.0
libtpu: 0.0.40
codegen_flags: <defaults>
</compile_context>

<pallas_src>
import functools

import jax
import jax.numpy as jnp
from jax.experimental import pallas as pl
from jax.experimental.pallas import tpu as pltpu

MXU_DTYPE = jnp.bfloat16       # MXU operand / inter-block activation dtype
LANE = 128                     # channel dims are zero-padded to a multiple of this
VMEM_LIMIT_BYTES = 48 * 1024 * 1024


def _round_up(x, m):
    return (x + m - 1) // m * m


def _pad_axis(a, axis, n):
    if a.shape[axis] == n:
        return a
    pads = [(0, 0)] * a.ndim
    pads[axis] = (0, n - a.shape[axis])
    return jnp.pad(a, pads)


# ----------------------------------------------------------------------------
# Pallas kernel: one full ResBottleneck block per grid step (one batch image).
# ----------------------------------------------------------------------------
def _res_block_kernel(P, R, Q, wrow, r_out, taps, pools, has_sc,
                      x_ref, m_ref, s0_ref, h0_ref, w1_ref, b1_ref,
                      w2_ref, b2_ref, w3_ref, b3_ref, o_ref, u_sc):
    """Fully fused ResBottleneck block.

    Activations are (rows, channels) with rows = flattened zero-padded spatial
    grid (row width wrow = Wo + 2).  For stride 2 the input is split into 2x2
    polyphase components so every 3x3 tap / maxpool element is a contiguous
    row slice at a static offset.
    """
    f32 = jnp.float32
    slack = u_sc.shape[1] - R
    cmid = u_sc.shape[2]

    # --- stage 1: BN0 -> ReLU -> Conv1x1 (BN1 folded) -> ReLU, bf16 in VMEM ---
    for ph in range(P):
        # Rows 0..R are fully overwritten below; only the slack rows (read by
        # the last two stride-1 taps, feeding junk/pad columns only) need
        # zeros.  Zeroed every step so per-core scratch is always initialized.
        u_sc[ph, R:R + slack, :] = jnp.zeros((slack, cmid), u_sc.dtype)
        xv = x_ref[0, ph, :, :].astype(f32)                      # bf16/f32 -> f32
        t = jnp.maximum(xv * s0_ref[...] + h0_ref[...], 0.0)
        u = jnp.dot(t.astype(MXU_DTYPE), w1_ref[...],
                    preferred_element_type=f32) + b1_ref[...]
        u = jnp.maximum(u, 0.0) * m_ref[ph, :, :]                # zero the pad ring
        u_sc[ph, 0:R, :] = u.astype(u_sc.dtype)                  # single bf16 store

    # --- stage 2: Conv3x3 (BN2 folded) as 9 accumulated MXU matmuls + ReLU ---
    acc = jnp.zeros((Q, cmid), f32)
    for t_idx, (ph, off) in enumerate(taps):
        acc = acc + jnp.dot(u_sc[ph, pl.ds(off, Q), :], w2_ref[t_idx],
                            preferred_element_type=f32)
    v = jnp.maximum(acc + b2_ref[...], 0.0)

    # --- shortcut pooling: MaxPool(stride) over phases (identity for stride 1) -
    pooled = x_ref[0, pools[0][0], pl.ds(pools[0][1], Q), :].astype(f32)
    for ph, off in pools[1:]:
        pooled = jnp.maximum(pooled, x_ref[0, ph, pl.ds(off, Q), :].astype(f32))

    # --- stage 3: final Conv1x1, fused with the projection shortcut ---
    if has_sc:
        cin = x_ref.shape[3]
        # w3_ref = [w3 ; w0] stacked along K, b3_ref = b3 + b0 (BN folded).
        y = jnp.dot(v.astype(MXU_DTYPE), w3_ref[0:cmid, :],
                    preferred_element_type=f32)
        y = y + jnp.dot(pooled.astype(MXU_DTYPE), w3_ref[cmid:cmid + cin, :],
                        preferred_element_type=f32)
        res = y + b3_ref[...]
    else:
        res = jnp.dot(v.astype(MXU_DTYPE), w3_ref[...],
                      preferred_element_type=f32) + b3_ref[...] + pooled

    if r_out is None:
        # final block: dense flat rows (junk columns sliced off outside)
        o_ref[0, :, :] = res.astype(o_ref.dtype)
    else:
        # Emit directly in the NEXT block's padded-flat layout: data rows land
        # at flat offset wrow+1; the pad-ring rows are zeroed here.  Pad / junk
        # positions only ever feed the next block's pad positions (its u pad
        # ring is masked and its identity shortcut reads data rows only), so
        # they never touch interior results.
        cout = o_ref.shape[2]
        o_ref[0, 0:wrow + 1, :] = jnp.zeros((wrow + 1, cout), o_ref.dtype)
        o_ref[0, wrow + 1:wrow + 1 + Q, :] = res.astype(o_ref.dtype)
        o_ref[0, wrow + 1 + Q:r_out, :] = jnp.zeros(
            (r_out - (wrow + 1 + Q), cout), o_ref.dtype)


# ----------------------------------------------------------------------------
# JAX-side glue: padded-flat / polyphase layout, tap tables, block wrapper.
# ----------------------------------------------------------------------------
def _to_phases(x_nhwc, stride):
    """Zero-pad spatially and (stride 2) split into 2x2 polyphase components.

    Returns (N, P, R, C) with P = stride**2 and R = (Ho+2) * (Wo+2).
    """
    N, H, W, C = x_nhwc.shape
    if stride == 1:
        xp = jnp.pad(x_nhwc, ((0, 0), (1, 1), (1, 1), (0, 0)))
        return xp.reshape(N, 1, (H + 2) * (W + 2), C)
    xp = jnp.pad(x_nhwc, ((0, 0), (1, 3), (1, 3), (0, 0)))        # (N, H+4, W+4, C)
    hp, wp = H + 4, W + 4
    ph = xp.reshape(N, hp // 2, 2, wp // 2, 2, C)
    ph = ph.transpose(0, 2, 4, 1, 3, 5)                            # (N, pr, pc, i, j, C)
    return ph.reshape(N, 4, (hp // 2) * (wp // 2), C)


def _tap_offsets(stride, wrow):
    taps = []
    for dy in range(3):
        for dx in range(3):
            if stride == 1:
                taps.append((0, dy * wrow + dx))
            else:
                taps.append(((dy % 2) * 2 + (dx % 2),
                             (dy // 2) * wrow + (dx // 2)))
    return tuple(taps)


def _pool_offsets(stride, wrow):
    if stride == 1:                       # MaxPool2d(1) == identity position
        return ((0, wrow + 1),)
    return ((3, 0), (2, 1), (1, wrow), (0, wrow + 1))   # 2x2 window via phases


def _pad_block_params(p, cinp, coutp):
    """Zero-pad folded block params to lane-dense (multiple-of-128) channels
    and stack the projection-shortcut weight/bias onto the final 1x1 conv."""
    has_sc = 'w0' in p
    pp = {
        's0': _pad_axis(p['s0'], 1, cinp),
        'h0': _pad_axis(p['h0'], 1, cinp),
        'w1': _pad_axis(_pad_axis(p['w1'], 0, cinp), 1, coutp),
        'b1': _pad_axis(p['b1'], 1, coutp),
        'w2': _pad_axis(_pad_axis(p['w2'], 1, coutp), 2, coutp),
        'b2': _pad_axis(p['b2'], 1, coutp),
        'b3': _pad_axis(p['b3'], 1, coutp),
    }
    w3p = _pad_axis(_pad_axis(p['w3'], 0, coutp), 1, coutp)
    if has_sc:
        w0p = _pad_axis(_pad_axis(p['w0'], 0, cinp), 1, coutp)
        pp['w3'] = jnp.concatenate([w3p, w0p], axis=0)            # (coutp+cinp, coutp)
        pp['b3'] = pp['b3'] + _pad_axis(p['b0'], 1, coutp)
    else:
        pp['w3'] = w3p
    return pp


def res_bottleneck_block(x_ph, mask, pp, stride, H, W, has_sc,
                         emit_padded, out_dtype):
    """One fused ResBottleneck block on padded-flat / polyphase activations."""
    N, P, R, cinp = x_ph.shape
    coutp = pp['w3'].shape[1]
    Ho, Wo = H // stride, W // stride
    wrow = Wo + 2
    Q = Ho * wrow                             # compute rows (2 junk cols per row)
    r_out = (Ho + 2) * wrow if emit_padded else None
    rows_out = r_out if emit_padded else Q

    taps = _tap_offsets(stride, wrow)
    pools = _pool_offsets(stride, wrow)

    def const_spec(shape):
        # constant block index -> fetched once, never re-DMA'd across the grid
        return pl.BlockSpec(shape, lambda n: (0,) * len(shape))

    in_specs = [
        pl.BlockSpec((1, P, R, cinp), lambda n: (n, 0, 0, 0)),   # input phases
        const_spec((P, R, 1)),                                   # interior mask
        const_spec((1, cinp)), const_spec((1, cinp)),            # BN0 scale / shift
        const_spec((cinp, coutp)), const_spec((1, coutp)),       # w1 (BN1 folded), b1
        const_spec((9, coutp, coutp)), const_spec((1, coutp)),   # w2 taps (BN2), b2
        const_spec(pp['w3'].shape), const_spec((1, coutp)),      # [w3;w0], b3(+b0)
    ]
    args = [x_ph, mask, pp['s0'], pp['h0'], pp['w1'], pp['b1'],
            pp['w2'], pp['b2'], pp['w3'], pp['b3']]

    return pl.pallas_call(
        functools.partial(_res_block_kernel, P, R, Q, wrow, r_out,
                          taps, pools, has_sc),
        out_shape=jax.ShapeDtypeStruct((N, rows_out, coutp), out_dtype),
        grid=(N,),
        in_specs=in_specs,
        out_specs=pl.BlockSpec((1, rows_out, coutp), lambda n: (n, 0, 0)),
        scratch_shapes=[pltpu.VMEM((P, R + 8, coutp), MXU_DTYPE)],
        compiler_params=pltpu.CompilerParams(
            dimension_semantics=('parallel',),
            vmem_limit_bytes=VMEM_LIMIT_BYTES),
    )(*args)


def down_forward(x_nchw, params_list):
    """`Down(in, out, blocks)` in eval mode: block0 stride 2, rest stride 1."""
    x = jnp.transpose(x_nchw, (0, 2, 3, 1))             # NCHW -> NHWC (f32)
    N, H, W, Cin = x.shape
    nblocks = len(params_list)
    cur_h, cur_w, cur_c = H, W, Cin
    out = None

    for i, p in enumerate(params_list):
        stride = 2 if i == 0 else 1
        has_sc = 'w0' in p
        cout = p['w3'].shape[1]
        if stride == 2:
            assert cur_h % 2 == 0 and cur_w % 2 == 0, 'stride-2 block needs even H and W'
            assert has_sc, 'stride-2 block requires the projection shortcut'
        if not has_sc:
            assert cur_c == cout, 'identity shortcut requires Cin == Cout'

        cinp, coutp = _round_up(cur_c, LANE), _round_up(cout, LANE)
        pp = _pad_block_params(p, cinp, coutp)

        if i == 0:
            # entry: pad channels to the lane width and build the phase layout
            x_ph = _to_phases(_pad_axis(x, 3, cinp), stride)     # (N, P, R, cinp)
        else:
            # previous block already emitted the padded-flat layout (P = 1)
            x_ph = out.reshape(N, 1, out.shape[1], out.shape[2])

        mask = _to_phases(jnp.ones((1, cur_h, cur_w, 1), jnp.float32), stride)[0]
        emit_padded = i < nblocks - 1
        out_dtype = MXU_DTYPE if emit_padded else jnp.float32
        out = res_bottleneck_block(x_ph, mask, pp, stride, cur_h, cur_w,
                                   has_sc, emit_padded, out_dtype)
        cur_h, cur_w, cur_c = cur_h // stride, cur_w // stride, cout

    # final block is dense flat rows: drop junk columns + channel padding
    wrow = cur_w + 2
    y = out.reshape(N, cur_h, wrow, out.shape[-1])[:, :, :cur_w, :cur_c]
    return jnp.transpose(y, (0, 3, 1, 2))               # NHWC -> NCHW


# ----------------------------------------------------------------------------
# Pure-JAX reference (same folded weights, same bf16 MXU / inter-block dtype).
# ----------------------------------------------------------------------------
def _ref_block(x, p, stride):
    f32 = jnp.float32

    def mm(t, w, b):
        return jnp.einsum('nhwc,co->nhwo', t.astype(MXU_DTYPE), w,
                          preferred_element_type=f32) + b.reshape(-1)

    t = jnp.maximum(x * p['s0'].reshape(-1) + p['h0'].reshape(-1), 0.0)
    u = jnp.maximum(mm(t, p['w1'], p['b1']), 0.0)
    w2 = p['w2'].reshape(3, 3, u.shape[-1], -1)
    v = jax.lax.conv_general_dilated(
        u.astype(MXU_DTYPE), w2, (stride, stride), ((1, 1), (1, 1)),
        dimension_numbers=('NHWC', 'HWIO', 'NHWC'), preferred_element_type=f32)
    v = jnp.maximum(v + p['b2'].reshape(-1), 0.0)
    y = mm(v, p['w3'], p['b3'])
    if 'w0' in p:
        pooled = jax.lax.reduce_window(x, -jnp.inf, jax.lax.max,
                                       (1, stride, stride, 1),
                                       (1, stride, stride, 1), 'VALID')
        idn = mm(pooled, p['w0'], p['b0'])
    else:
        idn = x
    return y + idn


def down_forward_ref(x_nchw, params_list):
    x = jnp.transpose(x_nchw, (0, 2, 3, 1))
    n = len(params_list)
    for i, p in enumerate(params_list):
        x = _ref_block(x, p, stride=2 if i == 0 else 1)
        if i < n - 1:                       # mimic bf16 inter-block activations
            x = x.astype(MXU_DTYPE).astype(jnp.float32)
    return jnp.transpose(x, (0, 3, 1, 2))


# ----------------------------------------------------------------------------
# Deterministic synthetic eval-mode parameters (BatchNorms pre-folded).
# ----------------------------------------------------------------------------
def _bn_scale_shift(key, C):
    k1, k2, k3, k4 = jax.random.split(key, 4)
    gamma = 1.0 + 0.1 * jax.random.normal(k1, (C,), jnp.float32)
    beta = 0.1 * jax.random.normal(k2, (C,), jnp.float32)
    mean = 0.1 * jax.random.normal(k3, (C,), jnp.float32)
    var = 1.0 + 0.1 * jax.random.uniform(k4, (C,), jnp.float32)
    scale = gamma / jnp.sqrt(var + 1e-5)
    shift = beta - mean * scale
    return scale, shift


def init_block_params(key, Cin, Cout):
    keys = jax.random.split(key, 12)
    s0, h0 = _bn_scale_shift(keys[0], Cin)                       # BN0
    w1 = jax.random.normal(keys[1], (Cin, Cout), jnp.float32) / jnp.sqrt(Cin)
    b1 = 0.1 * jax.random.normal(keys[2], (Cout,), jnp.float32)
    s1, h1 = _bn_scale_shift(keys[3], Cout)                      # BN1 (folded)
    w2 = jax.random.normal(keys[4], (3, 3, Cout, Cout), jnp.float32) / (3.0 * jnp.sqrt(Cout))
    b2 = 0.1 * jax.random.normal(keys[5], (Cout,), jnp.float32)
    s2, h2 = _bn_scale_shift(keys[6], Cout)                      # BN2 (folded)
    w3 = jax.random.normal(keys[7], (Cout, Cout), jnp.float32) / jnp.sqrt(Cout)
    b3 = 0.1 * jax.random.normal(keys[8], (Cout,), jnp.float32)

    p = {
        's0': s0.reshape(1, Cin),
        'h0': h0.reshape(1, Cin),
        'w1': (w1 * s1[None, :]).astype(MXU_DTYPE),
        'b1': (b1 * s1 + h1).reshape(1, Cout),
        'w2': (w2 * s2[None, None, None, :]).reshape(9, Cout, Cout).astype(MXU_DTYPE),
        'b2': (b2 * s2 + h2).reshape(1, Cout),
        'w3': w3.astype(MXU_DTYPE),
        'b3': b3.reshape(1, Cout),
    }
    if Cin != Cout:    # projection shortcut: MaxPool -> Conv1x1 -> BN (folded)
        w0 = jax.random.normal(keys[9], (Cin, Cout), jnp.float32) / jnp.sqrt(Cin)
        b0 = 0.1 * jax.random.normal(keys[10], (Cout,), jnp.float32)
        ss, hs = _bn_scale_shift(keys[11], Cout)
        p['w0'] = (w0 * ss[None, :]).astype(MXU_DTYPE)
        p['b0'] = (b0 * ss + hs).reshape(1, Cout)
    return p


if __name__ == '__main__':
    key = jax.random.PRNGKey(0)
    kx, kp = jax.random.split(key)

    in_channels, out_channels, blocks = 4, 8, 2
    x = jax.random.normal(kx, (2, in_channels, 16, 16), jnp.float32)   # NCHW

    pkeys = jax.random.split(kp, blocks)
    params = [init_block_params(pkeys[0], in_channels, out_channels)]  # stride 2
    for i in range(1, blocks):
        params.append(init_block_params(pkeys[i], out_channels, out_channels))

    out = jax.block_until_ready(jax.jit(down_forward)(x, params))
    assert out.shape == (2, out_channels, 8, 8), out.shape
    assert bool(jnp.all(jnp.isfinite(out)))

    # pure-JAX reference with identical folded weights / bf16 numerics contract
    ref = jax.block_until_ready(jax.jit(down_forward_ref)(x, params))
    err = float(jnp.max(jnp.abs(out - ref)))
    assert err < 2e-2, f'max |kernel - reference| = {err}'

    print("KERNEL_OK")
</pallas_src>

<mosaic_0001>
module attributes {stable_mosaic.version = 11 : i64} {
  func.func @_res_block_kernel(%arg0: i32, %arg1: memref<1x4x100x128xf32, #tpu.memory_space<vmem>>, %arg2: memref<4x100x1xf32, #tpu.memory_space<vmem>>, %arg3: memref<1x128xf32, #tpu.memory_space<vmem>>, %arg4: memref<1x128xf32, #tpu.memory_space<vmem>>, %arg5: memref<128x128xbf16, #tpu.memory_space<vmem>>, %arg6: memref<1x128xf32, #tpu.memory_space<vmem>>, %arg7: memref<9x128x128xbf16, #tpu.memory_space<vmem>>, %arg8: memref<1x128xf32, #tpu.memory_space<vmem>>, %arg9: memref<256x128xbf16, #tpu.memory_space<vmem>>, %arg10: memref<1x128xf32, #tpu.memory_space<vmem>>, %arg11: memref<1x100x128xbf16, #tpu.memory_space<vmem>>, %arg12: memref<4x108x128xbf16, #tpu.memory_space<vmem>>) attributes {dimension_semantics = [#tpu.dimension_semantics<parallel>], iteration_bounds = array<i64: 2>, scalar_prefetch = 0 : i64, scratch_operands = 1 : i64, tpu.core_type = #tpu.core_type<tc>, window_params = [{transform_indices = @transform_0, window_bounds = array<i64: 1, 4, 100, 128>}, {pipeline_mode = #tpu.pipeline_mode<synchronous>, transform_indices = @transform_1, window_bounds = array<i64: 4, 100, 1>}, {pipeline_mode = #tpu.pipeline_mode<synchronous>, transform_indices = @transform_2, window_bounds = array<i64: 1, 128>}, {pipeline_mode = #tpu.pipeline_mode<synchronous>, transform_indices = @transform_3, window_bounds = array<i64: 1, 128>}, {pipeline_mode = #tpu.pipeline_mode<synchronous>, transform_indices = @transform_4, window_bounds = array<i64: 128, 128>}, {pipeline_mode = #tpu.pipeline_mode<synchronous>, transform_indices = @transform_5, window_bounds = array<i64: 1, 128>}, {pipeline_mode = #tpu.pipeline_mode<synchronous>, transform_indices = @transform_6, window_bounds = array<i64: 9, 128, 128>}, {pipeline_mode = #tpu.pipeline_mode<synchronous>, transform_indices = @transform_7, window_bounds = array<i64: 1, 128>}, {pipeline_mode = #tpu.pipeline_mode<synchronous>, transform_indices = @transform_8, window_bounds = array<i64: 256, 128>}, {pipeline_mode = #tpu.pipeline_mode<synchronous>, transform_indices = @transform_9, window_bounds = array<i64: 1, 128>}, {transform_indices = @transform_10, window_bounds = array<i64: 1, 100, 128>}]} {
    %cst = arith.constant 0.000000e+00 : bf16
    %0 = vector.broadcast %cst : bf16 to vector<8x128xbf16>
    %c0 = arith.constant 0 : index
    %c100 = arith.constant 100 : index
    %c0_0 = arith.constant 0 : index
    %1 = vector.load %arg12[%c0, %c100, %c0_0] : memref<4x108x128xbf16, #tpu.memory_space<vmem>>, vector<1x8x128xbf16>
    %2 = vector.shape_cast %1 : vector<1x8x128xbf16> to vector<8x128xbf16>
    %3 = vector.shape_cast %0 : vector<8x128xbf16> to vector<1x8x128xbf16>
    tpu.vector_store %arg12[%c0, %c100, %c0_0], %3 {strides = array<i32>} : memref<4x108x128xbf16, #tpu.memory_space<vmem>>, vector<1x8x128xbf16>,
    %c0_1 = arith.constant 0 : index
    %c0_2 = arith.constant 0 : index
    %c0_3 = arith.constant 0 : index
    %c0_4 = arith.constant 0 : index
    %4 = vector.load %arg1[%c0_1, %c0_2, %c0_3, %c0_4] : memref<1x4x100x128xf32, #tpu.memory_space<vmem>>, vector<1x1x100x128xf32>
    %5 = vector.shape_cast %4 : vector<1x1x100x128xf32> to vector<100x128xf32>
    %c0_5 = arith.constant 0 : index
    %c0_6 = arith.constant 0 : index
    %6 = vector.load %arg3[%c0_5, %c0_6] : memref<1x128xf32, #tpu.memory_space<vmem>>, vector<1x128xf32>
    %7 = vector.broadcast %6 : vector<1x128xf32> to vector<100x128xf32>
    %8 = arith.mulf %5, %7 : vector<100x128xf32>
    %c0_7 = arith.constant 0 : index
    %c0_8 = arith.constant 0 : index
    %9 = vector.load %arg4[%c0_7, %c0_8] : memref<1x128xf32, #tpu.memory_space<vmem>>, vector<1x128xf32>
    %10 = vector.broadcast %9 : vector<1x128xf32> to vector<100x128xf32>
    %11 = arith.addf %8, %10 : vector<100x128xf32>
    %cst_9 = arith.constant 0.000000e+00 : f32
    %12 = vector.broadcast %cst_9 : f32 to vector<100x128xf32>
    %13 = arith.maximumf %11, %12 : vector<100x128xf32>
    %14 = arith.truncf %13 : vector<100x128xf32> to vector<100x128xbf16>
    %c0_10 = arith.constant 0 : index
    %c0_11 = arith.constant 0 : index
    %15 = vector.load %arg5[%c0_10, %c0_11] : memref<128x128xbf16, #tpu.memory_space<vmem>>, vector<128x128xbf16>
    %cst_12 = arith.constant dense<0.000000e+00> : vector<100x128xf32>
    %16 = tpu.matmul %14, %15, %cst_12 {dimension_numbers = #tpu.dot_dimension_numbers<[1], [0], [0], [1], [0, 0, 1, 1], [], []>} : vector<100x128xbf16>, vector<128x128xbf16>, vector<100x128xf32> -> vector<100x128xf32>
    %c0_13 = arith.constant 0 : index
    %c0_14 = arith.constant 0 : index
    %17 = vector.load %arg6[%c0_13, %c0_14] : memref<1x128xf32, #tpu.memory_space<vmem>>, vector<1x128xf32>
    %18 = vector.broadcast %17 : vector<1x128xf32> to vector<100x128xf32>
    %19 = arith.addf %16, %18 : vector<100x128xf32>
    %cst_15 = arith.constant 0.000000e+00 : f32
    %20 = vector.broadcast %cst_15 : f32 to vector<100x128xf32>
    %21 = arith.maximumf %19, %20 : vector<100x128xf32>
    %c0_16 = arith.constant 0 : index
    %c0_17 = arith.constant 0 : index
    %c0_18 = arith.constant 0 : index
    %22 = vector.load %arg2[%c0_16, %c0_17, %c0_18] : memref<4x100x1xf32, #tpu.memory_space<vmem>>, vector<1x100x1xf32>
    %23 = vector.shape_cast %22 : vector<1x100x1xf32> to vector<100x1xf32>
    %24 = vector.broadcast %23 : vector<100x1xf32> to vector<100x128xf32>
    %25 = arith.mulf %21, %24 : vector<100x128xf32>
    %26 = arith.truncf %25 : vector<100x128xf32> to vector<100x128xbf16>
    %c0_19 = arith.constant 0 : index
    %c0_20 = arith.constant 0 : index
    %c0_21 = arith.constant 0 : index
    %27 = vector.load %arg12[%c0_19, %c0_20, %c0_21] : memref<4x108x128xbf16, #tpu.memory_space<vmem>>, vector<1x100x128xbf16>
    %28 = vector.shape_cast %27 : vector<1x100x128xbf16> to vector<100x128xbf16>
    %29 = vector.shape_cast %26 : vector<100x128xbf16> to vector<1x100x128xbf16>
    tpu.vector_store %arg12[%c0_19, %c0_20, %c0_21], %29 {strides = array<i32>} : memref<4x108x128xbf16, #tpu.memory_space<vmem>>, vector<1x100x128xbf16>,
    %cst_22 = arith.constant 0.000000e+00 : bf16
    %30 = vector.broadcast %cst_22 : bf16 to vector<8x128xbf16>
    %c1 = arith.constant 1 : index
    %c100_23 = arith.constant 100 : index
    %c0_24 = arith.constant 0 : index
    %31 = vector.load %arg12[%c1, %c100_23, %c0_24] : memref<4x108x128xbf16, #tpu.memory_space<vmem>>, vector<1x8x128xbf16>
    %32 = vector.shape_cast %31 : vector<1x8x128xbf16> to vector<8x128xbf16>
    %33 = vector.shape_cast %30 : vector<8x128xbf16> to vector<1x8x128xbf16>
    tpu.vector_store %arg12[%c1, %c100_23, %c0_24], %33 {strides = array<i32>} : memref<4x108x128xbf16, #tpu.memory_space<vmem>>, vector<1x8x128xbf16>,
    %c0_25 = arith.constant 0 : index
    %c1_26 = arith.constant 1 : index
    %c0_27 = arith.constant 0 : index
    %c0_28 = arith.constant 0 : index
    %34 = vector.load %arg1[%c0_25, %c1_26, %c0_27, %c0_28] : memref<1x4x100x128xf32, #tpu.memory_space<vmem>>, vector<1x1x100x128xf32>
    %35 = vector.shape_cast %34 : vector<1x1x100x128xf32> to vector<100x128xf32>
    %c0_29 = arith.constant 0 : index
    %c0_30 = arith.constant 0 : index
    %36 = vector.load %arg3[%c0_29, %c0_30] : memref<1x128xf32, #tpu.memory_space<vmem>>, vector<1x128xf32>
    %37 = vector.broadcast %36 : vector<1x128xf32> to vector<100x128xf32>
    %38 = arith.mulf %35, %37 : vector<100x128xf32>
    %c0_31 = arith.constant 0 : index
    %c0_32 = arith.constant 0 : index
    %39 = vector.load %arg4[%c0_31, %c0_32] : memref<1x128xf32, #tpu.memory_space<vmem>>, vector<1x128xf32>
    %40 = vector.broadcast %39 : vector<1x128xf32> to vector<100x128xf32>
    %41 = arith.addf %38, %40 : vector<100x128xf32>
    %cst_33 = arith.constant 0.000000e+00 : f32
    %42 = vector.broadcast %cst_33 : f32 to vector<100x128xf32>
    %43 = arith.maximumf %41, %42 : vector<100x128xf32>
    %44 = arith.truncf %43 : vector<100x128xf32> to vector<100x128xbf16>
    %c0_34 = arith.constant 0 : index
    %c0_35 = arith.constant 0 : index
    %45 = vector.load %arg5[%c0_34, %c0_35] : memref<128x128xbf16, #tpu.memory_space<vmem>>, vector<128x128xbf16>
    %cst_36 = arith.constant dense<0.000000e+00> : vector<100x128xf32>
    %46 = tpu.matmul %44, %45, %cst_36 {dimension_numbers = #tpu.dot_dimension_numbers<[1], [0], [0], [1], [0, 0, 1, 1], [], []>} : vector<100x128xbf16>, vector<128x128xbf16>, vector<100x128xf32> -> vector<100x128xf32>
    %c0_37 = arith.constant 0 : index
    %c0_38 = arith.constant 0 : index
    %47 = vector.load %arg6[%c0_37, %c0_38] : memref<1x128xf32, #tpu.memory_space<vmem>>, vector<1x128xf32>
    %48 = vector.broadcast %47 : vector<1x128xf32> to vector<100x128xf32>
    %49 = arith.addf %46, %48 : vector<100x128xf32>
    %cst_39 = arith.constant 0.000000e+00 : f32
    %50 = vector.broadcast %cst_39 : f32 to vector<100x128xf32>
    %51 = arith.maximumf %49, %50 : vector<100x128xf32>
    %c1_40 = arith.constant 1 : index
    %c0_41 = arith.constant 0 : index
    %c0_42 = arith.constant 0 : index
    %52 = vector.load %arg2[%c1_40, %c0_41, %c0_42] : memref<4x100x1xf32, #tpu.memory_space<vmem>>, vector<1x100x1xf32>
    %53 = vector.shape_cast %52 : vector<1x100x1xf32> to vector<100x1xf32>
    %54 = vector.broadcast %53 : vector<100x1xf32> to vector<100x128xf32>
    %55 = arith.mulf %51, %54 : vector<100x128xf32>
    %56 = arith.truncf %55 : vector<100x128xf32> to vector<100x128xbf16>
    %c1_43 = arith.constant 1 : index
    %c0_44 = arith.constant 0 : index
    %c0_45 = arith.constant 0 : index
    %57 = vector.load %arg12[%c1_43, %c0_44, %c0_45] : memref<4x108x128xbf16, #tpu.memory_space<vmem>>, vector<1x100x128xbf16>
    %58 = vector.shape_cast %57 : vector<1x100x128xbf16> to vector<100x128xbf16>
    %59 = vector.shape_cast %56 : vector<100x128xbf16> to vector<1x100x128xbf16>
    tpu.vector_store %arg12[%c1_43, %c0_44, %c0_45], %59 {strides = array<i32>} : memref<4x108x128xbf16, #tpu.memory_space<vmem>>, vector<1x100x128xbf16>,
    %cst_46 = arith.constant 0.000000e+00 : bf16
    %60 = vector.broadcast %cst_46 : bf16 to vector<8x128xbf16>
    %c2 = arith.constant 2 : index
    %c100_47 = arith.constant 100 : index
    %c0_48 = arith.constant 0 : index
    %61 = vector.load %arg12[%c2, %c100_47, %c0_48] : memref<4x108x128xbf16, #tpu.memory_space<vmem>>, vector<1x8x128xbf16>
    %62 = vector.shape_cast %61 : vector<1x8x128xbf16> to vector<8x128xbf16>
    %63 = vector.shape_cast %60 : vector<8x128xbf16> to vector<1x8x128xbf16>
    tpu.vector_store %arg12[%c2, %c100_47, %c0_48], %63 {strides = array<i32>} : memref<4x108x128xbf16, #tpu.memory_space<vmem>>, vector<1x8x128xbf16>,
    %c0_49 = arith.constant 0 : index
    %c2_50 = arith.constant 2 : index
    %c0_51 = arith.constant 0 : index
    %c0_52 = arith.constant 0 : index
    %64 = vector.load %arg1[%c0_49, %c2_50, %c0_51, %c0_52] : memref<1x4x100x128xf32, #tpu.memory_space<vmem>>, vector<1x1x100x128xf32>
    %65 = vector.shape_cast %64 : vector<1x1x100x128xf32> to vector<100x128xf32>
    %c0_53 = arith.constant 0 : index
    %c0_54 = arith.constant 0 : index
    %66 = vector.load %arg3[%c0_53, %c0_54] : memref<1x128xf32, #tpu.memory_space<vmem>>, vector<1x128xf32>
    %67 = vector.broadcast %66 : vector<1x128xf32> to vector<100x128xf32>
    %68 = arith.mulf %65, %67 : vector<100x128xf32>
    %c0_55 = arith.constant 0 : index
    %c0_56 = arith.constant 0 : index
    %69 = vector.load %arg4[%c0_55, %c0_56] : memref<1x128xf32, #tpu.memory_space<vmem>>, vector<1x128xf32>
    %70 = vector.broadcast %69 : vector<1x128xf32> to vector<100x128xf32>
    %71 = arith.addf %68, %70 : vector<100x128xf32>
    %cst_57 = arith.constant 0.000000e+00 : f32
    %72 = vector.broadcast %cst_57 : f32 to vector<100x128xf32>
    %73 = arith.maximumf %71, %72 : vector<100x128xf32>
    %74 = arith.truncf %73 : vector<100x128xf32> to vector<100x128xbf16>
    %c0_58 = arith.constant 0 : index
    %c0_59 = arith.constant 0 : index
    %75 = vector.load %arg5[%c0_58, %c0_59] : memref<128x128xbf16, #tpu.memory_space<vmem>>, vector<128x128xbf16>
    %cst_60 = arith.constant dense<0.000000e+00> : vector<100x128xf32>
    %76 = tpu.matmul %74, %75, %cst_60 {dimension_numbers = #tpu.dot_dimension_numbers<[1], [0], [0], [1], [0, 0, 1, 1], [], []>} : vector<100x128xbf16>, vector<128x128xbf16>, vector<100x128xf32> -> vector<100x128xf32>
    %c0_61 = arith.constant 0 : index
    %c0_62 = arith.constant 0 : index
    %77 = vector.load %arg6[%c0_61, %c0_62] : memref<1x128xf32, #tpu.memory_space<vmem>>, vector<1x128xf32>
    %78 = vector.broadcast %77 : vector<1x128xf32> to vector<100x128xf32>
    %79 = arith.addf %76, %78 : vector<100x128xf32>
    %cst_63 = arith.constant 0.000000e+00 : f32
    %80 = vector.broadcast %cst_63 : f32 to vector<100x128xf32>
    %81 = arith.maximumf %79, %80 : vector<100x128xf32>
    %c2_64 = arith.constant 2 : index
    %c0_65 = arith.constant 0 : index
    %c0_66 = arith.constant 0 : index
    %82 = vector.load %arg2[%c2_64, %c0_65, %c0_66] : memref<4x100x1xf32, #tpu.memory_space<vmem>>, vector<1x100x1xf32>
    %83 = vector.shape_cast %82 : vector<1x100x1xf32> to vector<100x1xf32>
    %84 = vector.broadcast %83 : vector<100x1xf32> to vector<100x128xf32>
    %85 = arith.mulf %81, %84 : vector<100x128xf32>
    %86 = arith.truncf %85 : vector<100x128xf32> to vector<100x128xbf16>
    %c2_67 = arith.constant 2 : index
    %c0_68 = arith.constant 0 : index
    %c0_69 = arith.constant 0 : index
    %87 = vector.load %arg12[%c2_67, %c0_68, %c0_69] : memref<4x108x128xbf16, #tpu.memory_space<vmem>>, vector<1x100x128xbf16>
    %88 = vector.shape_cast %87 : vector<1x100x128xbf16> to vector<100x128xbf16>
    %89 = vector.shape_cast %86 : vector<100x128xbf16> to vector<1x100x128xbf16>
    tpu.vector_store %arg12[%c2_67, %c0_68, %c0_69], %89 {strides = array<i32>} : memref<4x108x128xbf16, #tpu.memory_space<vmem>>, vector<1x100x128xbf16>,
    %cst_70 = arith.constant 0.000000e+00 : bf16
    %90 = vector.broadcast %cst_70 : bf16 to vector<8x128xbf16>
    %c3 = arith.constant 3 : index
    %c100_71 = arith.constant 100 : index
    %c0_72 = arith.constant 0 : index
    %91 = vector.load %arg12[%c3, %c100_71, %c0_72] : memref<4x108x128xbf16, #tpu.memory_space<vmem>>, vector<1x8x128xbf16>
    %92 = vector.shape_cast %91 : vector<1x8x128xbf16> to vector<8x128xbf16>
    %93 = vector.shape_cast %90 : vector<8x128xbf16> to vector<1x8x128xbf16>
    tpu.vector_store %arg12[%c3, %c100_71, %c0_72], %93 {strides = array<i32>} : memref<4x108x128xbf16, #tpu.memory_space<vmem>>, vector<1x8x128xbf16>,
    %c0_73 = arith.constant 0 : index
    %c3_74 = arith.constant 3 : index
    %c0_75 = arith.constant 0 : index
    %c0_76 = arith.constant 0 : index
    %94 = vector.load %arg1[%c0_73, %c3_74, %c0_75, %c0_76] : memref<1x4x100x128xf32, #tpu.memory_space<vmem>>, vector<1x1x100x128xf32>
    %95 = vector.shape_cast %94 : vector<1x1x100x128xf32> to vector<100x128xf32>
    %c0_77 = arith.constant 0 : index
    %c0_78 = arith.constant 0 : index
    %96 = vector.load %arg3[%c0_77, %c0_78] : memref<1x128xf32, #tpu.memory_space<vmem>>, vector<1x128xf32>
    %97 = vector.broadcast %96 : vector<1x128xf32> to vector<100x128xf32>
    %98 = arith.mulf %95, %97 : vector<100x128xf32>
    %c0_79 = arith.constant 0 : index
    %c0_80 = arith.constant 0 : index
    %99 = vector.load %arg4[%c0_79, %c0_80] : memref<1x128xf32, #tpu.memory_space<vmem>>, vector<1x128xf32>
    %100 = vector.broadcast %99 : vector<1x128xf32> to vector<100x128xf32>
    %101 = arith.addf %98, %100 : vector<100x128xf32>
    %cst_81 = arith.constant 0.000000e+00 : f32
    %102 = vector.broadcast %cst_81 : f32 to vector<100x128xf32>
    %103 = arith.maximumf %101, %102 : vector<100x128xf32>
    %104 = arith.truncf %103 : vector<100x128xf32> to vector<100x128xbf16>
    %c0_82 = arith.constant 0 : index
    %c0_83 = arith.constant 0 : index
    %105 = vector.load %arg5[%c0_82, %c0_83] : memref<128x128xbf16, #tpu.memory_space<vmem>>, vector<128x128xbf16>
    %cst_84 = arith.constant dense<0.000000e+00> : vector<100x128xf32>
    %106 = tpu.matmul %104, %105, %cst_84 {dimension_numbers = #tpu.dot_dimension_numbers<[1], [0], [0], [1], [0, 0, 1, 1], [], []>} : vector<100x128xbf16>, vector<128x128xbf16>, vector<100x128xf32> -> vector<100x128xf32>
    %c0_85 = arith.constant 0 : index
    %c0_86 = arith.constant 0 : index
    %107 = vector.load %arg6[%c0_85, %c0_86] : memref<1x128xf32, #tpu.memory_space<vmem>>, vector<1x128xf32>
    %108 = vector.broadcast %107 : vector<1x128xf32> to vector<100x128xf32>
    %109 = arith.addf %106, %108 : vector<100x128xf32>
    %cst_87 = arith.constant 0.000000e+00 : f32
    %110 = vector.broadcast %cst_87 : f32 to vector<100x128xf32>
    %111 = arith.maximumf %109, %110 : vector<100x128xf32>
    %c3_88 = arith.constant 3 : index
    %c0_89 = arith.constant 0 : index
    %c0_90 = arith.constant 0 : index
    %112 = vector.load %arg2[%c3_88, %c0_89, %c0_90] : memref<4x100x1xf32, #tpu.memory_space<vmem>>, vector<1x100x1xf32>
    %113 = vector.shape_cast %112 : vector<1x100x1xf32> to vector<100x1xf32>
    %114 = vector.broadcast %113 : vector<100x1xf32> to vector<100x128xf32>
    %115 = arith.mulf %111, %114 : vector<100x128xf32>
    %116 = arith.truncf %115 : vector<100x128xf32> to vector<100x128xbf16>
    %c3_91 = arith.constant 3 : index
    %c0_92 = arith.constant 0 : index
    %c0_93 = arith.constant 0 : index
    %117 = vector.load %arg12[%c3_91, %c0_92, %c0_93] : memref<4x108x128xbf16, #tpu.memory_space<vmem>>, vector<1x100x128xbf16>
    %118 = vector.shape_cast %117 : vector<1x100x128xbf16> to vector<100x128xbf16>
    %119 = vector.shape_cast %116 : vector<100x128xbf16> to vector<1x100x128xbf16>
    tpu.vector_store %arg12[%c3_91, %c0_92, %c0_93], %119 {strides = array<i32>} : memref<4x108x128xbf16, #tpu.memory_space<vmem>>, vector<1x100x128xbf16>,
    %cst_94 = arith.constant 0.000000e+00 : f32
    %120 = vector.broadcast %cst_94 : f32 to vector<80x128xf32>
    %c0_95 = arith.constant 0 : index
    %c0_96 = arith.constant 0 : index
    %c0_97 = arith.constant 0 : index
    %121 = vector.load %arg12[%c0_95, %c0_96, %c0_97] : memref<4x108x128xbf16, #tpu.memory_space<vmem>>, vector<1x80x128xbf16>
    %122 = vector.shape_cast %121 : vector<1x80x128xbf16> to vector<80x128xbf16>
    %c0_98 = arith.constant 0 : index
    %c0_99 = arith.constant 0 : index
    %c0_100 = arith.constant 0 : index
    %123 = vector.load %arg7[%c0_98, %c0_99, %c0_100] : memref<9x128x128xbf16, #tpu.memory_space<vmem>>, vector<1x128x128xbf16>
    %124 = vector.shape_cast %123 : vector<1x128x128xbf16> to vector<128x128xbf16>
    %cst_101 = arith.constant dense<0.000000e+00> : vector<80x128xf32>
    %125 = tpu.matmul %122, %124, %cst_101 {dimension_numbers = #tpu.dot_dimension_numbers<[1], [0], [0], [1], [0, 0, 1, 1], [], []>} : vector<80x128xbf16>, vector<128x128xbf16>, vector<80x128xf32> -> vector<80x128xf32>
    %126 = arith.addf %120, %125 : vector<80x128xf32>
    %c1_102 = arith.constant 1 : index
    %c0_103 = arith.constant 0 : index
    %c0_104 = arith.constant 0 : index
    %127 = vector.load %arg12[%c1_102, %c0_103, %c0_104] : memref<4x108x128xbf16, #tpu.memory_space<vmem>>, vector<1x80x128xbf16>
    %128 = vector.shape_cast %127 : vector<1x80x128xbf16> to vector<80x128xbf16>
    %c1_105 = arith.constant 1 : index
    %c0_106 = arith.constant 0 : index
    %c0_107 = arith.constant 0 : index
    %129 = vector.load %arg7[%c1_105, %c0_106, %c0_107] : memref<9x128x128xbf16, #tpu.memory_space<vmem>>, vector<1x128x128xbf16>
    %130 = vector.shape_cast %129 : vector<1x128x128xbf16> to vector<128x128xbf16>
    %cst_108 = arith.constant dense<0.000000e+00> : vector<80x128xf32>
    %131 = tpu.matmul %128, %130, %cst_108 {dimension_numbers = #tpu.dot_dimension_numbers<[1], [0], [0], [1], [0, 0, 1, 1], [], []>} : vector<80x128xbf16>, vector<128x128xbf16>, vector<80x128xf32> -> vector<80x128xf32>
    %132 = arith.addf %126, %131 : vector<80x128xf32>
    %c0_109 = arith.constant 0 : index
    %c1_110 = arith.constant 1 : index
    %c0_111 = arith.constant 0 : index
    %133 = vector.load %arg12[%c0_109, %c1_110, %c0_111] : memref<4x108x128xbf16, #tpu.memory_space<vmem>>, vector<1x80x128xbf16>
    %134 = vector.shape_cast %133 : vector<1x80x128xbf16> to vector<80x128xbf16>
    %c2_112 = arith.constant 2 : index
    %c0_113 = arith.constant 0 : index
    %c0_114 = arith.constant 0 : index
    %135 = vector.load %arg7[%c2_112, %c0_113, %c0_114] : memref<9x128x128xbf16, #tpu.memory_space<vmem>>, vector<1x128x128xbf16>
    %136 = vector.shape_cast %135 : vector<1x128x128xbf16> to vector<128x128xbf16>
    %cst_115 = arith.constant dense<0.000000e+00> : vector<80x128xf32>
    %137 = tpu.matmul %134, %136, %cst_115 {dimension_numbers = #tpu.dot_dimension_numbers<[1], [0], [0], [1], [0, 0, 1, 1], [], []>} : vector<80x128xbf16>, vector<128x128xbf16>, vector<80x128xf32> -> vector<80x128xf32>
    %138 = arith.addf %132, %137 : vector<80x128xf32>
    %c2_116 = arith.constant 2 : index
    %c0_117 = arith.constant 0 : index
    %c0_118 = arith.constant 0 : index
    %139 = vector.load %arg12[%c2_116, %c0_117, %c0_118] : memref<4x108x128xbf16, #tpu.memory_space<vmem>>, vector<1x80x128xbf16>
    %140 = vector.shape_cast %139 : vector<1x80x128xbf16> to vector<80x128xbf16>
    %c3_119 = arith.constant 3 : index
    %c0_120 = arith.constant 0 : index
    %c0_121 = arith.constant 0 : index
    %141 = vector.load %arg7[%c3_119, %c0_120, %c0_121] : memref<9x128x128xbf16, #tpu.memory_space<vmem>>, vector<1x128x128xbf16>
    %142 = vector.shape_cast %141 : vector<1x128x128xbf16> to vector<128x128xbf16>
    %cst_122 = arith.constant dense<0.000000e+00> : vector<80x128xf32>
    %143 = tpu.matmul %140, %142, %cst_122 {dimension_numbers = #tpu.dot_dimension_numbers<[1], [0], [0], [1], [0, 0, 1, 1], [], []>} : vector<80x128xbf16>, vector<128x128xbf16>, vector<80x128xf32> -> vector<80x128xf32>
    %144 = arith.addf %138, %143 : vector<80x128xf32>
    %c3_123 = arith.constant 3 : index
    %c0_124 = arith.constant 0 : index
    %c0_125 = arith.constant 0 : index
    %145 = vector.load %arg12[%c3_123, %c0_124, %c0_125] : memref<4x108x128xbf16, #tpu.memory_space<vmem>>, vector<1x80x128xbf16>
    %146 = vector.shape_cast %145 : vector<1x80x128xbf16> to vector<80x128xbf16>
    %c4 = arith.constant 4 : index
    %c0_126 = arith.constant 0 : index
    %c0_127 = arith.constant 0 : index
    %147 = vector.load %arg7[%c4, %c0_126, %c0_127] : memref<9x128x128xbf16, #tpu.memory_space<vmem>>, vector<1x128x128xbf16>
    %148 = vector.shape_cast %147 : vector<1x128x128xbf16> to vector<128x128xbf16>
    %cst_128 = arith.constant dense<0.000000e+00> : vector<80x128xf32>
    %149 = tpu.matmul %146, %148, %cst_128 {dimension_numbers = #tpu.dot_dimension_numbers<[1], [0], [0], [1], [0, 0, 1, 1], [], []>} : vector<80x128xbf16>, vector<128x128xbf16>, vector<80x128xf32> -> vector<80x128xf32>
    %150 = arith.addf %144, %149 : vector<80x128xf32>
    %c2_129 = arith.constant 2 : index
    %c1_130 = arith.constant 1 : index
    %c0_131 = arith.constant 0 : index
    %151 = vector.load %arg12[%c2_129, %c1_130, %c0_131] : memref<4x108x128xbf16, #tpu.memory_space<vmem>>, vector<1x80x128xbf16>
    %152 = vector.shape_cast %151 : vector<1x80x128xbf16> to vector<80x128xbf16>
    %c5 = arith.constant 5 : index
    %c0_132 = arith.constant 0 : index
    %c0_133 = arith.constant 0 : index
    %153 = vector.load %arg7[%c5, %c0_132, %c0_133] : memref<9x128x128xbf16, #tpu.memory_space<vmem>>, vector<1x128x128xbf16>
    %154 = vector.shape_cast %153 : vector<1x128x128xbf16> to vector<128x128xbf16>
    %cst_134 = arith.constant dense<0.000000e+00> : vector<80x128xf32>
    %155 = tpu.matmul %152, %154, %cst_134 {dimension_numbers = #tpu.dot_dimension_numbers<[1], [0], [0], [1], [0, 0, 1, 1], [], []>} : vector<80x128xbf16>, vector<128x128xbf16>, vector<80x128xf32> -> vector<80x128xf32>
    %156 = arith.addf %150, %155 : vector<80x128xf32>
    %c0_135 = arith.constant 0 : index
    %c10 = arith.constant 10 : index
    %c0_136 = arith.constant 0 : index
    %157 = vector.load %arg12[%c0_135, %c10, %c0_136] : memref<4x108x128xbf16, #tpu.memory_space<vmem>>, vector<1x80x128xbf16>
    %158 = vector.shape_cast %157 : vector<1x80x128xbf16> to vector<80x128xbf16>
    %c6 = arith.constant 6 : index
    %c0_137 = arith.constant 0 : index
    %c0_138 = arith.constant 0 : index
    %159 = vector.load %arg7[%c6, %c0_137, %c0_138] : memref<9x128x128xbf16, #tpu.memory_space<vmem>>, vector<1x128x128xbf16>
    %160 = vector.shape_cast %159 : vector<1x128x128xbf16> to vector<128x128xbf16>
    %cst_139 = arith.constant dense<0.000000e+00> : vector<80x128xf32>
    %161 = tpu.matmul %158, %160, %cst_139 {dimension_numbers = #tpu.dot_dimension_numbers<[1], [0], [0], [1], [0, 0, 1, 1], [], []>} : vector<80x128xbf16>, vector<128x128xbf16>, vector<80x128xf32> -> vector<80x128xf32>
    %162 = arith.addf %156, %161 : vector<80x128xf32>
    %c1_140 = arith.constant 1 : index
    %c10_141 = arith.constant 10 : index
    %c0_142 = arith.constant 0 : index
    %163 = vector.load %arg12[%c1_140, %c10_141, %c0_142] : memref<4x108x128xbf16, #tpu.memory_space<vmem>>, vector<1x80x128xbf16>
    %164 = vector.shape_cast %163 : vector<1x80x128xbf16> to vector<80x128xbf16>
    %c7 = arith.constant 7 : index
    %c0_143 = arith.constant 0 : index
    %c0_144 = arith.constant 0 : index
    %165 = vector.load %arg7[%c7, %c0_143, %c0_144] : memref<9x128x128xbf16, #tpu.memory_space<vmem>>, vector<1x128x128xbf16>
    %166 = vector.shape_cast %165 : vector<1x128x128xbf16> to vector<128x128xbf16>
    %cst_145 = arith.constant dense<0.000000e+00> : vector<80x128xf32>
    %167 = tpu.matmul %164, %166, %cst_145 {dimension_numbers = #tpu.dot_dimension_numbers<[1], [0], [0], [1], [0, 0, 1, 1], [], []>} : vector<80x128xbf16>, vector<128x128xbf16>, vector<80x128xf32> -> vector<80x128xf32>
    %168 = arith.addf %162, %167 : vector<80x128xf32>
    %c0_146 = arith.constant 0 : index
    %c11 = arith.constant 11 : index
    %c0_147 = arith.constant 0 : index
    %169 = vector.load %arg12[%c0_146, %c11, %c0_147] : memref<4x108x128xbf16, #tpu.memory_space<vmem>>, vector<1x80x128xbf16>
    %170 = vector.shape_cast %169 : vector<1x80x128xbf16> to vector<80x128xbf16>
    %c8 = arith.constant 8 : index
    %c0_148 = arith.constant 0 : index
    %c0_149 = arith.constant 0 : index
    %171 = vector.load %arg7[%c8, %c0_148, %c0_149] : memref<9x128x128xbf16, #tpu.memory_space<vmem>>, vector<1x128x128xbf16>
    %172 = vector.shape_cast %171 : vector<1x128x128xbf16> to vector<128x128xbf16>
    %cst_150 = arith.constant dense<0.000000e+00> : vector<80x128xf32>
    %173 = tpu.matmul %170, %172, %cst_150 {dimension_numbers = #tpu.dot_dimension_numbers<[1], [0], [0], [1], [0, 0, 1, 1], [], []>} : vector<80x128xbf16>, vector<128x128xbf16>, vector<80x128xf32> -> vector<80x128xf32>
    %174 = arith.addf %168, %173 : vector<80x128xf32>
    %c0_151 = arith.constant 0 : index
    %c0_152 = arith.constant 0 : index
    %175 = vector.load %arg8[%c0_151, %c0_152] : memref<1x128xf32, #tpu.memory_space<vmem>>, vector<1x128xf32>
    %176 = vector.broadcast %175 : vector<1x128xf32> to vector<80x128xf32>
    %177 = arith.addf %174, %176 : vector<80x128xf32>
    %cst_153 = arith.constant 0.000000e+00 : f32
    %178 = vector.broadcast %cst_153 : f32 to vector<80x128xf32>
    %179 = arith.maximumf %177, %178 : vector<80x128xf32>
    %c0_154 = arith.constant 0 : index
    %c3_155 = arith.constant 3 : index
    %c0_156 = arith.constant 0 : index
    %c0_157 = arith.constant 0 : index
    %180 = vector.load %arg1[%c0_154, %c3_155, %c0_156, %c0_157] : memref<1x4x100x128xf32, #tpu.memory_space<vmem>>, vector<1x1x80x128xf32>
    %181 = vector.shape_cast %180 : vector<1x1x80x128xf32> to vector<80x128xf32>
    %c0_158 = arith.constant 0 : index
    %c2_159 = arith.constant 2 : index
    %c1_160 = arith.constant 1 : index
    %c0_161 = arith.constant 0 : index
    %182 = vector.load %arg1[%c0_158, %c2_159, %c1_160, %c0_161] : memref<1x4x100x128xf32, #tpu.memory_space<vmem>>, vector<1x1x80x128xf32>
    %183 = vector.shape_cast %182 : vector<1x1x80x128xf32> to vector<80x128xf32>
    %184 = arith.maximumf %181, %183 : vector<80x128xf32>
    %c0_162 = arith.constant 0 : index
    %c1_163 = arith.constant 1 : index
    %c10_164 = arith.constant 10 : index
    %c0_165 = arith.constant 0 : index
    %185 = vector.load %arg1[%c0_162, %c1_163, %c10_164, %c0_165] : memref<1x4x100x128xf32, #tpu.memory_space<vmem>>, vector<1x1x80x128xf32>
    %186 = vector.shape_cast %185 : vector<1x1x80x128xf32> to vector<80x128xf32>
    %187 = arith.maximumf %184, %186 : vector<80x128xf32>
    %c0_166 = arith.constant 0 : index
    %c0_167 = arith.constant 0 : index
    %c11_168 = arith.constant 11 : index
    %c0_169 = arith.constant 0 : index
    %188 = vector.load %arg1[%c0_166, %c0_167, %c11_168, %c0_169] : memref<1x4x100x128xf32, #tpu.memory_space<vmem>>, vector<1x1x80x128xf32>
    %189 = vector.shape_cast %188 : vector<1x1x80x128xf32> to vector<80x128xf32>
    %190 = arith.maximumf %187, %189 : vector<80x128xf32>
    %191 = arith.truncf %179 : vector<80x128xf32> to vector<80x128xbf16>
    %c0_170 = arith.constant 0 : index
    %c0_171 = arith.constant 0 : index
    %192 = vector.load %arg9[%c0_170, %c0_171] : memref<256x128xbf16, #tpu.memory_space<vmem>>, vector<128x128xbf16>
    %cst_172 = arith.constant dense<0.000000e+00> : vector<80x128xf32>
    %193 = tpu.matmul %191, %192, %cst_172 {dimension_numbers = #tpu.dot_dimension_numbers<[1], [0], [0], [1], [0, 0, 1, 1], [], []>} : vector<80x128xbf16>, vector<128x128xbf16>, vector<80x128xf32> -> vector<80x128xf32>
    %194 = arith.truncf %190 : vector<80x128xf32> to vector<80x128xbf16>
    %c128 = arith.constant 128 : index
    %c0_173 = arith.constant 0 : index
    %195 = vector.load %arg9[%c128, %c0_173] : memref<256x128xbf16, #tpu.memory_space<vmem>>, vector<128x128xbf16>
    %cst_174 = arith.constant dense<0.000000e+00> : vector<80x128xf32>
    %196 = tpu.matmul %194, %195, %cst_174 {dimension_numbers = #tpu.dot_dimension_numbers<[1], [0], [0], [1], [0, 0, 1, 1], [], []>} : vector<80x128xbf16>, vector<128x128xbf16>, vector<80x128xf32> -> vector<80x128xf32>
    %197 = arith.addf %193, %196 : vector<80x128xf32>
    %c0_175 = arith.constant 0 : index
    %c0_176 = arith.constant 0 : index
    %198 = vector.load %arg10[%c0_175, %c0_176] : memref<1x128xf32, #tpu.memory_space<vmem>>, vector<1x128xf32>
    %199 = vector.broadcast %198 : vector<1x128xf32> to vector<80x128xf32>
    %200 = arith.addf %197, %199 : vector<80x128xf32>
    %cst_177 = arith.constant 0.000000e+00 : bf16
    %201 = vector.broadcast %cst_177 : bf16 to vector<11x128xbf16>
    %c0_178 = arith.constant 0 : index
    %c0_179 = arith.constant 0 : index
    %c0_180 = arith.constant 0 : index
    %202 = vector.load %arg11[%c0_178, %c0_179, %c0_180] : memref<1x100x128xbf16, #tpu.memory_space<vmem>>, vector<1x11x128xbf16>
    %203 = vector.shape_cast %202 : vector<1x11x128xbf16> to vector<11x128xbf16>
    %204 = vector.shape_cast %201 : vector<11x128xbf16> to vector<1x11x128xbf16>
    tpu.vector_store %arg11[%c0_178, %c0_179, %c0_180], %204 {strides = array<i32>} : memref<1x100x128xbf16, #tpu.memory_space<vmem>>, vector<1x11x128xbf16>,
    %205 = arith.truncf %200 : vector<80x128xf32> to vector<80x128xbf16>
    %c0_181 = arith.constant 0 : index
    %c11_182 = arith.constant 11 : index
    %c0_183 = arith.constant 0 : index
    %206 = vector.load %arg11[%c0_181, %c11_182, %c0_183] : memref<1x100x128xbf16, #tpu.memory_space<vmem>>, vector<1x80x128xbf16>
    %207 = vector.shape_cast %206 : vector<1x80x128xbf16> to vector<80x128xbf16>
    %208 = vector.shape_cast %205 : vector<80x128xbf16> to vector<1x80x128xbf16>
    tpu.vector_store %arg11[%c0_181, %c11_182, %c0_183], %208 {strides = array<i32>} : memref<1x100x128xbf16, #tpu.memory_space<vmem>>, vector<1x80x128xbf16>,
    %cst_184 = arith.constant 0.000000e+00 : bf16
    %209 = vector.broadcast %cst_184 : bf16 to vector<9x128xbf16>
    %c0_185 = arith.constant 0 : index
    %c91 = arith.constant 91 : index
    %c0_186 = arith.constant 0 : index
    %210 = vector.load %arg11[%c0_185, %c91, %c0_186] : memref<1x100x128xbf16, #tpu.memory_space<vmem>>, vector<1x9x128xbf16>
    %211 = vector.shape_cast %210 : vector<1x9x128xbf16> to vector<9x128xbf16>
    %212 = vector.shape_cast %209 : vector<9x128xbf16> to vector<1x9x128xbf16>
    tpu.vector_store %arg11[%c0_185, %c91, %c0_186], %212 {strides = array<i32>} : memref<1x100x128xbf16, #tpu.memory_space<vmem>>, vector<1x9x128xbf16>,
    return
  }
  func.func @transform_0(%arg0: i32) -> (i32, i32, i32, i32) {
    %c0_i32 = arith.constant 0 : i32
    %c0_i32_0 = arith.constant 0 : i32
    %c0_i32_1 = arith.constant 0 : i32
    %c0_i32_2 = arith.constant 0 : i32
    return %arg0, %c0_i32, %c0_i32_0, %c0_i32_1 : i32, i32, i32, i32
  }
  func.func @transform_1(%arg0: i32) -> (i32, i32, i32) {
    %c0_i32 = arith.constant 0 : i32
    %c0_i32_0 = arith.constant 0 : i32
    %c0_i32_1 = arith.constant 0 : i32
    %c0_i32_2 = arith.constant 0 : i32
    return %c0_i32, %c0_i32_0, %c0_i32_1 : i32, i32, i32
  }
  func.func @transform_2(%arg0: i32) -> (i32, i32) {
    %c0_i32 = arith.constant 0 : i32
    %c0_i32_0 = arith.constant 0 : i32
    %c0_i32_1 = arith.constant 0 : i32
    return %c0_i32, %c0_i32_0 : i32, i32
  }
  func.func @transform_3(%arg0: i32) -> (i32, i32) {
    %c0_i32 = arith.constant 0 : i32
    %c0_i32_0 = arith.constant 0 : i32
    %c0_i32_1 = arith.constant 0 : i32
    return %c0_i32, %c0_i32_0 : i32, i32
  }
  func.func @transform_4(%arg0: i32) -> (i32, i32) {
    %c0_i32 = arith.constant 0 : i32
    %c0_i32_0 = arith.constant 0 : i32
    %c0_i32_1 = arith.constant 0 : i32
    return %c0_i32, %c0_i32_0 : i32, i32
  }
  func.func @transform_5(%arg0: i32) -> (i32, i32) {
    %c0_i32 = arith.constant 0 : i32
    %c0_i32_0 = arith.constant 0 : i32
    %c0_i32_1 = arith.constant 0 : i32
    return %c0_i32, %c0_i32_0 : i32, i32
  }
  func.func @transform_6(%arg0: i32) -> (i32, i32, i32) {
    %c0_i32 = arith.constant 0 : i32
    %c0_i32_0 = arith.constant 0 : i32
    %c0_i32_1 = arith.constant 0 : i32
    %c0_i32_2 = arith.constant 0 : i32
    return %c0_i32, %c0_i32_0, %c0_i32_1 : i32, i32, i32
  }
  func.func @transform_7(%arg0: i32) -> (i32, i32) {
    %c0_i32 = arith.constant 0 : i32
    %c0_i32_0 = arith.constant 0 : i32
    %c0_i32_1 = arith.constant 0 : i32
    return %c0_i32, %c0_i32_0 : i32, i32
  }
  func.func @transform_8(%arg0: i32) -> (i32, i32) {
    %c0_i32 = arith.constant 0 : i32
    %c0_i32_0 = arith.constant 0 : i32
    %c0_i32_1 = arith.constant 0 : i32
    return %c0_i32, %c0_i32_0 : i32, i32
  }
  func.func @transform_9(%arg0: i32) -> (i32, i32) {
    %c0_i32 = arith.constant 0 : i32
    %c0_i32_0 = arith.constant 0 : i32
    %c0_i32_1 = arith.constant 0 : i32
    return %c0_i32, %c0_i32_0 : i32, i32
  }
  func.func @transform_10(%arg0: i32) -> (i32, i32, i32) {
    %c0_i32 = arith.constant 0 : i32
    %c0_i32_0 = arith.constant 0 : i32
    %c0_i32_1 = arith.constant 0 : i32
    return %arg0, %c0_i32, %c0_i32_0 : i32, i32, i32
  }
}

module attributes {stable_mosaic.version = 11 : i64} {
  func.func @_res_block_kernel(%arg0: i32, %arg1: memref<1x1x100x128xbf16, #tpu.memory_space<vmem>>, %arg2: memref<1x100x1xf32, #tpu.memory_space<vmem>>, %arg3: memref<1x128xf32, #tpu.memory_space<vmem>>, %arg4: memref<1x128xf32, #tpu.memory_space<vmem>>, %arg5: memref<128x128xbf16, #tpu.memory_space<vmem>>, %arg6: memref<1x128xf32, #tpu.memory_space<vmem>>, %arg7: memref<9x128x128xbf16, #tpu.memory_space<vmem>>, %arg8: memref<1x128xf32, #tpu.memory_space<vmem>>, %arg9: memref<128x128xbf16, #tpu.memory_space<vmem>>, %arg10: memref<1x128xf32, #tpu.memory_space<vmem>>, %arg11: memref<1x80x128xf32, #tpu.memory_space<vmem>>, %arg12: memref<1x108x128xbf16, #tpu.memory_space<vmem>>) attributes {dimension_semantics = [#tpu.dimension_semantics<parallel>], iteration_bounds = array<i64: 2>, scalar_prefetch = 0 : i64, scratch_operands = 1 : i64, tpu.core_type = #tpu.core_type<tc>, window_params = [{transform_indices = @transform_0, window_bounds = array<i64: 1, 1, 100, 128>}, {pipeline_mode = #tpu.pipeline_mode<synchronous>, transform_indices = @transform_1, window_bounds = array<i64: 1, 100, 1>}, {pipeline_mode = #tpu.pipeline_mode<synchronous>, transform_indices = @transform_2, window_bounds = array<i64: 1, 128>}, {pipeline_mode = #tpu.pipeline_mode<synchronous>, transform_indices = @transform_3, window_bounds = array<i64: 1, 128>}, {pipeline_mode = #tpu.pipeline_mode<synchronous>, transform_indices = @transform_4, window_bounds = array<i64: 128, 128>}, {pipeline_mode = #tpu.pipeline_mode<synchronous>, transform_indices = @transform_5, window_bounds = array<i64: 1, 128>}, {pipeline_mode = #tpu.pipeline_mode<synchronous>, transform_indices = @transform_6, window_bounds = array<i64: 9, 128, 128>}, {pipeline_mode = #tpu.pipeline_mode<synchronous>, transform_indices = @transform_7, window_bounds = array<i64: 1, 128>}, {pipeline_mode = #tpu.pipeline_mode<synchronous>, transform_indices = @transform_8, window_bounds = array<i64: 128, 128>}, {pipeline_mode = #tpu.pipeline_mode<synchronous>, transform_indices = @transform_9, window_bounds = array<i64: 1, 128>}, {transform_indices = @transform_10, window_bounds = array<i64: 1, 80, 128>}]} {
    %cst = arith.constant 0.000000e+00 : bf16
    %0 = vector.broadcast %cst : bf16 to vector<8x128xbf16>
    %c0 = arith.constant 0 : index
    %c100 = arith.constant 100 : index
    %c0_0 = arith.constant 0 : index
    %1 = vector.load %arg12[%c0, %c100, %c0_0] : memref<1x108x128xbf16, #tpu.memory_space<vmem>>, vector<1x8x128xbf16>
    %2 = vector.shape_cast %1 : vector<1x8x128xbf16> to vector<8x128xbf16>
    %3 = vector.shape_cast %0 : vector<8x128xbf16> to vector<1x8x128xbf16>
    tpu.vector_store %arg12[%c0, %c100, %c0_0], %3 {strides = array<i32>} : memref<1x108x128xbf16, #tpu.memory_space<vmem>>, vector<1x8x128xbf16>,
    %c0_1 = arith.constant 0 : index
    %c0_2 = arith.constant 0 : index
    %c0_3 = arith.constant 0 : index
    %c0_4 = arith.constant 0 : index
    %4 = vector.load %arg1[%c0_1, %c0_2, %c0_3, %c0_4] : memref<1x1x100x128xbf16, #tpu.memory_space<vmem>>, vector<1x1x100x128xbf16>
    %5 = vector.shape_cast %4 : vector<1x1x100x128xbf16> to vector<100x128xbf16>
    %6 = arith.extf %5 : vector<100x128xbf16> to vector<100x128xf32>
    %c0_5 = arith.constant 0 : index
    %c0_6 = arith.constant 0 : index
    %7 = vector.load %arg3[%c0_5, %c0_6] : memref<1x128xf32, #tpu.memory_space<vmem>>, vector<1x128xf32>
    %8 = vector.broadcast %7 : vector<1x128xf32> to vector<100x128xf32>
    %9 = arith.mulf %6, %8 : vector<100x128xf32>
    %c0_7 = arith.constant 0 : index
    %c0_8 = arith.constant 0 : index
    %10 = vector.load %arg4[%c0_7, %c0_8] : memref<1x128xf32, #tpu.memory_space<vmem>>, vector<1x128xf32>
    %11 = vector.broadcast %10 : vector<1x128xf32> to vector<100x128xf32>
    %12 = arith.addf %9, %11 : vector<100x128xf32>
    %cst_9 = arith.constant 0.000000e+00 : f32
    %13 = vector.broadcast %cst_9 : f32 to vector<100x128xf32>
    %14 = arith.maximumf %12, %13 : vector<100x128xf32>
    %15 = arith.truncf %14 : vector<100x128xf32> to vector<100x128xbf16>
    %c0_10 = arith.constant 0 : index
    %c0_11 = arith.constant 0 : index
    %16 = vector.load %arg5[%c0_10, %c0_11] : memref<128x128xbf16, #tpu.memory_space<vmem>>, vector<128x128xbf16>
    %cst_12 = arith.constant dense<0.000000e+00> : vector<100x128xf32>
    %17 = tpu.matmul %15, %16, %cst_12 {dimension_numbers = #tpu.dot_dimension_numbers<[1], [0], [0], [1], [0, 0, 1, 1], [], []>} : vector<100x128xbf16>, vector<128x128xbf16>, vector<100x128xf32> -> vector<100x128xf32>
    %c0_13 = arith.constant 0 : index
    %c0_14 = arith.constant 0 : index
    %18 = vector.load %arg6[%c0_13, %c0_14] : memref<1x128xf32, #tpu.memory_space<vmem>>, vector<1x128xf32>
    %19 = vector.broadcast %18 : vector<1x128xf32> to vector<100x128xf32>
    %20 = arith.addf %17, %19 : vector<100x128xf32>
    %cst_15 = arith.constant 0.000000e+00 : f32
    %21 = vector.broadcast %cst_15 : f32 to vector<100x128xf32>
    %22 = arith.maximumf %20, %21 : vector<100x128xf32>
    %c0_16 = arith.constant 0 : index
    %c0_17 = arith.constant 0 : index
    %c0_18 = arith.constant 0 : index
    %23 = vector.load %arg2[%c0_16, %c0_17, %c0_18] : memref<1x100x1xf32, #tpu.memory_space<vmem>>, vector<1x100x1xf32>
    %24 = vector.shape_cast %23 : vector<1x100x1xf32> to vector<100x1xf32>
    %25 = vector.broadcast %24 : vector<100x1xf32> to vector<100x128xf32>
    %26 = arith.mulf %22, %25 : vector<100x128xf32>
    %27 = arith.truncf %26 : vector<100x128xf32> to vector<100x128xbf16>
    %c0_19 = arith.constant 0 : index
    %c0_20 = arith.constant 0 : index
    %c0_21 = arith.constant 0 : index
    %28 = vector.load %arg12[%c0_19, %c0_20, %c0_21] : memref<1x108x128xbf16, #tpu.memory_space<vmem>>, vector<1x100x128xbf16>
    %29 = vector.shape_cast %28 : vector<1x100x128xbf16> to vector<100x128xbf16>
    %30 = vector.shape_cast %27 : vector<100x128xbf16> to vector<1x100x128xbf16>
    tpu.vector_store %arg12[%c0_19, %c0_20, %c0_21], %30 {strides = array<i32>} : memref<1x108x128xbf16, #tpu.memory_space<vmem>>, vector<1x100x128xbf16>,
    %cst_22 = arith.constant 0.000000e+00 : f32
    %31 = vector.broadcast %cst_22 : f32 to vector<80x128xf32>
    %c0_23 = arith.constant 0 : index
    %c0_24 = arith.constant 0 : index
    %c0_25 = arith.constant 0 : index
    %32 = vector.load %arg12[%c0_23, %c0_24, %c0_25] : memref<1x108x128xbf16, #tpu.memory_space<vmem>>, vector<1x80x128xbf16>
    %33 = vector.shape_cast %32 : vector<1x80x128xbf16> to vector<80x128xbf16>
    %c0_26 = arith.constant 0 : index
    %c0_27 = arith.constant 0 : index
    %c0_28 = arith.constant 0 : index
    %34 = vector.load %arg7[%c0_26, %c0_27, %c0_28] : memref<9x128x128xbf16, #tpu.memory_space<vmem>>, vector<1x128x128xbf16>
    %35 = vector.shape_cast %34 : vector<1x128x128xbf16> to vector<128x128xbf16>
    %cst_29 = arith.constant dense<0.000000e+00> : vector<80x128xf32>
    %36 = tpu.matmul %33, %35, %cst_29 {dimension_numbers = #tpu.dot_dimension_numbers<[1], [0], [0], [1], [0, 0, 1, 1], [], []>} : vector<80x128xbf16>, vector<128x128xbf16>, vector<80x128xf32> -> vector<80x128xf32>
    %37 = arith.addf %31, %36 : vector<80x128xf32>
    %c0_30 = arith.constant 0 : index
    %c1 = arith.constant 1 : index
    %c0_31 = arith.constant 0 : index
    %38 = vector.load %arg12[%c0_30, %c1, %c0_31] : memref<1x108x128xbf16, #tpu.memory_space<vmem>>, vector<1x80x128xbf16>
    %39 = vector.shape_cast %38 : vector<1x80x128xbf16> to vector<80x128xbf16>
    %c1_32 = arith.constant 1 : index
    %c0_33 = arith.constant 0 : index
    %c0_34 = arith.constant 0 : index
    %40 = vector.load %arg7[%c1_32, %c0_33, %c0_34] : memref<9x128x128xbf16, #tpu.memory_space<vmem>>, vector<1x128x128xbf16>
    %41 = vector.shape_cast %40 : vector<1x128x128xbf16> to vector<128x128xbf16>
    %cst_35 = arith.constant dense<0.000000e+00> : vector<80x128xf32>
    %42 = tpu.matmul %39, %41, %cst_35 {dimension_numbers = #tpu.dot_dimension_numbers<[1], [0], [0], [1], [0, 0, 1, 1], [], []>} : vector<80x128xbf16>, vector<128x128xbf16>, vector<80x128xf32> -> vector<80x128xf32>
    %43 = arith.addf %37, %42 : vector<80x128xf32>
    %c0_36 = arith.constant 0 : index
    %c2 = arith.constant 2 : index
    %c0_37 = arith.constant 0 : index
    %44 = vector.load %arg12[%c0_36, %c2, %c0_37] : memref<1x108x128xbf16, #tpu.memory_space<vmem>>, vector<1x80x128xbf16>
    %45 = vector.shape_cast %44 : vector<1x80x128xbf16> to vector<80x128xbf16>
    %c2_38 = arith.constant 2 : index
    %c0_39 = arith.constant 0 : index
    %c0_40 = arith.constant 0 : index
    %46 = vector.load %arg7[%c2_38, %c0_39, %c0_40] : memref<9x128x128xbf16, #tpu.memory_space<vmem>>, vector<1x128x128xbf16>
    %47 = vector.shape_cast %46 : vector<1x128x128xbf16> to vector<128x128xbf16>
    %cst_41 = arith.constant dense<0.000000e+00> : vector<80x128xf32>
    %48 = tpu.matmul %45, %47, %cst_41 {dimension_numbers = #tpu.dot_dimension_numbers<[1], [0], [0], [1], [0, 0, 1, 1], [], []>} : vector<80x128xbf16>, vector<128x128xbf16>, vector<80x128xf32> -> vector<80x128xf32>
    %49 = arith.addf %43, %48 : vector<80x128xf32>
    %c0_42 = arith.constant 0 : index
    %c10 = arith.constant 10 : index
    %c0_43 = arith.constant 0 : index
    %50 = vector.load %arg12[%c0_42, %c10, %c0_43] : memref<1x108x128xbf16, #tpu.memory_space<vmem>>, vector<1x80x128xbf16>
    %51 = vector.shape_cast %50 : vector<1x80x128xbf16> to vector<80x128xbf16>
    %c3 = arith.constant 3 : index
    %c0_44 = arith.constant 0 : index
    %c0_45 = arith.constant 0 : index
    %52 = vector.load %arg7[%c3, %c0_44, %c0_45] : memref<9x128x128xbf16, #tpu.memory_space<vmem>>, vector<1x128x128xbf16>
    %53 = vector.shape_cast %52 : vector<1x128x128xbf16> to vector<128x128xbf16>
    %cst_46 = arith.constant dense<0.000000e+00> : vector<80x128xf32>
    %54 = tpu.matmul %51, %53, %cst_46 {dimension_numbers = #tpu.dot_dimension_numbers<[1], [0], [0], [1], [0, 0, 1, 1], [], []>} : vector<80x128xbf16>, vector<128x128xbf16>, vector<80x128xf32> -> vector<80x128xf32>
    %55 = arith.addf %49, %54 : vector<80x128xf32>
    %c0_47 = arith.constant 0 : index
    %c11 = arith.constant 11 : index
    %c0_48 = arith.constant 0 : index
    %56 = vector.load %arg12[%c0_47, %c11, %c0_48] : memref<1x108x128xbf16, #tpu.memory_space<vmem>>, vector<1x80x128xbf16>
    %57 = vector.shape_cast %56 : vector<1x80x128xbf16> to vector<80x128xbf16>
    %c4 = arith.constant 4 : index
    %c0_49 = arith.constant 0 : index
    %c0_50 = arith.constant 0 : index
    %58 = vector.load %arg7[%c4, %c0_49, %c0_50] : memref<9x128x128xbf16, #tpu.memory_space<vmem>>, vector<1x128x128xbf16>
    %59 = vector.shape_cast %58 : vector<1x128x128xbf16> to vector<128x128xbf16>
    %cst_51 = arith.constant dense<0.000000e+00> : vector<80x128xf32>
    %60 = tpu.matmul %57, %59, %cst_51 {dimension_numbers = #tpu.dot_dimension_numbers<[1], [0], [0], [1], [0, 0, 1, 1], [], []>} : vector<80x128xbf16>, vector<128x128xbf16>, vector<80x128xf32> -> vector<80x128xf32>
    %61 = arith.addf %55, %60 : vector<80x128xf32>
    %c0_52 = arith.constant 0 : index
    %c12 = arith.constant 12 : index
    %c0_53 = arith.constant 0 : index
    %62 = vector.load %arg12[%c0_52, %c12, %c0_53] : memref<1x108x128xbf16, #tpu.memory_space<vmem>>, vector<1x80x128xbf16>
    %63 = vector.shape_cast %62 : vector<1x80x128xbf16> to vector<80x128xbf16>
    %c5 = arith.constant 5 : index
    %c0_54 = arith.constant 0 : index
    %c0_55 = arith.constant 0 : index
    %64 = vector.load %arg7[%c5, %c0_54, %c0_55] : memref<9x128x128xbf16, #tpu.memory_space<vmem>>, vector<1x128x128xbf16>
    %65 = vector.shape_cast %64 : vector<1x128x128xbf16> to vector<128x128xbf16>
    %cst_56 = arith.constant dense<0.000000e+00> : vector<80x128xf32>
    %66 = tpu.matmul %63, %65, %cst_56 {dimension_numbers = #tpu.dot_dimension_numbers<[1], [0], [0], [1], [0, 0, 1, 1], [], []>} : vector<80x128xbf16>, vector<128x128xbf16>, vector<80x128xf32> -> vector<80x128xf32>
    %67 = arith.addf %61, %66 : vector<80x128xf32>
    %c0_57 = arith.constant 0 : index
    %c20 = arith.constant 20 : index
    %c0_58 = arith.constant 0 : index
    %68 = vector.load %arg12[%c0_57, %c20, %c0_58] : memref<1x108x128xbf16, #tpu.memory_space<vmem>>, vector<1x80x128xbf16>
    %69 = vector.shape_cast %68 : vector<1x80x128xbf16> to vector<80x128xbf16>
    %c6 = arith.constant 6 : index
    %c0_59 = arith.constant 0 : index
    %c0_60 = arith.constant 0 : index
    %70 = vector.load %arg7[%c6, %c0_59, %c0_60] : memref<9x128x128xbf16, #tpu.memory_space<vmem>>, vector<1x128x128xbf16>
    %71 = vector.shape_cast %70 : vector<1x128x128xbf16> to vector<128x128xbf16>
    %cst_61 = arith.constant dense<0.000000e+00> : vector<80x128xf32>
    %72 = tpu.matmul %69, %71, %cst_61 {dimension_numbers = #tpu.dot_dimension_numbers<[1], [0], [0], [1], [0, 0, 1, 1], [], []>} : vector<80x128xbf16>, vector<128x128xbf16>, vector<80x128xf32> -> vector<80x128xf32>
    %73 = arith.addf %67, %72 : vector<80x128xf32>
    %c0_62 = arith.constant 0 : index
    %c21 = arith.constant 21 : index
    %c0_63 = arith.constant 0 : index
    %74 = vector.load %arg12[%c0_62, %c21, %c0_63] : memref<1x108x128xbf16, #tpu.memory_space<vmem>>, vector<1x80x128xbf16>
    %75 = vector.shape_cast %74 : vector<1x80x128xbf16> to vector<80x128xbf16>
    %c7 = arith.constant 7 : index
    %c0_64 = arith.constant 0 : index
    %c0_65 = arith.constant 0 : index
    %76 = vector.load %arg7[%c7, %c0_64, %c0_65] : memref<9x128x128xbf16, #tpu.memory_space<vmem>>, vector<1x128x128xbf16>
    %77 = vector.shape_cast %76 : vector<1x128x128xbf16> to vector<128x128xbf16>
    %cst_66 = arith.constant dense<0.000000e+00> : vector<80x128xf32>
    %78 = tpu.matmul %75, %77, %cst_66 {dimension_numbers = #tpu.dot_dimension_numbers<[1], [0], [0], [1], [0, 0, 1, 1], [], []>} : vector<80x128xbf16>, vector<128x128xbf16>, vector<80x128xf32> -> vector<80x128xf32>
    %79 = arith.addf %73, %78 : vector<80x128xf32>
    %c0_67 = arith.constant 0 : index
    %c22 = arith.constant 22 : index
    %c0_68 = arith.constant 0 : index
    %80 = vector.load %arg12[%c0_67, %c22, %c0_68] : memref<1x108x128xbf16, #tpu.memory_space<vmem>>, vector<1x80x128xbf16>
    %81 = vector.shape_cast %80 : vector<1x80x128xbf16> to vector<80x128xbf16>
    %c8 = arith.constant 8 : index
    %c0_69 = arith.constant 0 : index
    %c0_70 = arith.constant 0 : index
    %82 = vector.load %arg7[%c8, %c0_69, %c0_70] : memref<9x128x128xbf16, #tpu.memory_space<vmem>>, vector<1x128x128xbf16>
    %83 = vector.shape_cast %82 : vector<1x128x128xbf16> to vector<128x128xbf16>
    %cst_71 = arith.constant dense<0.000000e+00> : vector<80x128xf32>
    %84 = tpu.matmul %81, %83, %cst_71 {dimension_numbers = #tpu.dot_dimension_numbers<[1], [0], [0], [1], [0, 0, 1, 1], [], []>} : vector<80x128xbf16>, vector<128x128xbf16>, vector<80x128xf32> -> vector<80x128xf32>
    %85 = arith.addf %79, %84 : vector<80x128xf32>
    %c0_72 = arith.constant 0 : index
    %c0_73 = arith.constant 0 : index
    %86 = vector.load %arg8[%c0_72, %c0_73] : memref<1x128xf32, #tpu.memory_space<vmem>>, vector<1x128xf32>
    %87 = vector.broadcast %86 : vector<1x128xf32> to vector<80x128xf32>
    %88 = arith.addf %85, %87 : vector<80x128xf32>
    %cst_74 = arith.constant 0.000000e+00 : f32
    %89 = vector.broadcast %cst_74 : f32 to vector<80x128xf32>
    %90 = arith.maximumf %88, %89 : vector<80x128xf32>
    %c0_75 = arith.constant 0 : index
    %c0_76 = arith.constant 0 : index
    %c11_77 = arith.constant 11 : index
    %c0_78 = arith.constant 0 : index
    %91 = vector.load %arg1[%c0_75, %c0_76, %c11_77, %c0_78] : memref<1x1x100x128xbf16, #tpu.memory_space<vmem>>, vector<1x1x80x128xbf16>
    %92 = vector.shape_cast %91 : vector<1x1x80x128xbf16> to vector<80x128xbf16>
    %93 = arith.extf %92 : vector<80x128xbf16> to vector<80x128xf32>
    %94 = arith.truncf %90 : vector<80x128xf32> to vector<80x128xbf16>
    %c0_79 = arith.constant 0 : index
    %c0_80 = arith.constant 0 : index
    %95 = vector.load %arg9[%c0_79, %c0_80] : memref<128x128xbf16, #tpu.memory_space<vmem>>, vector<128x128xbf16>
    %cst_81 = arith.constant dense<0.000000e+00> : vector<80x128xf32>
    %96 = tpu.matmul %94, %95, %cst_81 {dimension_numbers = #tpu.dot_dimension_numbers<[1], [0], [0], [1], [0, 0, 1, 1], [], []>} : vector<80x128xbf16>, vector<128x128xbf16>, vector<80x128xf32> -> vector<80x128xf32>
    %c0_82 = arith.constant 0 : index
    %c0_83 = arith.constant 0 : index
    %97 = vector.load %arg10[%c0_82, %c0_83] : memref<1x128xf32, #tpu.memory_space<vmem>>, vector<1x128xf32>
    %98 = vector.broadcast %97 : vector<1x128xf32> to vector<80x128xf32>
    %99 = arith.addf %96, %98 : vector<80x128xf32>
    %100 = arith.addf %99, %93 : vector<80x128xf32>
    %c0_84 = arith.constant 0 : index
    %c0_85 = arith.constant 0 : index
    %c0_86 = arith.constant 0 : index
    %101 = vector.load %arg11[%c0_84, %c0_85, %c0_86] : memref<1x80x128xf32, #tpu.memory_space<vmem>>, vector<1x80x128xf32>
    %102 = vector.shape_cast %101 : vector<1x80x128xf32> to vector<80x128xf32>
    %103 = vector.shape_cast %100 : vector<80x128xf32> to vector<1x80x128xf32>
    tpu.vector_store %arg11[%c0_84, %c0_85, %c0_86], %103 {strides = array<i32>} : memref<1x80x128xf32, #tpu.memory_space<vmem>>, vector<1x80x128xf32>,
    return
  }
  func.func @transform_0(%arg0: i32) -> (i32, i32, i32, i32) {
    %c0_i32 = arith.constant 0 : i32
    %c0_i32_0 = arith.constant 0 : i32
    %c0_i32_1 = arith.constant 0 : i32
    %c0_i32_2 = arith.constant 0 : i32
    return %arg0, %c0_i32, %c0_i32_0, %c0_i32_1 : i32, i32, i32, i32
  }
  func.func @transform_1(%arg0: i32) -> (i32, i32, i32) {
    %c0_i32 = arith.constant 0 : i32
    %c0_i32_0 = arith.constant 0 : i32
    %c0_i32_1 = arith.constant 0 : i32
    %c0_i32_2 = arith.constant 0 : i32
    return %c0_i32, %c0_i32_0, %c0_i32_1 : i32, i32, i32
  }
  func.func @transform_2(%arg0: i32) -> (i32, i32) {
    %c0_i32 = arith.constant 0 : i32
    %c0_i32_0 = arith.constant 0 : i32
    %c0_i32_1 = arith.constant 0 : i32
    return %c0_i32, %c0_i32_0 : i32, i32
  }
  func.func @transform_3(%arg0: i32) -> (i32, i32) {
    %c0_i32 = arith.constant 0 : i32
    %c0_i32_0 = arith.constant 0 : i32
    %c0_i32_1 = arith.constant 0 : i32
    return %c0_i32, %c0_i32_0 : i32, i32
  }
  func.func @transform_4(%arg0: i32) -> (i32, i32) {
    %c0_i32 = arith.constant 0 : i32
    %c0_i32_0 = arith.constant 0 : i32
    %c0_i32_1 = arith.constant 0 : i32
    return %c0_i32, %c0_i32_0 : i32, i32
  }
  func.func @transform_5(%arg0: i32) -> (i32, i32) {
    %c0_i32 = arith.constant 0 : i32
    %c0_i32_0 = arith.constant 0 : i32
    %c0_i32_1 = arith.constant 0 : i32
    return %c0_i32, %c0_i32_0 : i32, i32
  }
  func.func @transform_6(%arg0: i32) -> (i32, i32, i32) {
    %c0_i32 = arith.constant 0 : i32
    %c0_i32_0 = arith.constant 0 : i32
    %c0_i32_1 = arith.constant 0 : i32
    %c0_i32_2 = arith.constant 0 : i32
    return %c0_i32, %c0_i32_0, %c0_i32_1 : i32, i32, i32
  }
  func.func @transform_7(%arg0: i32) -> (i32, i32) {
    %c0_i32 = arith.constant 0 : i32
    %c0_i32_0 = arith.constant 0 : i32
    %c0_i32_1 = arith.constant 0 : i32
    return %c0_i32, %c0_i32_0 : i32, i32
  }
  func.func @transform_8(%arg0: i32) -> (i32, i32) {
    %c0_i32 = arith.constant 0 : i32
    %c0_i32_0 = arith.constant 0 : i32
    %c0_i32_1 = arith.constant 0 : i32
    return %c0_i32, %c0_i32_0 : i32, i32
  }
  func.func @transform_9(%arg0: i32) -> (i32, i32) {
    %c0_i32 = arith.constant 0 : i32
    %c0_i32_0 = arith.constant 0 : i32
    %c0_i32_1 = arith.constant 0 : i32
    return %c0_i32, %c0_i32_0 : i32, i32
  }
  func.func @transform_10(%arg0: i32) -> (i32, i32, i32) {
    %c0_i32 = arith.constant 0 : i32
    %c0_i32_0 = arith.constant 0 : i32
    %c0_i32_1 = arith.constant 0 : i32
    return %arg0, %c0_i32, %c0_i32_0 : i32, i32, i32
  }
}

</mosaic_0001>

<llo_original>
// kernel: down_forward.3
$region0: #{down_forward.3}
  #allocation0 [shape = 'u32[]', space=smem, size = 0x4, offset = 0x4, fixed_abs, tag = 'smem constant byte address 0x4 - core index']
  #allocation1 [shape = 'u32[72,128]{1,0:T(1,128)}', space=vmem, size = 0x9000, scoped, tag = 'internal scratch']
  #allocation2 [shape = 'bf16[1,108,128]{2,1,0:T(8,128)(2,1)}', space=vmem, size = 0x7000, scoped, tag = 'scratch operand']
  %s0 = inlined_call_operand.vmem [shape: bf16[2,1,100,128], index: 0, kind: input, shape index: {}]
  %s1 = inlined_call_operand.vmem [shape: f32[1,100,1], index: 1, kind: input, shape index: {}]
  %s2 = inlined_call_operand.vmem [shape: f32[1,128], index: 2, kind: input, shape index: {}]
  %s3 = inlined_call_operand.vmem [shape: f32[1,128], index: 3, kind: input, shape index: {}]
  %s4 = inlined_call_operand.vmem [shape: bf16[128,128], index: 4, kind: input, shape index: {}]
  %s5 = inlined_call_operand.vmem [shape: f32[1,128], index: 5, kind: input, shape index: {}]
  %s6 = inlined_call_operand.vmem [shape: bf16[9,128,128], index: 6, kind: input, shape index: {}]
  %s7 = inlined_call_operand.vmem [shape: f32[1,128], index: 7, kind: input, shape index: {}]
  %s8 = inlined_call_operand.vmem [shape: bf16[128,128], index: 8, kind: input, shape index: {}]
  %s9 = inlined_call_operand.vmem [shape: f32[1,128], index: 9, kind: input, shape index: {}]
  %s10 = inlined_call_operand.vmem [shape: f32[2,80,128], index: 10, kind: output, shape index: {}]
  %s11 = sld [smem:[#allocation0]]
  $region73: #{down_forward.3} parent=0
    _
  %s13 = ssub.s32 1, %s11
  %s14 = scalar_select 0, %s13, %s11
  loop: start=0, step=1, limit=4
  $region2: #{down_forward.3} parent=0 // loop_pre_header
    _
  $region3: #{down_forward.3} parent=0 // loop_header
    %s16 = sphi 0, %s20
    %p17 = scmp.ge.s32.totalorder %s16, 4
    %s26 = sphi 0, %s28
    %s29 = sphi 0, %s26
    %s30 = sphi 0, %s29
    %s46 = sphi 0, %s30
    %s50 = sphi 0, %s50
    %s52 = sphi 0, %s50
    %s53 = sphi 0, %s52
    %s67 = sphi 0, %s53
    %s71 = sphi 0, %s71
    %s73 = sphi 0, %s71
    %s74 = sphi 0, %s73
    %s88 = sphi 0, %s74
    %s92 = sphi 0, %s92
    %s94 = sphi 0, %s92
    %s95 = sphi 0, %s94
    %s109 = sphi 0, %s95
    %s113 = sphi 0, %s113
    %s115 = sphi 0, %s113
    %s116 = sphi 0, %s115
    %s130 = sphi 0, %s116
    %s134 = sphi 0, %s134
    %s136 = sphi 0, %s134
    %s137 = sphi 0, %s136
    %s151 = sphi 0, %s137
    %s155 = sphi 0, %s155
    %s157 = sphi 0, %s155
    %s158 = sphi 0, %s157
    %s172 = sphi 0, %s158
    %s176 = sphi 0, %s176
    %s178 = sphi 0, %s176
    %s179 = sphi 0, %s178
    %s193 = sphi 0, %s179
    %s197 = sphi 0, %s197
    %s199 = sphi 0, %s197
    %s200 = sphi 0, %s199
    %s214 = sphi 0, %s200
    %s218 = sphi 0, %s218
    %s220 = sphi 0, %s218
    %s221 = sphi 0, %s220
    %s235 = sphi 0, %s221
    %s241 = sphi 0, %s243
    %s244 = sphi 0, %s241
    %s245 = sphi 0, %s244
    %s261 = sphi 0, %s245
  $region4: #{down_forward.3} parent=0 // loop_header_branch
    %19 = sbr.rel (%p17) target = $region8
  $region5: #{down_forward.3} parent=0 // loop_body
    %s21 = ssub.s32 %s16, 1
    %s22 = ssub.s32 %s16, 2
    %s23 = sadd.s32 %s16, 1
    %s24 = ssub.s32 %s16, %s23
    %p25 = scmp.eq.s32.totalorder %s24, 0
    %s27 = sadd.s32 %s26, 1
    %s28 = scalar_select %p25, %s26, %s27
    %p31 = pneg %p25
    %p32 = scmp.eq.s32.totalorder %s16, 1
    %p33 = por %p31, %p32
    %p34 = scmp.ne.s32.totalorder %s26, %s29
    %p35 = scmp.eq.s32.totalorder %s16, 0
    %p36 = por %p34, %p35
    %p37 = scmp.ne.s32.totalorder %s26, %s29
    %p38 = scmp.eq.s32.totalorder %s21, 1
    %p39 = por %p37, %p38
    %p40 = scmp.ne.s32.totalorder %s29, %s30
    %p41 = scmp.eq.s32.totalorder %s21, 0
    %p42 = por %p40, %p41
    %p43 = scmp.ne.s32.totalorder %s29, %s30
    %p44 = scmp.eq.s32.totalorder %s22, 1
    %p45 = por %p43, %p44
    %p47 = scmp.ne.s32.totalorder %s30, %s46
    %p48 = scmp.eq.s32.totalorder %s22, 0
    %p49 = por %p47, %p48
    %s51 = sadd.s32 %s50, 1
    %p54 = scmp.eq.s32.totalorder %s16, 1
    %p55 = scmp.ne.s32.totalorder %s50, %s52
    %p56 = scmp.eq.s32.totalorder %s16, 0
    %p57 = por %p55, %p56
    %p58 = scmp.ne.s32.totalorder %s50, %s52
    %p59 = scmp.eq.s32.totalorder %s21, 1
    %p60 = por %p58, %p59
    %p61 = scmp.ne.s32.totalorder %s52, %s53
    %p62 = scmp.eq.s32.totalorder %s21, 0
    %p63 = por %p61, %p62
    %p64 = scmp.ne.s32.totalorder %s52, %s53
    %p65 = scmp.eq.s32.totalorder %s22, 1
    %p66 = por %p64, %p65
    %p68 = scmp.ne.s32.totalorder %s53, %s67
    %p69 = scmp.eq.s32.totalorder %s22, 0
    %p70 = por %p68, %p69
    %s72 = sadd.s32 %s71, 1
    %p75 = scmp.eq.s32.totalorder %s16, 1
    %p76 = scmp.ne.s32.totalorder %s71, %s73
    %p77 = scmp.eq.s32.totalorder %s16, 0
    %p78 = por %p76, %p77
    %p79 = scmp.ne.s32.totalorder %s71, %s73
    %p80 = scmp.eq.s32.totalorder %s21, 1
    %p81 = por %p79, %p80
    %p82 = scmp.ne.s32.totalorder %s73, %s74
    %p83 = scmp.eq.s32.totalorder %s21, 0
    %p84 = por %p82, %p83
    %p85 = scmp.ne.s32.totalorder %s73, %s74
    %p86 = scmp.eq.s32.totalorder %s22, 1
    %p87 = por %p85, %p86
    %p89 = scmp.ne.s32.totalorder %s74, %s88
    %p90 = scmp.eq.s32.totalorder %s22, 0
    %p91 = por %p89, %p90
    %s93 = sadd.s32 %s92, 1
    %p96 = scmp.eq.s32.totalorder %s16, 1
    %p97 = scmp.ne.s32.totalorder %s92, %s94
    %p98 = scmp.eq.s32.totalorder %s16, 0
    %p99 = por %p97, %p98
    %p100 = scmp.ne.s32.totalorder %s92, %s94
    %p101 = scmp.eq.s32.totalorder %s21, 1
    %p102 = por %p100, %p101
    %p103 = scmp.ne.s32.totalorder %s94, %s95
    %p104 = scmp.eq.s32.totalorder %s21, 0
    %p105 = por %p103, %p104
    %p106 = scmp.ne.s32.totalorder %s94, %s95
    %p107 = scmp.eq.s32.totalorder %s22, 1
    %p108 = por %p106, %p107
    %p110 = scmp.ne.s32.totalorder %s95, %s109
    %p111 = scmp.eq.s32.totalorder %s22, 0
    %p112 = por %p110, %p111
    %s114 = sadd.s32 %s113, 1
    %p117 = scmp.eq.s32.totalorder %s16, 1
    %p118 = scmp.ne.s32.totalorder %s113, %s115
    %p119 = scmp.eq.s32.totalorder %s16, 0
    %p120 = por %p118, %p119
    %p121 = scmp.ne.s32.totalorder %s113, %s115
    %p122 = scmp.eq.s32.totalorder %s21, 1
    %p123 = por %p121, %p122
    %p124 = scmp.ne.s32.totalorder %s115, %s116
    %p125 = scmp.eq.s32.totalorder %s21, 0
    %p126 = por %p124, %p125
    %p127 = scmp.ne.s32.totalorder %s115, %s116
    %p128 = scmp.eq.s32.totalorder %s22, 1
    %p129 = por %p127, %p128
    %p131 = scmp.ne.s32.totalorder %s116, %s130
    %p132 = scmp.eq.s32.totalorder %s22, 0
    %p133 = por %p131, %p132
    %s135 = sadd.s32 %s134, 1
    %p138 = scmp.eq.s32.totalorder %s16, 1
    %p139 = scmp.ne.s32.totalorder %s134, %s136
    %p140 = scmp.eq.s32.totalorder %s16, 0
    %p141 = por %p139, %p140
    %p142 = scmp.ne.s32.totalorder %s134, %s136
    %p143 = scmp.eq.s32.totalorder %s21, 1
    %p144 = por %p142, %p143
    %p145 = scmp.ne.s32.totalorder %s136, %s137
    %p146 = scmp.eq.s32.totalorder %s21, 0
    %p147 = por %p145, %p146
    %p148 = scmp.ne.s32.totalorder %s136, %s137
    %p149 = scmp.eq.s32.totalorder %s22, 1
    %p150 = por %p148, %p149
    %p152 = scmp.ne.s32.totalorder %s137, %s151
    %p153 = scmp.eq.s32.totalorder %s22, 0
    %p154 = por %p152, %p153
    %s156 = sadd.s32 %s155, 1
    %p159 = scmp.eq.s32.totalorder %s16, 1
    %p160 = scmp.ne.s32.totalorder %s155, %s157
    %p161 = scmp.eq.s32.totalorder %s16, 0
    %p162 = por %p160, %p161
    %p163 = scmp.ne.s32.totalorder %s155, %s157
    %p164 = scmp.eq.s32.totalorder %s21, 1
    %p165 = por %p163, %p164
    %p166 = scmp.ne.s32.totalorder %s157, %s158
    %p167 = scmp.eq.s32.totalorder %s21, 0
    %p168 = por %p166, %p167
    %p169 = scmp.ne.s32.totalorder %s157, %s158
    %p170 = scmp.eq.s32.totalorder %s22, 1
    %p171 = por %p169, %p170
    %p173 = scmp.ne.s32.totalorder %s158, %s172
    %p174 = scmp.eq.s32.totalorder %s22, 0
    %p175 = por %p173, %p174
    %s177 = sadd.s32 %s176, 1
    %p180 = scmp.eq.s32.totalorder %s16, 1
    %p181 = scmp.ne.s32.totalorder %s176, %s178
    %p182 = scmp.eq.s32.totalorder %s16, 0
    %p183 = por %p181, %p182
    %p184 = scmp.ne.s32.totalorder %s176, %s178
    %p185 = scmp.eq.s32.totalorder %s21, 1
    %p186 = por %p184, %p185
    %p187 = scmp.ne.s32.totalorder %s178, %s179
    %p188 = scmp.eq.s32.totalorder %s21, 0
    %p189 = por %p187, %p188
    %p190 = scmp.ne.s32.totalorder %s178, %s179
    %p191 = scmp.eq.s32.totalorder %s22, 1
    %p192 = por %p190, %p191
    %p194 = scmp.ne.s32.totalorder %s179, %s193
    %p195 = scmp.eq.s32.totalorder %s22, 0
    %p196 = por %p194, %p195
    %s198 = sadd.s32 %s197, 1
    %p201 = scmp.eq.s32.totalorder %s16, 1
    %p202 = scmp.ne.s32.totalorder %s197, %s199
    %p203 = scmp.eq.s32.totalorder %s16, 0
    %p204 = por %p202, %p203
    %p205 = scmp.ne.s32.totalorder %s197, %s199
    %p206 = scmp.eq.s32.totalorder %s21, 1
    %p207 = por %p205, %p206
    %p208 = scmp.ne.s32.totalorder %s199, %s200
    %p209 = scmp.eq.s32.totalorder %s21, 0
    %p210 = por %p208, %p209
    %p211 = scmp.ne.s32.totalorder %s199, %s200
    %p212 = scmp.eq.s32.totalorder %s22, 1
    %p213 = por %p211, %p212
    %p215 = scmp.ne.s32.totalorder %s200, %s214
    %p216 = scmp.eq.s32.totalorder %s22, 0
    %p217 = por %p215, %p216
    %s219 = sadd.s32 %s218, 1
    %p222 = scmp.eq.s32.totalorder %s16, 1
    %p223 = scmp.ne.s32.totalorder %s218, %s220
    %p224 = scmp.eq.s32.totalorder %s16, 0
    %p225 = por %p223, %p224
    %p226 = scmp.ne.s32.totalorder %s218, %s220
    %p227 = scmp.eq.s32.totalorder %s21, 1
    %p228 = por %p226, %p227
    %p229 = scmp.ne.s32.totalorder %s220, %s221
    %p230 = scmp.eq.s32.totalorder %s21, 0
    %p231 = por %p229, %p230
    %p232 = scmp.ne.s32.totalorder %s220, %s221
    %p233 = scmp.eq.s32.totalorder %s22, 1
    %p234 = por %p232, %p233
    %p236 = scmp.ne.s32.totalorder %s221, %s235
    %p237 = scmp.eq.s32.totalorder %s22, 0
    %p238 = por %p236, %p237
    %s239 = ssub.s32 %s16, %s23
    %p240 = scmp.eq.s32.totalorder %s239, 0
    %s242 = sadd.s32 %s241, 1
    %s243 = scalar_select %p240, %s241, %s242
    %p246 = pneg %p240
    %p247 = scmp.eq.s32.totalorder %s16, 1
    %p248 = por %p246, %p247
    %p249 = scmp.ne.s32.totalorder %s241, %s244
    %p250 = scmp.eq.s32.totalorder %s16, 0
    %p251 = por %p249, %p250
    %p252 = scmp.ne.s32.totalorder %s241, %s244
    %p253 = scmp.eq.s32.totalorder %s21, 1
    %p254 = por %p252, %p253
    %p255 = scmp.ne.s32.totalorder %s244, %s245
    %p256 = scmp.eq.s32.totalorder %s21, 0
    %p257 = por %p255, %p256
    %p258 = scmp.ne.s32.totalorder %s244, %s245
    %p259 = scmp.eq.s32.totalorder %s22, 1
    %p260 = por %p258, %p259
    %p262 = scmp.ne.s32.totalorder %s245, %s261
    %p263 = scmp.eq.s32.totalorder %s22, 0
    %p264 = por %p262, %p263
    %p265 = scmp.le.s32.totalorder 1, %s16
    %p266 = scmp.lt.s32.totalorder %s16, 3
    %p267 = pnand %p265, %p266
    %p268 = pneg %p267
    // Predicated region
    $region9: #{down_forward.3} parent=5 // pred_check
      _
    $region10: #{down_forward.3} parent=5 // pred_check_branch
      %270 = sbr.rel (%p267) target = $region12
    $region11: #{down_forward.3} parent=5 // pred_region
      %s271 = ssub.s32 %s16, 1
      // Predicated region
      $region13: #{down_forward.3} parent=11 // pred_check
        %p272 = pneg %p63
      $region14: #{down_forward.3} parent=11 // pred_check_branch
        %274 = sbr.rel (%p272) target = $region16
      $region15: #{down_forward.3} parent=11 // pred_region
        _
      $region16: #{down_forward.3} parent=11 // pred_fallthru
        _
      // Predicated region
      $region17: #{down_forward.3} parent=11 // pred_check
        %p275 = pneg %p84
      $region18: #{down_forward.3} parent=11 // pred_check_branch
        %277 = sbr.rel (%p275) target = $region20
      $region19: #{down_forward.3} parent=11 // pred_region
        _
      $region20: #{down_forward.3} parent=11 // pred_fallthru
        _
      // Predicated region
      $region21: #{down_forward.3} parent=11 // pred_check
        %p278 = pneg %p105
      $region22: #{down_forward.3} parent=11 // pred_check_branch
        %280 = sbr.rel (%p278) target = $region24
      $region23: #{down_forward.3} parent=11 // pred_region
        _
      $region24: #{down_forward.3} parent=11 // pred_fallthru
        _
      // Predicated region
      $region25: #{down_forward.3} parent=11 // pred_check
        %p281 = pneg %p126
      $region26: #{down_forward.3} parent=11 // pred_check_branch
        %283 = sbr.rel (%p281) target = $region28
      $region27: #{down_forward.3} parent=11 // pred_region
        _
      $region28: #{down_forward.3} parent=11 // pred_fallthru
        _
      // Predicated region
      $region29: #{down_forward.3} parent=11 // pred_check
        %p284 = pneg %p147
      $region30: #{down_forward.3} parent=11 // pred_check_branch
        %286 = sbr.rel (%p284) target = $region32
      $region31: #{down_forward.3} parent=11 // pred_region
        _
      $region32: #{down_forward.3} parent=11 // pred_fallthru
        _
      // Predicated region
      $region33: #{down_forward.3} parent=11 // pred_check
        %p287 = pneg %p168
      $region34: #{down_forward.3} parent=11 // pred_check_branch
        %289 = sbr.rel (%p287) target = $region36
      $region35: #{down_forward.3} parent=11 // pred_region
        _
      $region36: #{down_forward.3} parent=11 // pred_fallthru
        _
      // Predicated region
      $region37: #{down_forward.3} parent=11 // pred_check
        %p290 = pneg %p189
      $region38: #{down_forward.3} parent=11 // pred_check_branch
        %292 = sbr.rel (%p290) target = $region40
      $region39: #{down_forward.3} parent=11 // pred_region
        _
      $region40: #{down_forward.3} parent=11 // pred_fallthru
        _
      // Predicated region
      $region41: #{down_forward.3} parent=11 // pred_check
        %p293 = pneg %p210
      $region42: #{down_forward.3} parent=11 // pred_check_branch
        %295 = sbr.rel (%p293) target = $region44
      $region43: #{down_forward.3} parent=11 // pred_region
        _
      $region44: #{down_forward.3} parent=11 // pred_fallthru
        _
      // Predicated region
      $region45: #{down_forward.3} parent=11 // pred_check
        %p296 = pneg %p231
      $region46: #{down_forward.3} parent=11 // pred_check_branch
        %298 = sbr.rel (%p296) target = $region48
      $region47: #{down_forward.3} parent=11 // pred_region
        _
      $region48: #{down_forward.3} parent=11 // pred_fallthru
        _
    $region12: #{down_forward.3} parent=5 // pred_fallthru
      _
    %p299 = scmp.lt.s32.totalorder %s16, 2
    // Predicated region
    $region49: #{down_forward.3} parent=5 // pred_check
      %p300 = pneg %p299
    $region50: #{down_forward.3} parent=5 // pred_check_branch
      %302 = sbr.rel (%p300) target = $region52
    $region51: #{down_forward.3} parent=5 // pred_region
      // Predicated region
      $region53: #{down_forward.3} parent=51 // pred_check
        %p303 = pneg %p36
      $region54: #{down_forward.3} parent=51 // pred_check_branch
        %305 = sbr.rel (%p303) target = $region56
      $region55: #{down_forward.3} parent=51 // pred_region
        %p306 = scmp.lt.s32.totalorder %s16, 1
        %s307 = scalar_select %p306, %s16, 1
        %s308 = smul.addr %s307, 13
        %s309 = smul.addr %s308, 4
        %s310 = scalar_lea.vmem %s0, %s309
      $region56: #{down_forward.3} parent=51 // pred_fallthru
        _
    $region52: #{down_forward.3} parent=5 // pred_fallthru
      _
    %p311 = scmp.le.s32.totalorder 1, %s16
    %p312 = scmp.lt.s32.totalorder %s16, 3
    %p313 = pnand %p311, %p312
    %p314 = pneg %p313
    // Predicated region
    $region57: #{down_forward.3} parent=5 // pred_check
      _
    $region58: #{down_forward.3} parent=5 // pred_check_branch
      %316 = sbr.rel (%p313) target = $region60
    $region59: #{down_forward.3} parent=5 // pred_region
      %s317 = ssub.s32 %s16, 1
      %p318 = scmp.lt.s32.totalorder %s21, 1
      %s319 = scalar_select %p318, %s21, 1
      %s320 = smul.addr %s319, 13
      %s321 = smul.addr %s320, 4
      %s322 = scalar_lea.vmem %s0, %s321
      %p323 = pneg %p42
      %p324 = pneg %p39
      %p325 = pneg %p63
      %p326 = pneg %p60
      %p327 = pneg %p84
      %p328 = pneg %p81
      %p329 = pneg %p105
      %p330 = pneg %p102
      %p331 = pneg %p126
      %p332 = pneg %p123
      %p333 = pneg %p147
      %p334 = pneg %p144
      %p335 = pneg %p168
      %p336 = pneg %p165
      %p337 = pneg %p189
      %p338 = pneg %p186
      %p339 = pneg %p210
      %p340 = pneg %p207
      %p341 = pneg %p231
      %p342 = pneg %p228
      %p343 = pneg %p257
      %p344 = pneg %p254
      %p345 = scmp.lt.s32.totalorder %s21, 1
      %s346 = scalar_select %p345, %s21, 1
      %s347 = smul.addr %s346, 10
      %s348 = smul.addr %s347, 8
      %s349 = scalar_lea.vmem %s10, %s348
      %p350 = scmp.lt.s32.totalorder %s21, 1
      %s351 = scalar_select %p350, %s21, 1
      %s352 = smul.addr %s351, 13
      %s353 = smul.addr %s352, 4
      %s354 = scalar_lea.vmem %s0, %s353
      %p355 = scmp.lt.s32.totalorder %s21, 1
      %s356 = scalar_select %p355, %s21, 1
      %s357 = smul.addr %s356, 10
      %s358 = smul.addr %s357, 8
      %s359 = scalar_lea.vmem %s10, %s358
      %361 = vst [vmem:[#allocation2 + $0x30] sm:$0xc] 0
      %362 = vst [vmem:[#allocation2 + $0x34] sm:$0x3] 0
      %v363 = vld [vmem:[%s354] sm:$0xf]
      %v364 = vld [vmem:[%s354 + $0x4] sm:$0xf]
      %v365 = vld [vmem:[%s354 + $0x8] sm:$0xf]
      %v366 = vld [vmem:[%s354 + $0xc] sm:$0xf]
      %v367 = vld [vmem:[%s354 + $0x10] sm:$0xf]
      %v368 = vld [vmem:[%s354 + $0x14] sm:$0xf]
      %v369 = vld [vmem:[%s354 + $0x18] sm:$0xf]
      %v370 = vld [vmem:[%s354 + $0x1c] sm:$0xf]
      %v371 = vld [vmem:[%s354 + $0x20] sm:$0xf]
      %v372 = vld [vmem:[%s354 + $0x24] sm:$0xf]
      %v373 = vld [vmem:[%s354 + $0x28] sm:$0xf]
      %v374 = vld [vmem:[%s354 + $0x2c] sm:$0xf]
      %v375 = vld [vmem:[%s354 + $0x30] sm:$0x3]
      %v376 = vunpack.c.l.bf16 %v363
      %v377 = vunpack.c.l.bf16 %v364
      %v378 = vunpack.c.l.bf16 %v365
      %v379 = vunpack.c.l.bf16 %v366
      %v380 = vunpack.c.l.bf16 %v367
      %v381 = vunpack.c.l.bf16 %v368
      %v382 = vunpack.c.l.bf16 %v369
      %v383 = vunpack.c.l.bf16 %v370
      %v384 = vunpack.c.l.bf16 %v371
      %v385 = vunpack.c.l.bf16 %v372
      %v386 = vunpack.c.l.bf16 %v373
      %v387 = vunpack.c.l.bf16 %v374
      %v388 = vunpack.c.l.bf16 %v375
      %v389 = vld [vmem:[%s2] sm:$0x1]
      %v391 = vperm.slane %v389, 0
      %v393 = vmul.f32 %v376, %v391
      %v394 = vmul.f32 %v377, %v391
      %v395 = vmul.f32 %v378, %v391
      %v396 = vmul.f32 %v379, %v391
      %v397 = vmul.f32 %v380, %v391
      %v398 = vmul.f32 %v381, %v391
      %v399 = vmul.f32 %v382, %v391
      %v400 = vmul.f32 %v383, %v391
      %v401 = vmul.f32 %v384, %v391
      %v402 = vmul.f32 %v385, %v391
      %v403 = vmul.f32 %v386, %v391
      %v404 = vmul.f32 %v387, %v391
      %v405 = vmul.f32 %v388, %v391
      %v406 = vld [vmem:[%s3] sm:$0x1]
      %v408 = vperm.slane %v406, 0
      %v410 = vadd.f32 %v393, %v408
      %v411 = vadd.f32 %v394, %v408
      %v412 = vadd.f32 %v395, %v408
      %v413 = vadd.f32 %v396, %v408
      %v414 = vadd.f32 %v397, %v408
      %v415 = vadd.f32 %v398, %v408
      %v416 = vadd.f32 %v399, %v408
      %v417 = vadd.f32 %v400, %v408
      %v418 = vadd.f32 %v401, %v408
      %v419 = vadd.f32 %v402, %v408
      %v420 = vadd.f32 %v403, %v408
      %v421 = vadd.f32 %v404, %v408
      %v422 = vadd.f32 %v405, %v408
      %v423 = vmax.f32 %v410, 0.0
      %v424 = vmax.f32 %v411, 0.0
      %v425 = vmax.f32 %v412, 0.0
      %v426 = vmax.f32 %v413, 0.0
      %v427 = vmax.f32 %v414, 0.0
      %v428 = vmax.f32 %v415, 0.0
      %v429 = vmax.f32 %v416, 0.0
      %v430 = vmax.f32 %v417, 0.0
      %v431 = vmax.f32 %v418, 0.0
      %v432 = vmax.f32 %v419, 0.0
      %v433 = vmax.f32 %v420, 0.0
      %v434 = vmax.f32 %v421, 0.0
      %v435 = vmax.f32 %v422, 0.0
      %v436 = vpack.c.bf16 %v424, %v423
      %v437 = vpack.c.bf16 %v426, %v425
      %v438 = vpack.c.bf16 %v428, %v427
      %v439 = vpack.c.bf16 %v430, %v429
      %v440 = vpack.c.bf16 %v432, %v431
      %v441 = vpack.c.bf16 %v434, %v433
      %v442 = vpack.c.bf16 %v435, %v435
      %v443 = vld [vmem:[%s4] sm:$0xf]
      %v444 = vld [vmem:[%s4 + $0x4] sm:$0xf]
      %v445 = vld [vmem:[%s4 + $0x8] sm:$0xf]
      %v446 = vld [vmem:[%s4 + $0xc] sm:$0xf]
      %v447 = vld [vmem:[%s4 + $0x10] sm:$0xf]
      %v448 = vld [vmem:[%s4 + $0x14] sm:$0xf]
      %v449 = vld [vmem:[%s4 + $0x18] sm:$0xf]
      %v450 = vld [vmem:[%s4 + $0x1c] sm:$0xf]
      %v451 = vld [vmem:[%s4 + $0x20] sm:$0xf]
      %v452 = vld [vmem:[%s4 + $0x24] sm:$0xf]
      %v453 = vld [vmem:[%s4 + $0x28] sm:$0xf]
      %v454 = vld [vmem:[%s4 + $0x2c] sm:$0xf]
      %v455 = vld [vmem:[%s4 + $0x30] sm:$0xf]
      %v456 = vld [vmem:[%s4 + $0x34] sm:$0xf]
      %v457 = vld [vmem:[%s4 + $0x38] sm:$0xf]
      %v458 = vld [vmem:[%s4 + $0x3c] sm:$0xf]
      %v459 = vld [vmem:[%s5] sm:$0x1]
      %v461 = vperm.slane %v459, 0
      %v479 = vunpack.c.l.b16 %v443
      %v480 = vunpack.c.l.b16 %v444
      %v481 = vunpack.c.l.b16 %v445
      %v482 = vunpack.c.l.b16 %v446
      %v483 = vunpack.c.l.b16 %v447
      %v484 = vunpack.c.l.b16 %v448
      %v485 = vunpack.c.l.b16 %v449
      %v486 = vunpack.c.l.b16 %v450
      %v487 = vunpack.c.l.b16 %v451
      %v488 = vunpack.c.l.b16 %v452
      %v489 = vunpack.c.l.b16 %v453
      %v490 = vunpack.c.l.b16 %v454
      %v491 = vunpack.c.l.b16 %v455
      %v492 = vunpack.c.l.b16 %v456
      %v493 = vunpack.c.l.b16 %v457
      %v494 = vunpack.c.l.b16 %v458
      %v495 = vpack.c.b16 %v480, %v479
      %v496 = vpack.c.b16 %v482, %v481
      %v497 = vpack.c.b16 %v484, %v483
      %v498 = vpack.c.b16 %v486, %v485
      %v499 = vpack.c.b16 %v488, %v487
      %v500 = vpack.c.b16 %v490, %v489
      %v501 = vpack.c.b16 %v492, %v491
      %v502 = vpack.c.b16 %v494, %v493
      %511 = vmatpush.bf16.msra.mxu0 %v502
      %512 = vmatpush.bf16.msra.mxu0 %v501
      %513 = vmatpush.bf16.msra.mxu0 %v500
      %514 = vmatpush.bf16.msra.mxu0 %v499
      %515 = vmatpush.bf16.msra.mxu0 %v498
      %516 = vmatpush.bf16.msra.mxu0 %v497
      %517 = vmatpush.bf16.msra.mxu0 %v496
      %518 = vmatpush.bf16.msra.mxu0 %v495
      %519 = vmatmul.bf16.gmra.mxu0 %v436
      %v520 = vpop.f32.mrf.mxu0
      %v521 = vadd.f32 %v461, %v520
      %v522 = vpop.f32.mrf.mxu0
      %v523 = vadd.f32 %v461, %v522
      %524 = vmatmul.bf16.gmra.mxu0 %v437
      %v525 = vpop.f32.mrf.mxu0
      %v526 = vadd.f32 %v461, %v525
      %v527 = vpop.f32.mrf.mxu0
      %v528 = vadd.f32 %v461, %v527
      %529 = vmatmul.bf16.gmra.mxu0 %v438
      %v530 = vpop.f32.mrf.mxu0
      %v531 = vadd.f32 %v461, %v530
      %v532 = vpop.f32.mrf.mxu0
      %v533 = vadd.f32 %v461, %v532
      %534 = vmatmul.bf16.gmra.mxu0 %v439
      %v535 = vpop.f32.mrf.mxu0
      %v536 = vadd.f32 %v461, %v535
      %v537 = vpop.f32.mrf.mxu0
      %v538 = vadd.f32 %v461, %v537
      %539 = vmatmul.bf16.gmra.mxu0 %v440
      %v540 = vpop.f32.mrf.mxu0
      %v541 = vadd.f32 %v461, %v540
      %v542 = vpop.f32.mrf.mxu0
      %v543 = vadd.f32 %v461, %v542
      %544 = vmatmul.bf16.gmra.mxu0 %v441
      %v545 = vpop.f32.mrf.mxu0
      %v546 = vadd.f32 %v461, %v545
      %v547 = vpop.f32.mrf.mxu0
      %v548 = vadd.f32 %v461, %v547
      %549 = vmatmul.bf16.gmra.mxu0 %v442
      %v550 = vpop.f32.mrf.mxu0
      %v551 = vadd.f32 %v461, %v550
      %v552 = vpop.f32.mrf.mxu0
      %553 = vdwg.mxu0
      %v554 = vmax.f32 %v521, 0.0
      %v555 = vmax.f32 %v523, 0.0
      %v556 = vmax.f32 %v526, 0.0
      %v557 = vmax.f32 %v528, 0.0
      %v558 = vmax.f32 %v531, 0.0
      %v559 = vmax.f32 %v533, 0.0
      %v560 = vmax.f32 %v536, 0.0
      %v561 = vmax.f32 %v538, 0.0
      %v562 = vmax.f32 %v541, 0.0
      %v563 = vmax.f32 %v543, 0.0
      %v564 = vmax.f32 %v546, 0.0
      %v565 = vmax.f32 %v548, 0.0
      %v566 = vmax.f32 %v551, 0.0
      %v567 = vld [vmem:[%s1] sm:$0xff]
      %v568 = vld [vmem:[%s1 + $0x8] sm:$0xff]
      %v569 = vld [vmem:[%s1 + $0x10] sm:$0xff]
      %v570 = vld [vmem:[%s1 + $0x18] sm:$0xff]
      %v571 = vld [vmem:[%s1 + $0x20] sm:$0xff]
      %v572 = vld [vmem:[%s1 + $0x28] sm:$0xff]
      %v573 = vld [vmem:[%s1 + $0x30] sm:$0xff]
      %v574 = vld [vmem:[%s1 + $0x38] sm:$0xff]
      %v575 = vld [vmem:[%s1 + $0x40] sm:$0xff]
      %v576 = vld [vmem:[%s1 + $0x48] sm:$0xff]
      %v577 = vld [vmem:[%s1 + $0x50] sm:$0xff]
      %v578 = vld [vmem:[%s1 + $0x58] sm:$0xff]
      %v579 = vld [vmem:[%s1 + $0x60] sm:$0xf]
      %581 = vset.pattern.permute.xlu0 0
      %582 = vperm.xlu0 %581, %v567
      %v583 = vpop.permute.xlu0 %582
      %586 = vset.pattern.permute.xlu0 0
      %587 = vperm.xlu0 %586, %v568
      %v588 = vpop.permute.xlu0 %587
      %591 = vset.pattern.permute.xlu0 0
      %592 = vperm.xlu0 %591, %v569
      %v593 = vpop.permute.xlu0 %592
      %596 = vset.pattern.permute.xlu0 0
      %597 = vperm.xlu0 %596, %v570
      %v598 = vpop.permute.xlu0 %597
      %601 = vset.pattern.permute.xlu0 0
      %602 = vperm.xlu0 %601, %v571
      %v603 = vpop.permute.xlu0 %602
      %606 = vset.pattern.permute.xlu0 0
      %607 = vperm.xlu0 %606, %v572
      %v608 = vpop.permute.xlu0 %607
      %611 = vset.pattern.permute.xlu0 0
      %612 = vperm.xlu0 %611, %v573
      %v613 = vpop.permute.xlu0 %612
      %616 = vset.pattern.permute.xlu0 0
      %617 = vperm.xlu0 %616, %v574
      %v618 = vpop.permute.xlu0 %617
      %621 = vset.pattern.permute.xlu0 0
      %622 = vperm.xlu0 %621, %v575
      %v623 = vpop.permute.xlu0 %622
      %626 = vset.pattern.permute.xlu0 0
      %627 = vperm.xlu0 %626, %v576
      %v628 = vpop.permute.xlu0 %627
      %631 = vset.pattern.permute.xlu0 0
      %632 = vperm.xlu0 %631, %v577
      %v633 = vpop.permute.xlu0 %632
      %636 = vset.pattern.permute.xlu0 0
      %637 = vperm.xlu0 %636, %v578
      %v638 = vpop.permute.xlu0 %637
      %641 = vset.pattern.permute.xlu0 0
      %642 = vperm.xlu0 %641, %v579
      %v643 = vpop.permute.xlu0 %642
      %v645 = vmul.f32 %v554, %v583
      %v646 = vmul.f32 %v555, %v588
      %v647 = vmul.f32 %v556, %v593
      %v648 = vmul.f32 %v557, %v598
      %v649 = vmul.f32 %v558, %v603
      %v650 = vmul.f32 %v559, %v608
      %v651 = vmul.f32 %v560, %v613
      %v652 = vmul.f32 %v561, %v618
      %v653 = vmul.f32 %v562, %v623
      %v654 = vmul.f32 %v563, %v628
      %v655 = vmul.f32 %v564, %v633
      %v656 = vmul.f32 %v565, %v638
      %v657 = vmul.f32 %v566, %v643
      %v658 = vpack.c.bf16 %v645, %v645
      %v659 = vpack.c.bf16 %v646, %v646
      %v660 = vpack.c.bf16 %v647, %v647
      %v661 = vpack.c.bf16 %v648, %v648
      %v662 = vpack.c.bf16 %v649, %v649
      %v663 = vpack.c.bf16 %v650, %v650
      %v664 = vpack.c.bf16 %v651, %v651
      %v665 = vpack.c.bf16 %v652, %v652
      %v666 = vpack.c.bf16 %v653, %v653
      %v667 = vpack.c.bf16 %v654, %v654
      %v668 = vpack.c.bf16 %v655, %v655
      %v669 = vpack.c.bf16 %v656, %v656
      %v670 = vpack.c.bf16 %v657, %v657
      %671 = vst [vmem:[#allocation2] sm:$0xf] %v658
      %672 = vst [vmem:[#allocation2 + $0x4] sm:$0xf] %v659
      %673 = vst [vmem:[#allocation2 + $0x8] sm:$0xf] %v660
      %674 = vst [vmem:[#allocation2 + $0xc] sm:$0xf] %v661
      %675 = vst [vmem:[#allocation2 + $0x10] sm:$0xf] %v662
      %676 = vst [vmem:[#allocation2 + $0x14] sm:$0xf] %v663
      %677 = vst [vmem:[#allocation2 + $0x18] sm:$0xf] %v664
      %678 = vst [vmem:[#allocation2 + $0x1c] sm:$0xf] %v665
      %679 = vst [vmem:[#allocation2 + $0x20] sm:$0xf] %v666
      %680 = vst [vmem:[#allocation2 + $0x24] sm:$0xf] %v667
      %681 = vst [vmem:[#allocation2 + $0x28] sm:$0xf] %v668
      %682 = vst [vmem:[#allocation2 + $0x2c] sm:$0xf] %v669
      %683 = vst [vmem:[#allocation2 + $0x30] sm:$0x3] %v670
      %v684 = vld [vmem:[#allocation2] sm:$0xf]
      %v685 = vld [vmem:[#allocation2 + $0x4] sm:$0xf]
      %v686 = vld [vmem:[#allocation2 + $0x8] sm:$0xf]
      %v687 = vld [vmem:[#allocation2 + $0xc] sm:$0xf]
      %v688 = vld [vmem:[#allocation2 + $0x10] sm:$0xf]
      %v689 = vld [vmem:[#allocation2 + $0x14] sm:$0xf]
      %v690 = vld [vmem:[#allocation2 + $0x18] sm:$0xf]
      %v691 = vld [vmem:[#allocation2 + $0x1c] sm:$0xf]
      %v692 = vld [vmem:[#allocation2 + $0x20] sm:$0xf]
      %v693 = vld [vmem:[#allocation2 + $0x24] sm:$0xf]
      %v694 = vld [vmem:[%s6] sm:$0xf]
      %v695 = vld [vmem:[%s6 + $0x4] sm:$0xf]
      %v696 = vld [vmem:[%s6 + $0x8] sm:$0xf]
      %v697 = vld [vmem:[%s6 + $0xc] sm:$0xf]
      %v698 = vld [vmem:[%s6 + $0x10] sm:$0xf]
      %v699 = vld [vmem:[%s6 + $0x14] sm:$0xf]
      %v700 = vld [vmem:[%s6 + $0x18] sm:$0xf]
      %v701 = vld [vmem:[%s6 + $0x1c] sm:$0xf]
      %v702 = vld [vmem:[%s6 + $0x20] sm:$0xf]
      %v703 = vld [vmem:[%s6 + $0x24] sm:$0xf]
      %v704 = vld [vmem:[%s6 + $0x28] sm:$0xf]
      %v705 = vld [vmem:[%s6 + $0x2c] sm:$0xf]
      %v706 = vld [vmem:[%s6 + $0x30] sm:$0xf]
      %v707 = vld [vmem:[%s6 + $0x34] sm:$0xf]
      %v708 = vld [vmem:[%s6 + $0x38] sm:$0xf]
      %v709 = vld [vmem:[%s6 + $0x3c] sm:$0xf]
      %v710 = vld [vmem:[#allocation2 + $0x28] sm:$0x1]
      %s711 = scalar_lea.vmem %s6, 64
      %v712 = vld [vmem:[%s711] sm:$0xf]
      %v713 = vld [vmem:[%s711 + $0x4] sm:$0xf]
      %v714 = vld [vmem:[%s711 + $0x8] sm:$0xf]
      %v715 = vld [vmem:[%s711 + $0xc] sm:$0xf]
      %v716 = vld [vmem:[%s711 + $0x10] sm:$0xf]
      %v717 = vld [vmem:[%s711 + $0x14] sm:$0xf]
      %v718 = vld [vmem:[%s711 + $0x18] sm:$0xf]
      %v719 = vld [vmem:[%s711 + $0x1c] sm:$0xf]
      %v720 = vld [vmem:[%s711 + $0x20] sm:$0xf]
      %v721 = vld [vmem:[%s711 + $0x24] sm:$0xf]
      %v722 = vld [vmem:[%s711 + $0x28] sm:$0xf]
      %v723 = vld [vmem:[%s711 + $0x2c] sm:$0xf]
      %v724 = vld [vmem:[%s711 + $0x30] sm:$0xf]
      %v725 = vld [vmem:[%s711 + $0x34] sm:$0xf]
      %v726 = vld [vmem:[%s711 + $0x38] sm:$0xf]
      %v727 = vld [vmem:[%s711 + $0x3c] sm:$0xf]
      %v739 = vunpack.c.l.b16 %v684
      %v740 = vunpack.c.l.b16 %v685
      %v741 = vunpack.c.l.b16 %v686
      %v742 = vunpack.c.l.b16 %v687
      %v743 = vunpack.c.l.b16 %v688
      %v744 = vunpack.c.l.b16 %v689
      %v745 = vunpack.c.l.b16 %v690
      %v746 = vunpack.c.l.b16 %v691
      %v747 = vunpack.c.l.b16 %v692
      %v748 = vunpack.c.l.b16 %v693
      %v749 = vunpack.c.l.b16 %v710
      %v750 = vpack.c.b16 %v740, %v739
      %v751 = vpack.c.b16 %v742, %v741
      %v752 = vpack.c.b16 %v744, %v743
      %v753 = vpack.c.b16 %v746, %v745
      %v754 = vpack.c.b16 %v748, %v747
      %v755 = vpack.c.b16 %v749, %v749
      %vm756 = vsmask.f32 7424
      %v758 = vshrl.u32 %v750, 16
      %v760 = vshll.u32 %v750, 16
      %v762 = vrot.slane %v760, 1
      %v763 = vor.u32 %v758, %v762
      %v765 = vshll.u32 %v751, 16
      %v767 = vrot.slane %v765, 1
      %v768 = vsel %vm756, %v763, %v767
      %v769 = vshrl.u32 %v751, 16
      %v771 = vor.u32 %v769, %v767
      %v773 = vshll.u32 %v752, 16
      %v775 = vrot.slane %v773, 1
      %v776 = vsel %vm756, %v771, %v775
      %v777 = vshrl.u32 %v752, 16
      %v779 = vor.u32 %v777, %v775
      %v781 = vshll.u32 %v753, 16
      %v783 = vrot.slane %v781, 1
      %v784 = vsel %vm756, %v779, %v783
      %v785 = vshrl.u32 %v753, 16
      %v787 = vor.u32 %v785, %v783
      %v789 = vshll.u32 %v754, 16
      %v791 = vrot.slane %v789, 1
      %v792 = vsel %vm756, %v787, %v791
      %v793 = vshrl.u32 %v754, 16
      %v795 = vor.u32 %v793, %v791
      %v797 = vshll.u32 %v755, 16
      %v799 = vrot.slane %v797, 1
      %v800 = vsel %vm756, %v795, %v799
      %v822 = vunpack.c.l.b16 %v712
      %v823 = vunpack.c.l.b16 %v713
      %v824 = vunpack.c.l.b16 %v714
      %v825 = vunpack.c.l.b16 %v715
      %v826 = vunpack.c.l.b16 %v716
      %v827 = vunpack.c.l.b16 %v717
      %v828 = vunpack.c.l.b16 %v718
      %v829 = vunpack.c.l.b16 %v719
      %v830 = vunpack.c.l.b16 %v720
      %v831 = vunpack.c.l.b16 %v721
      %v832 = vunpack.c.l.b16 %v722
      %v833 = vunpack.c.l.b16 %v723
      %v834 = vunpack.c.l.b16 %v724
      %v835 = vunpack.c.l.b16 %v725
      %v836 = vunpack.c.l.b16 %v726
      %v837 = vunpack.c.l.b16 %v727
      %v838 = vpack.c.b16 %v823, %v822
      %v839 = vpack.c.b16 %v825, %v824
      %v840 = vpack.c.b16 %v827, %v826
      %v841 = vpack.c.b16 %v829, %v828
      %v842 = vpack.c.b16 %v831, %v830
      %v843 = vpack.c.b16 %v833, %v832
      %v844 = vpack.c.b16 %v835, %v834
      %v845 = vpack.c.b16 %v837, %v836
      %854 = vmatpush.bf16.msra.mxu0 %v845
      %855 = vmatpush.bf16.msra.mxu0 %v844
      %856 = vmatpush.bf16.msra.mxu0 %v843
      %857 = vmatpush.bf16.msra.mxu0 %v842
      %858 = vmatpush.bf16.msra.mxu0 %v841
      %859 = vmatpush.bf16.msra.mxu0 %v840
      %860 = vmatpush.bf16.msra.mxu0 %v839
      %861 = vmatpush.bf16.msra.mxu0 %v838
      %862 = vmatmul.bf16.gmra.mxu0 %v768
      %v863 = vpop.f32.mrf.mxu0
      %v864 = vadd.f32 0.0, %v863
      %v865 = vpop.f32.mrf.mxu0
      %v866 = vadd.f32 0.0, %v865
      %867 = vmatmul.bf16.gmra.mxu0 %v776
      %v868 = vpop.f32.mrf.mxu0
      %v869 = vadd.f32 0.0, %v868
      %v870 = vpop.f32.mrf.mxu0
      %v871 = vadd.f32 0.0, %v870
      %872 = vmatmul.bf16.gmra.mxu0 %v784
      %v873 = vpop.f32.mrf.mxu0
      %v874 = vadd.f32 0.0, %v873
      %v875 = vpop.f32.mrf.mxu0
      %v876 = vadd.f32 0.0, %v875
      %877 = vmatmul.bf16.gmra.mxu0 %v792
      %v878 = vpop.f32.mrf.mxu0
      %v879 = vadd.f32 0.0, %v878
      %v880 = vpop.f32.mrf.mxu0
      %v881 = vadd.f32 0.0, %v880
      %882 = vmatmul.bf16.gmra.mxu0 %v800
      %v883 = vpop.f32.mrf.mxu0
      %v884 = vadd.f32 0.0, %v883
      %v885 = vpop.f32.mrf.mxu0
      %v886 = vadd.f32 0.0, %v885
      %887 = vdwg.mxu0
      %v909 = vunpack.c.l.b16 %v694
      %v910 = vunpack.c.l.b16 %v695
      %v911 = vunpack.c.l.b16 %v696
      %v912 = vunpack.c.l.b16 %v697
      %v913 = vunpack.c.l.b16 %v698
      %v914 = vunpack.c.l.b16 %v699
      %v915 = vunpack.c.l.b16 %v700
      %v916 = vunpack.c.l.b16 %v701
      %v917 = vunpack.c.l.b16 %v702
      %v918 = vunpack.c.l.b16 %v703
      %v919 = vunpack.c.l.b16 %v704
      %v920 = vunpack.c.l.b16 %v705
      %v921 = vunpack.c.l.b16 %v706
      %v922 = vunpack.c.l.b16 %v707
      %v923 = vunpack.c.l.b16 %v708
      %v924 = vunpack.c.l.b16 %v709
      %v925 = vpack.c.b16 %v910, %v909
      %v926 = vpack.c.b16 %v912, %v911
      %v927 = vpack.c.b16 %v914, %v913
      %v928 = vpack.c.b16 %v916, %v915
      %v929 = vpack.c.b16 %v918, %v917
      %v930 = vpack.c.b16 %v920, %v919
      %v931 = vpack.c.b16 %v922, %v921
      %v932 = vpack.c.b16 %v924, %v923
      %941 = vmatpush.bf16.msra.mxu0 %v932
      %942 = vmatpush.bf16.msra.mxu0 %v931
      %943 = vmatpush.bf16.msra.mxu0 %v930
      %944 = vmatpush.bf16.msra.mxu0 %v929
      %945 = vmatpush.bf16.msra.mxu0 %v928
      %946 = vmatpush.bf16.msra.mxu0 %v927
      %947 = vmatpush.bf16.msra.mxu0 %v926
      %948 = vmatpush.bf16.msra.mxu0 %v925
      %949 = vmatmul.bf16.gmra.mxu0 %v750
      %v950 = vpop.f32.mrf.mxu0
      %v951 = vadd.f32 %v864, %v950
      %v952 = vpop.f32.mrf.mxu0
      %v953 = vadd.f32 %v866, %v952
      %954 = vmatmul.bf16.gmra.mxu0 %v751
      %v955 = vpop.f32.mrf.mxu0
      %v956 = vadd.f32 %v869, %v955
      %v957 = vpop.f32.mrf.mxu0
      %v958 = vadd.f32 %v871, %v957
      %959 = vmatmul.bf16.gmra.mxu0 %v752
      %v960 = vpop.f32.mrf.mxu0
      %v961 = vadd.f32 %v874, %v960
      %v962 = vpop.f32.mrf.mxu0
      %v963 = vadd.f32 %v876, %v962
      %964 = vmatmul.bf16.gmra.mxu0 %v753
      %v965 = vpop.f32.mrf.mxu0
      %v966 = vadd.f32 %v879, %v965
      %v967 = vpop.f32.mrf.mxu0
      %v968 = vadd.f32 %v881, %v967
      %969 = vmatmul.bf16.gmra.mxu0 %v754
      %v970 = vpop.f32.mrf.mxu0
      %v971 = vadd.f32 %v884, %v970
      %v972 = vpop.f32.mrf.mxu0
      %v973 = vadd.f32 %v886, %v972
      %974 = vdwg.mxu0
      %v975 = vld [vmem:[#allocation2] sm:$0xe]
      %s976 = scalar_lea.vmem %s6, 128
      %v977 = vld [vmem:[%s976] sm:$0xf]
      %v978 = vld [vmem:[%s976 + $0x4] sm:$0xf]
      %v979 = vld [vmem:[%s976 + $0x8] sm:$0xf]
      %v980 = vld [vmem:[%s976 + $0xc] sm:$0xf]
      %v981 = vld [vmem:[%s976 + $0x10] sm:$0xf]
      %v982 = vld [vmem:[%s976 + $0x14] sm:$0xf]
      %v983 = vld [vmem:[%s976 + $0x18] sm:$0xf]
      %v984 = vld [vmem:[%s976 + $0x1c] sm:$0xf]
      %v985 = vld [vmem:[%s976 + $0x20] sm:$0xf]
      %v986 = vld [vmem:[%s976 + $0x24] sm:$0xf]
      %v987 = vld [vmem:[%s976 + $0x28] sm:$0xf]
      %v988 = vld [vmem:[%s976 + $0x2c] sm:$0xf]
      %v989 = vld [vmem:[%s976 + $0x30] sm:$0xf]
      %v990 = vld [vmem:[%s976 + $0x34] sm:$0xf]
      %v991 = vld [vmem:[%s976 + $0x38] sm:$0xf]
      %v992 = vld [vmem:[%s976 + $0x3c] sm:$0xf]
      %v994 = vunpack.c.l.b16 %v975
      %v995 = vpack.c.b16 %v740, %v994
      %vm996 = vcmask 1046528
      %v997 = vrot.slane %v995, 1
      %v998 = vrot.slane %v751, 1
      %v999 = vsel %vm996, %v997, %v998
      %v1000 = vrot.slane %v752, 1
      %v1001 = vsel %vm996, %v998, %v1000
      %v1002 = vrot.slane %v753, 1
      %v1003 = vsel %vm996, %v1000, %v1002
      %v1004 = vrot.slane %v754, 1
      %v1005 = vsel %vm996, %v1002, %v1004
      %v1006 = vrot.slane %v755, 1
      %v1007 = vsel %vm996, %v1004, %v1006
      %v1029 = vunpack.c.l.b16 %v977
      %v1030 = vunpack.c.l.b16 %v978
      %v1031 = vunpack.c.l.b16 %v979
      %v1032 = vunpack.c.l.b16 %v980
      %v1033 = vunpack.c.l.b16 %v981
      %v1034 = vunpack.c.l.b16 %v982
      %v1035 = vunpack.c.l.b16 %v983
      %v1036 = vunpack.c.l.b16 %v984
      %v1037 = vunpack.c.l.b16 %v985
      %v1038 = vunpack.c.l.b16 %v986
      %v1039 = vunpack.c.l.b16 %v987
      %v1040 = vunpack.c.l.b16 %v988
      %v1041 = vunpack.c.l.b16 %v989
      %v1042 = vunpack.c.l.b16 %v990
      %v1043 = vunpack.c.l.b16 %v991
      %v1044 = vunpack.c.l.b16 %v992
      %v1045 = vpack.c.b16 %v1030, %v1029
      %v1046 = vpack.c.b16 %v1032, %v1031
      %v1047 = vpack.c.b16 %v1034, %v1033
      %v1048 = vpack.c.b16 %v1036, %v1035
      %v1049 = vpack.c.b16 %v1038, %v1037
      %v1050 = vpack.c.b16 %v1040, %v1039
      %v1051 = vpack.c.b16 %v1042, %v1041
      %v1052 = vpack.c.b16 %v1044, %v1043
      %1061 = vmatpush.bf16.msra.mxu0 %v1052
      %1062 = vmatpush.bf16.msra.mxu0 %v1051
      %1063 = vmatpush.bf16.msra.mxu0 %v1050
      %1064 = vmatpush.bf16.msra.mxu0 %v1049
      %1065 = vmatpush.bf16.msra.mxu0 %v1048
      %1066 = vmatpush.bf16.msra.mxu0 %v1047
      %1067 = vmatpush.bf16.msra.mxu0 %v1046
      %1068 = vmatpush.bf16.msra.mxu0 %v1045
      %1069 = vmatmul.bf16.gmra.mxu0 %v999
      %v1070 = vpop.f32.mrf.mxu0
      %v1071 = vadd.f32 0.0, %v1070
      %v1072 = vpop.f32.mrf.mxu0
      %v1073 = vadd.f32 0.0, %v1072
      %1074 = vmatmul.bf16.gmra.mxu0 %v1001
      %v1075 = vpop.f32.mrf.mxu0
      %v1076 = vadd.f32 0.0, %v1075
      %v1077 = vpop.f32.mrf.mxu0
      %v1078 = vadd.f32 0.0, %v1077
      %1079 = vmatmul.bf16.gmra.mxu0 %v1003
      %v1080 = vpop.f32.mrf.mxu0
      %v1081 = vadd.f32 0.0, %v1080
      %v1082 = vpop.f32.mrf.mxu0
      %v1083 = vadd.f32 0.0, %v1082
      %1084 = vmatmul.bf16.gmra.mxu0 %v1005
      %v1085 = vpop.f32.mrf.mxu0
      %v1086 = vadd.f32 0.0, %v1085
      %v1087 = vpop.f32.mrf.mxu0
      %v1088 = vadd.f32 0.0, %v1087
      %1089 = vmatmul.bf16.gmra.mxu0 %v1007
      %v1090 = vpop.f32.mrf.mxu0
      %v1091 = vadd.f32 0.0, %v1090
      %v1092 = vpop.f32.mrf.mxu0
      %v1093 = vadd.f32 0.0, %v1092
      %1094 = vdwg.mxu0
      %v1095 = vadd.f32 %v951, %v1071
      %v1096 = vadd.f32 %v953, %v1073
      %v1097 = vadd.f32 %v956, %v1076
      %v1098 = vadd.f32 %v958, %v1078
      %v1099 = vadd.f32 %v961, %v1081
      %v1100 = vadd.f32 %v963, %v1083
      %v1101 = vadd.f32 %v966, %v1086
      %v1102 = vadd.f32 %v968, %v1088
      %v1103 = vadd.f32 %v971, %v1091
      %v1104 = vadd.f32 %v973, %v1093
      %v1105 = vld [vmem:[#allocation2 + $0x4] sm:$0xe]
      %v1106 = vld [vmem:[#allocation2 + $0x8] sm:$0xf]
      %v1107 = vld [vmem:[#allocation2 + $0xc] sm:$0xf]
      %v1108 = vld [vmem:[#allocation2 + $0x10] sm:$0xf]
      %v1109 = vld [vmem:[#allocation2 + $0x14] sm:$0xf]
      %v1110 = vld [vmem:[#allocation2 + $0x18] sm:$0xf]
      %v1111 = vld [vmem:[#allocation2 + $0x1c] sm:$0xf]
      %v1112 = vld [vmem:[#allocation2 + $0x20] sm:$0xf]
      %v1113 = vld [vmem:[#allocation2 + $0x24] sm:$0xf]
      %v1114 = vld [vmem:[#allocation2 + $0x28] sm:$0xf]
      %v1115 = vld [vmem:[#allocation2 + $0x2c] sm:$0x1]
      %s1116 = scalar_lea.vmem %s6, 192
      %v1117 = vld [vmem:[%s1116] sm:$0xf]
      %v1118 = vld [vmem:[%s1116 + $0x4] sm:$0xf]
      %v1119 = vld [vmem:[%s1116 + $0x8] sm:$0xf]
      %v1120 = vld [vmem:[%s1116 + $0xc] sm:$0xf]
      %v1121 = vld [vmem:[%s1116 + $0x10] sm:$0xf]
      %v1122 = vld [vmem:[%s1116 + $0x14] sm:$0xf]
      %v1123 = vld [vmem:[%s1116 + $0x18] sm:$0xf]
      %v1124 = vld [vmem:[%s1116 + $0x1c] sm:$0xf]
      %v1125 = vld [vmem:[%s1116 + $0x20] sm:$0xf]
      %v1126 = vld [vmem:[%s1116 + $0x24] sm:$0xf]
      %v1127 = vld [vmem:[%s1116 + $0x28] sm:$0xf]
      %v1128 = vld [vmem:[%s1116 + $0x2c] sm:$0xf]
      %v1129 = vld [vmem:[%s1116 + $0x30] sm:$0xf]
      %v1130 = vld [vmem:[%s1116 + $0x34] sm:$0xf]
      %v1131 = vld [vmem:[%s1116 + $0x38] sm:$0xf]
      %v1132 = vld [vmem:[%s1116 + $0x3c] sm:$0xf]
      %v1144 = vunpack.c.l.b16 %v1105
      %v1145 = vunpack.c.l.b16 %v1106
      %v1146 = vunpack.c.l.b16 %v1107
      %v1147 = vunpack.c.l.b16 %v1108
      %v1148 = vunpack.c.l.b16 %v1109
      %v1149 = vunpack.c.l.b16 %v1110
      %v1150 = vunpack.c.l.b16 %v1111
      %v1151 = vunpack.c.l.b16 %v1112
      %v1152 = vunpack.c.l.b16 %v1113
      %v1153 = vunpack.c.l.b16 %v1114
      %v1154 = vunpack.c.l.b16 %v1115
      %v1155 = vpack.c.b16 %v1145, %v1144
      %v1156 = vpack.c.b16 %v1147, %v1146
      %v1157 = vpack.c.b16 %v1149, %v1148
      %v1158 = vpack.c.b16 %v1151, %v1150
      %v1159 = vpack.c.b16 %v1153, %v1152
      %v1160 = vpack.c.b16 %v1154, %v1154
      %v1161 = vrot.slane %v1155, 1
      %v1162 = vrot.slane %v1156, 1
      %v1163 = vsel %vm996, %v1161, %v1162
      %v1164 = vrot.slane %v1157, 1
      %v1165 = vsel %vm996, %v1162, %v1164
      %v1166 = vrot.slane %v1158, 1
      %v1167 = vsel %vm996, %v1164, %v1166
      %v1168 = vrot.slane %v1159, 1
      %v1169 = vsel %vm996, %v1166, %v1168
      %v1170 = vrot.slane %v1160, 1
      %v1171 = vsel %vm996, %v1168, %v1170
      %v1193 = vunpack.c.l.b16 %v1117
      %v1194 = vunpack.c.l.b16 %v1118
      %v1195 = vunpack.c.l.b16 %v1119
      %v1196 = vunpack.c.l.b16 %v1120
      %v1197 = vunpack.c.l.b16 %v1121
      %v1198 = vunpack.c.l.b16 %v1122
      %v1199 = vunpack.c.l.b16 %v1123
      %v1200 = vunpack.c.l.b16 %v1124
      %v1201 = vunpack.c.l.b16 %v1125
      %v1202 = vunpack.c.l.b16 %v1126
      %v1203 = vunpack.c.l.b16 %v1127
      %v1204 = vunpack.c.l.b16 %v1128
      %v1205 = vunpack.c.l.b16 %v1129
      %v1206 = vunpack.c.l.b16 %v1130
      %v1207 = vunpack.c.l.b16 %v1131
      %v1208 = vunpack.c.l.b16 %v1132
      %v1209 = vpack.c.b16 %v1194, %v1193
      %v1210 = vpack.c.b16 %v1196, %v1195
      %v1211 = vpack.c.b16 %v1198, %v1197
      %v1212 = vpack.c.b16 %v1200, %v1199
      %v1213 = vpack.c.b16 %v1202, %v1201
      %v1214 = vpack.c.b16 %v1204, %v1203
      %v1215 = vpack.c.b16 %v1206, %v1205
      %v1216 = vpack.c.b16 %v1208, %v1207
      %1225 = vmatpush.bf16.msra.mxu0 %v1216
      %1226 = vmatpush.bf16.msra.mxu0 %v1215
      %1227 = vmatpush.bf16.msra.mxu0 %v1214
      %1228 = vmatpush.bf16.msra.mxu0 %v1213
      %1229 = vmatpush.bf16.msra.mxu0 %v1212
      %1230 = vmatpush.bf16.msra.mxu0 %v1211
      %1231 = vmatpush.bf16.msra.mxu0 %v1210
      %1232 = vmatpush.bf16.msra.mxu0 %v1209
      %1233 = vmatmul.bf16.gmra.mxu0 %v1163
      %v1234 = vpop.f32.mrf.mxu0
      %v1235 = vadd.f32 0.0, %v1234
      %v1236 = vpop.f32.mrf.mxu0
      %v1237 = vadd.f32 0.0, %v1236
      %1238 = vmatmul.bf16.gmra.mxu0 %v1165
      %v1239 = vpop.f32.mrf.mxu0
      %v1240 = vadd.f32 0.0, %v1239
      %v1241 = vpop.f32.mrf.mxu0
      %v1242 = vadd.f32 0.0, %v1241
      %1243 = vmatmul.bf16.gmra.mxu0 %v1167
      %v1244 = vpop.f32.mrf.mxu0
      %v1245 = vadd.f32 0.0, %v1244
      %v1246 = vpop.f32.mrf.mxu0
      %v1247 = vadd.f32 0.0, %v1246
      %1248 = vmatmul.bf16.gmra.mxu0 %v1169
      %v1249 = vpop.f32.mrf.mxu0
      %v1250 = vadd.f32 0.0, %v1249
      %v1251 = vpop.f32.mrf.mxu0
      %v1252 = vadd.f32 0.0, %v1251
      %1253 = vmatmul.bf16.gmra.mxu0 %v1171
      %v1254 = vpop.f32.mrf.mxu0
      %v1255 = vadd.f32 0.0, %v1254
      %v1256 = vpop.f32.mrf.mxu0
      %v1257 = vadd.f32 0.0, %v1256
      %1258 = vdwg.mxu0
      %v1259 = vadd.f32 %v1095, %v1235
      %v1260 = vadd.f32 %v1096, %v1237
      %v1261 = vadd.f32 %v1097, %v1240
      %v1262 = vadd.f32 %v1098, %v1242
      %v1263 = vadd.f32 %v1099, %v1245
      %v1264 = vadd.f32 %v1100, %v1247
      %v1265 = vadd.f32 %v1101, %v1250
      %v1266 = vadd.f32 %v1102, %v1252
      %v1267 = vadd.f32 %v1103, %v1255
      %v1268 = vadd.f32 %v1104, %v1257
      %v1269 = vld [vmem:[#allocation2 + $0x2c] sm:$0x3]
      %s1270 = scalar_lea.vmem %s6, 256
      %v1271 = vld [vmem:[%s1270] sm:$0xf]
      %v1272 = vld [vmem:[%s1270 + $0x4] sm:$0xf]
      %v1273 = vld [vmem:[%s1270 + $0x8] sm:$0xf]
      %v1274 = vld [vmem:[%s1270 + $0xc] sm:$0xf]
      %v1275 = vld [vmem:[%s1270 + $0x10] sm:$0xf]
      %v1276 = vld [vmem:[%s1270 + $0x14] sm:$0xf]
      %v1277 = vld [vmem:[%s1270 + $0x18] sm:$0xf]
      %v1278 = vld [vmem:[%s1270 + $0x1c] sm:$0xf]
      %v1279 = vld [vmem:[%s1270 + $0x20] sm:$0xf]
      %v1280 = vld [vmem:[%s1270 + $0x24] sm:$0xf]
      %v1281 = vld [vmem:[%s1270 + $0x28] sm:$0xf]
      %v1282 = vld [vmem:[%s1270 + $0x2c] sm:$0xf]
      %v1283 = vld [vmem:[%s1270 + $0x30] sm:$0xf]
      %v1284 = vld [vmem:[%s1270 + $0x34] sm:$0xf]
      %v1285 = vld [vmem:[%s1270 + $0x38] sm:$0xf]
      %v1286 = vld [vmem:[%s1270 + $0x3c] sm:$0xf]
      %v1288 = vunpack.c.l.b16 %v1269
      %v1289 = vpack.c.b16 %v1288, %v1288
      %vm1290 = vsmask.f32 6400
      %v1292 = vshrl.u32 %v1155, 16
      %v1294 = vrot.slane %v1292, 1
      %v1295 = vshll.u32 %v1155, 16
      %v1297 = vrot.slane %v1295, 2
      %v1298 = vor.u32 %v1294, %v1297
      %v1300 = vshrl.u32 %v1156, 16
      %v1302 = vrot.slane %v1300, 1
      %v1303 = vshll.u32 %v1156, 16
      %v1305 = vrot.slane %v1303, 2
      %v1306 = vor.u32 %v1302, %v1305
      %v1307 = vsel %vm1290, %v1298, %v1306
      %v1309 = vshrl.u32 %v1157, 16
      %v1311 = vrot.slane %v1309, 1
      %v1312 = vshll.u32 %v1157, 16
      %v1314 = vrot.slane %v1312, 2
      %v1315 = vor.u32 %v1311, %v1314
      %v1316 = vsel %vm1290, %v1306, %v1315
      %v1318 = vshrl.u32 %v1158, 16
      %v1320 = vrot.slane %v1318, 1
      %v1321 = vshll.u32 %v1158, 16
      %v1323 = vrot.slane %v1321, 2
      %v1324 = vor.u32 %v1320, %v1323
      %v1325 = vsel %vm1290, %v1315, %v1324
      %v1327 = vshrl.u32 %v1159, 16
      %v1329 = vrot.slane %v1327, 1
      %v1330 = vshll.u32 %v1159, 16
      %v1332 = vrot.slane %v1330, 2
      %v1333 = vor.u32 %v1329, %v1332
      %v1334 = vsel %vm1290, %v1324, %v1333
      %v1336 = vshrl.u32 %v1289, 16
      %v1338 = vrot.slane %v1336, 1
      %v1339 = vshll.u32 %v1289, 16
      %v1341 = vrot.slane %v1339, 2
      %v1342 = vor.u32 %v1338, %v1341
      %v1343 = vsel %vm1290, %v1333, %v1342
      %v1365 = vunpack.c.l.b16 %v1271
      %v1366 = vunpack.c.l.b16 %v1272
      %v1367 = vunpack.c.l.b16 %v1273
      %v1368 = vunpack.c.l.b16 %v1274
      %v1369 = vunpack.c.l.b16 %v1275
      %v1370 = vunpack.c.l.b16 %v1276
      %v1371 = vunpack.c.l.b16 %v1277
      %v1372 = vunpack.c.l.b16 %v1278
      %v1373 = vunpack.c.l.b16 %v1279
      %v1374 = vunpack.c.l.b16 %v1280
      %v1375 = vunpack.c.l.b16 %v1281
      %v1376 = vunpack.c.l.b16 %v1282
      %v1377 = vunpack.c.l.b16 %v1283
      %v1378 = vunpack.c.l.b16 %v1284
      %v1379 = vunpack.c.l.b16 %v1285
      %v1380 = vunpack.c.l.b16 %v1286
      %v1381 = vpack.c.b16 %v1366, %v1365
      %v1382 = vpack.c.b16 %v1368, %v1367
      %v1383 = vpack.c.b16 %v1370, %v1369
      %v1384 = vpack.c.b16 %v1372, %v1371
      %v1385 = vpack.c.b16 %v1374, %v1373
      %v1386 = vpack.c.b16 %v1376, %v1375
      %v1387 = vpack.c.b16 %v1378, %v1377
      %v1388 = vpack.c.b16 %v1380, %v1379
      %1397 = vmatpush.bf16.msra.mxu0 %v1388
      %1398 = vmatpush.bf16.msra.mxu0 %v1387
      %1399 = vmatpush.bf16.msra.mxu0 %v1386
      %1400 = vmatpush.bf16.msra.mxu0 %v1385
      %1401 = vmatpush.bf16.msra.mxu0 %v1384
      %1402 = vmatpush.bf16.msra.mxu0 %v1383
      %1403 = vmatpush.bf16.msra.mxu0 %v1382
      %1404 = vmatpush.bf16.msra.mxu0 %v1381
      %1405 = vmatmul.bf16.gmra.mxu0 %v1307
      %v1406 = vpop.f32.mrf.mxu0
      %v1407 = vadd.f32 0.0, %v1406
      %v1408 = vpop.f32.mrf.mxu0
      %v1409 = vadd.f32 0.0, %v1408
      %1410 = vmatmul.bf16.gmra.mxu0 %v1316
      %v1411 = vpop.f32.mrf.mxu0
      %v1412 = vadd.f32 0.0, %v1411
      %v1413 = vpop.f32.mrf.mxu0
      %v1414 = vadd.f32 0.0, %v1413
      %1415 = vmatmul.bf16.gmra.mxu0 %v1325
      %v1416 = vpop.f32.mrf.mxu0
      %v1417 = vadd.f32 0.0, %v1416
      %v1418 = vpop.f32.mrf.mxu0
      %v1419 = vadd.f32 0.0, %v1418
      %1420 = vmatmul.bf16.gmra.mxu0 %v1334
      %v1421 = vpop.f32.mrf.mxu0
      %v1422 = vadd.f32 0.0, %v1421
      %v1423 = vpop.f32.mrf.mxu0
      %v1424 = vadd.f32 0.0, %v1423
      %1425 = vmatmul.bf16.gmra.mxu0 %v1343
      %v1426 = vpop.f32.mrf.mxu0
      %v1427 = vadd.f32 0.0, %v1426
      %v1428 = vpop.f32.mrf.mxu0
      %v1429 = vadd.f32 0.0, %v1428
      %1430 = vdwg.mxu0
      %v1431 = vadd.f32 %v1259, %v1407
      %v1432 = vadd.f32 %v1260, %v1409
      %v1433 = vadd.f32 %v1261, %v1412
      %v1434 = vadd.f32 %v1262, %v1414
      %v1435 = vadd.f32 %v1263, %v1417
      %v1436 = vadd.f32 %v1264, %v1419
      %v1437 = vadd.f32 %v1265, %v1422
      %v1438 = vadd.f32 %v1266, %v1424
      %v1439 = vadd.f32 %v1267, %v1427
      %v1440 = vadd.f32 %v1268, %v1429
      %v1441 = vld [vmem:[#allocation2 + $0x4] sm:$0xc]
      %s1442 = scalar_lea.vmem %s6, 320
      %v1443 = vld [vmem:[%s1442] sm:$0xf]
      %v1444 = vld [vmem:[%s1442 + $0x4] sm:$0xf]
      %v1445 = vld [vmem:[%s1442 + $0x8] sm:$0xf]
      %v1446 = vld [vmem:[%s1442 + $0xc] sm:$0xf]
      %v1447 = vld [vmem:[%s1442 + $0x10] sm:$0xf]
      %v1448 = vld [vmem:[%s1442 + $0x14] sm:$0xf]
      %v1449 = vld [vmem:[%s1442 + $0x18] sm:$0xf]
      %v1450 = vld [vmem:[%s1442 + $0x1c] sm:$0xf]
      %v1451 = vld [vmem:[%s1442 + $0x20] sm:$0xf]
      %v1452 = vld [vmem:[%s1442 + $0x24] sm:$0xf]
      %v1453 = vld [vmem:[%s1442 + $0x28] sm:$0xf]
      %v1454 = vld [vmem:[%s1442 + $0x2c] sm:$0xf]
      %v1455 = vld [vmem:[%s1442 + $0x30] sm:$0xf]
      %v1456 = vld [vmem:[%s1442 + $0x34] sm:$0xf]
      %v1457 = vld [vmem:[%s1442 + $0x38] sm:$0xf]
      %v1458 = vld [vmem:[%s1442 + $0x3c] sm:$0xf]
      %v1460 = vunpack.c.l.b16 %v1441
      %v1461 = vpack.c.b16 %v1145, %v1460
      %vm1462 = vcmask 1045504
      %v1463 = vrot.slane %v1461, 2
      %v1464 = vrot.slane %v1156, 2
      %v1465 = vsel %vm1462, %v1463, %v1464
      %v1466 = vrot.slane %v1157, 2
      %v1467 = vsel %vm1462, %v1464, %v1466
      %v1468 = vrot.slane %v1158, 2
      %v1469 = vsel %vm1462, %v1466, %v1468
      %v1470 = vrot.slane %v1159, 2
      %v1471 = vsel %vm1462, %v1468, %v1470
      %v1472 = vrot.slane %v1289, 2
      %v1473 = vsel %vm1462, %v1470, %v1472
      %v1495 = vunpack.c.l.b16 %v1443
      %v1496 = vunpack.c.l.b16 %v1444
      %v1497 = vunpack.c.l.b16 %v1445
      %v1498 = vunpack.c.l.b16 %v1446
      %v1499 = vunpack.c.l.b16 %v1447
      %v1500 = vunpack.c.l.b16 %v1448
      %v1501 = vunpack.c.l.b16 %v1449
      %v1502 = vunpack.c.l.b16 %v1450
      %v1503 = vunpack.c.l.b16 %v1451
      %v1504 = vunpack.c.l.b16 %v1452
      %v1505 = vunpack.c.l.b16 %v1453
      %v1506 = vunpack.c.l.b16 %v1454
      %v1507 = vunpack.c.l.b16 %v1455
      %v1508 = vunpack.c.l.b16 %v1456
      %v1509 = vunpack.c.l.b16 %v1457
      %v1510 = vunpack.c.l.b16 %v1458
      %v1511 = vpack.c.b16 %v1496, %v1495
      %v1512 = vpack.c.b16 %v1498, %v1497
      %v1513 = vpack.c.b16 %v1500, %v1499
      %v1514 = vpack.c.b16 %v1502, %v1501
      %v1515 = vpack.c.b16 %v1504, %v1503
      %v1516 = vpack.c.b16 %v1506, %v1505
      %v1517 = vpack.c.b16 %v1508, %v1507
      %v1518 = vpack.c.b16 %v1510, %v1509
      %1527 = vmatpush.bf16.msra.mxu0 %v1518
      %1528 = vmatpush.bf16.msra.mxu0 %v1517
      %1529 = vmatpush.bf16.msra.mxu0 %v1516
      %1530 = vmatpush.bf16.msra.mxu0 %v1515
      %1531 = vmatpush.bf16.msra.mxu0 %v1514
      %1532 = vmatpush.bf16.msra.mxu0 %v1513
      %1533 = vmatpush.bf16.msra.mxu0 %v1512
      %1534 = vmatpush.bf16.msra.mxu0 %v1511
      %1535 = vmatmul.bf16.gmra.mxu0 %v1465
      %v1536 = vpop.f32.mrf.mxu0
      %v1537 = vadd.f32 0.0, %v1536
      %v1538 = vpop.f32.mrf.mxu0
      %v1539 = vadd.f32 0.0, %v1538
      %1540 = vmatmul.bf16.gmra.mxu0 %v1467
      %v1541 = vpop.f32.mrf.mxu0
      %v1542 = vadd.f32 0.0, %v1541
      %v1543 = vpop.f32.mrf.mxu0
      %v1544 = vadd.f32 0.0, %v1543
      %1545 = vmatmul.bf16.gmra.mxu0 %v1469
      %v1546 = vpop.f32.mrf.mxu0
      %v1547 = vadd.f32 0.0, %v1546
      %v1548 = vpop.f32.mrf.mxu0
      %v1549 = vadd.f32 0.0, %v1548
      %1550 = vmatmul.bf16.gmra.mxu0 %v1471
      %v1551 = vpop.f32.mrf.mxu0
      %v1552 = vadd.f32 0.0, %v1551
      %v1553 = vpop.f32.mrf.mxu0
      %v1554 = vadd.f32 0.0, %v1553
      %1555 = vmatmul.bf16.gmra.mxu0 %v1473
      %v1556 = vpop.f32.mrf.mxu0
      %v1557 = vadd.f32 0.0, %v1556
      %v1558 = vpop.f32.mrf.mxu0
      %v1559 = vadd.f32 0.0, %v1558
      %1560 = vdwg.mxu0
      %v1561 = vadd.f32 %v1431, %v1537
      %v1562 = vadd.f32 %v1432, %v1539
      %v1563 = vadd.f32 %v1433, %v1542
      %v1564 = vadd.f32 %v1434, %v1544
      %v1565 = vadd.f32 %v1435, %v1547
      %v1566 = vadd.f32 %v1436, %v1549
      %v1567 = vadd.f32 %v1437, %v1552
      %v1568 = vadd.f32 %v1438, %v1554
      %v1569 = vadd.f32 %v1439, %v1557
      %v1570 = vadd.f32 %v1440, %v1559
      %v1571 = vld [vmem:[#allocation2 + $0x8] sm:$0xc]
      %v1572 = vld [vmem:[#allocation2 + $0xc] sm:$0xf]
      %v1573 = vld [vmem:[#allocation2 + $0x10] sm:$0xf]
      %v1574 = vld [vmem:[#allocation2 + $0x14] sm:$0xf]
      %v1575 = vld [vmem:[#allocation2 + $0x18] sm:$0xf]
      %v1576 = vld [vmem:[#allocation2 + $0x1c] sm:$0xf]
      %v1577 = vld [vmem:[#allocation2 + $0x20] sm:$0xf]
      %v1578 = vld [vmem:[#allocation2 + $0x24] sm:$0xf]
      %v1579 = vld [vmem:[#allocation2 + $0x28] sm:$0xf]
      %v1580 = vld [vmem:[#allocation2 + $0x2c] sm:$0xf]
      %v1581 = vld [vmem:[#allocation2 + $0x30] sm:$0x3]
      %s1582 = scalar_lea.vmem %s6, 384
      %v1583 = vld [vmem:[%s1582] sm:$0xf]
      %v1584 = vld [vmem:[%s1582 + $0x4] sm:$0xf]
      %v1585 = vld [vmem:[%s1582 + $0x8] sm:$0xf]
      %v1586 = vld [vmem:[%s1582 + $0xc] sm:$0xf]
      %v1587 = vld [vmem:[%s1582 + $0x10] sm:$0xf]
      %v1588 = vld [vmem:[%s1582 + $0x14] sm:$0xf]
      %v1589 = vld [vmem:[%s1582 + $0x18] sm:$0xf]
      %v1590 = vld [vmem:[%s1582 + $0x1c] sm:$0xf]
      %v1591 = vld [vmem:[%s1582 + $0x20] sm:$0xf]
      %v1592 = vld [vmem:[%s1582 + $0x24] sm:$0xf]
      %v1593 = vld [vmem:[%s1582 + $0x28] sm:$0xf]
      %v1594 = vld [vmem:[%s1582 + $0x2c] sm:$0xf]
      %v1595 = vld [vmem:[%s1582 + $0x30] sm:$0xf]
      %v1596 = vld [vmem:[%s1582 + $0x34] sm:$0xf]
      %v1597 = vld [vmem:[%s1582 + $0x38] sm:$0xf]
      %v1598 = vld [vmem:[%s1582 + $0x3c] sm:$0xf]
      %v1610 = vunpack.c.l.b16 %v1571
      %v1611 = vunpack.c.l.b16 %v1572
      %v1612 = vunpack.c.l.b16 %v1573
      %v1613 = vunpack.c.l.b16 %v1574
      %v1614 = vunpack.c.l.b16 %v1575
      %v1615 = vunpack.c.l.b16 %v1576
      %v1616 = vunpack.c.l.b16 %v1577
      %v1617 = vunpack.c.l.b16 %v1578
      %v1618 = vunpack.c.l.b16 %v1579
      %v1619 = vunpack.c.l.b16 %v1580
      %v1620 = vunpack.c.l.b16 %v1581
      %v1621 = vpack.c.b16 %v1611, %v1610
      %v1622 = vpack.c.b16 %v1613, %v1612
      %v1623 = vpack.c.b16 %v1615, %v1614
      %v1624 = vpack.c.b16 %v1617, %v1616
      %v1625 = vpack.c.b16 %v1619, %v1618
      %v1626 = vpack.c.b16 %v1620, %v1620
      %v1627 = vrot.slane %v1621, 2
      %v1628 = vrot.slane %v1622, 2
      %v1629 = vsel %vm1462, %v1627, %v1628
      %v1630 = vrot.slane %v1623, 2
      %v1631 = vsel %vm1462, %v1628, %v1630
      %v1632 = vrot.slane %v1624, 2
      %v1633 = vsel %vm1462, %v1630, %v1632
      %v1634 = vrot.slane %v1625, 2
      %v1635 = vsel %vm1462, %v1632, %v1634
      %v1636 = vrot.slane %v1626, 2
      %v1637 = vsel %vm1462, %v1634, %v1636
      %v1659 = vunpack.c.l.b16 %v1583
      %v1660 = vunpack.c.l.b16 %v1584
      %v1661 = vunpack.c.l.b16 %v1585
      %v1662 = vunpack.c.l.b16 %v1586
      %v1663 = vunpack.c.l.b16 %v1587
      %v1664 = vunpack.c.l.b16 %v1588
      %v1665 = vunpack.c.l.b16 %v1589
      %v1666 = vunpack.c.l.b16 %v1590
      %v1667 = vunpack.c.l.b16 %v1591
      %v1668 = vunpack.c.l.b16 %v1592
      %v1669 = vunpack.c.l.b16 %v1593
      %v1670 = vunpack.c.l.b16 %v1594
      %v1671 = vunpack.c.l.b16 %v1595
      %v1672 = vunpack.c.l.b16 %v1596
      %v1673 = vunpack.c.l.b16 %v1597
      %v1674 = vunpack.c.l.b16 %v1598
      %v1675 = vpack.c.b16 %v1660, %v1659
      %v1676 = vpack.c.b16 %v1662, %v1661
      %v1677 = vpack.c.b16 %v1664, %v1663
      %v1678 = vpack.c.b16 %v1666, %v1665
      %v1679 = vpack.c.b16 %v1668, %v1667
      %v1680 = vpack.c.b16 %v1670, %v1669
      %v1681 = vpack.c.b16 %v1672, %v1671
      %v1682 = vpack.c.b16 %v1674, %v1673
      %1691 = vmatpush.bf16.msra.mxu0 %v1682
      %1692 = vmatpush.bf16.msra.mxu0 %v1681
      %1693 = vmatpush.bf16.msra.mxu0 %v1680
      %1694 = vmatpush.bf16.msra.mxu0 %v1679
      %1695 = vmatpush.bf16.msra.mxu0 %v1678
      %1696 = vmatpush.bf16.msra.mxu0 %v1677
      %1697 = vmatpush.bf16.msra.mxu0 %v1676
      %1698 = vmatpush.bf16.msra.mxu0 %v1675
      %1699 = vmatmul.bf16.gmra.mxu0 %v1629
      %v1700 = vpop.f32.mrf.mxu0
      %v1701 = vadd.f32 0.0, %v1700
      %v1702 = vpop.f32.mrf.mxu0
      %v1703 = vadd.f32 0.0, %v1702
      %1704 = vmatmul.bf16.gmra.mxu0 %v1631
      %v1705 = vpop.f32.mrf.mxu0
      %v1706 = vadd.f32 0.0, %v1705
      %v1707 = vpop.f32.mrf.mxu0
      %v1708 = vadd.f32 0.0, %v1707
      %1709 = vmatmul.bf16.gmra.mxu0 %v1633
      %v1710 = vpop.f32.mrf.mxu0
      %v1711 = vadd.f32 0.0, %v1710
      %v1712 = vpop.f32.mrf.mxu0
      %v1713 = vadd.f32 0.0, %v1712
      %1714 = vmatmul.bf16.gmra.mxu0 %v1635
      %v1715 = vpop.f32.mrf.mxu0
      %v1716 = vadd.f32 0.0, %v1715
      %v1717 = vpop.f32.mrf.mxu0
      %v1718 = vadd.f32 0.0, %v1717
      %1719 = vmatmul.bf16.gmra.mxu0 %v1637
      %v1720 = vpop.f32.mrf.mxu0
      %v1721 = vadd.f32 0.0, %v1720
      %v1722 = vpop.f32.mrf.mxu0
      %v1723 = vadd.f32 0.0, %v1722
      %1724 = vdwg.mxu0
      %v1725 = vadd.f32 %v1561, %v1701
      %v1726 = vadd.f32 %v1562, %v1703
      %v1727 = vadd.f32 %v1563, %v1706
      %v1728 = vadd.f32 %v1564, %v1708
      %v1729 = vadd.f32 %v1565, %v1711
      %v1730 = vadd.f32 %v1566, %v1713
      %v1731 = vadd.f32 %v1567, %v1716
      %v1732 = vadd.f32 %v1568, %v1718
      %v1733 = vadd.f32 %v1569, %v1721
      %v1734 = vadd.f32 %v1570, %v1723
      %v1735 = vld [vmem:[#allocation2 + $0x30] sm:$0x7]
      %s1736 = scalar_lea.vmem %s6, 448
      %v1737 = vld [vmem:[%s1736] sm:$0xf]
      %v1738 = vld [vmem:[%s1736 + $0x4] sm:$0xf]
      %v1739 = vld [vmem:[%s1736 + $0x8] sm:$0xf]
      %v1740 = vld [vmem:[%s1736 + $0xc] sm:$0xf]
      %v1741 = vld [vmem:[%s1736 + $0x10] sm:$0xf]
      %v1742 = vld [vmem:[%s1736 + $0x14] sm:$0xf]
      %v1743 = vld [vmem:[%s1736 + $0x18] sm:$0xf]
      %v1744 = vld [vmem:[%s1736 + $0x1c] sm:$0xf]
      %v1745 = vld [vmem:[%s1736 + $0x20] sm:$0xf]
      %v1746 = vld [vmem:[%s1736 + $0x24] sm:$0xf]
      %v1747 = vld [vmem:[%s1736 + $0x28] sm:$0xf]
      %v1748 = vld [vmem:[%s1736 + $0x2c] sm:$0xf]
      %v1749 = vld [vmem:[%s1736 + $0x30] sm:$0xf]
      %v1750 = vld [vmem:[%s1736 + $0x34] sm:$0xf]
      %v1751 = vld [vmem:[%s1736 + $0x38] sm:$0xf]
      %v1752 = vld [vmem:[%s1736 + $0x3c] sm:$0xf]
      %v1754 = vunpack.c.l.b16 %v1735
      %v1755 = vpack.c.b16 %v1754, %v1754
      %vm1756 = vsmask.f32 5376
      %v1758 = vshrl.u32 %v1621, 16
      %v1760 = vrot.slane %v1758, 2
      %v1761 = vshll.u32 %v1621, 16
      %v1763 = vrot.slane %v1761, 3
      %v1764 = vor.u32 %v1760, %v1763
      %v1766 = vshrl.u32 %v1622, 16
      %v1768 = vrot.slane %v1766, 2
      %v1769 = vshll.u32 %v1622, 16
      %v1771 = vrot.slane %v1769, 3
      %v1772 = vor.u32 %v1768, %v1771
      %v1773 = vsel %vm1756, %v1764, %v1772
      %v1775 = vshrl.u32 %v1623, 16
      %v1777 = vrot.slane %v1775, 2
      %v1778 = vshll.u32 %v1623, 16
      %v1780 = vrot.slane %v1778, 3
      %v1781 = vor.u32 %v1777, %v1780
      %v1782 = vsel %vm1756, %v1772, %v1781
      %v1784 = vshrl.u32 %v1624, 16
      %v1786 = vrot.slane %v1784, 2
      %v1787 = vshll.u32 %v1624, 16
      %v1789 = vrot.slane %v1787, 3
      %v1790 = vor.u32 %v1786, %v1789
      %v1791 = vsel %vm1756, %v1781, %v1790
      %v1793 = vshrl.u32 %v1625, 16
      %v1795 = vrot.slane %v1793, 2
      %v1796 = vshll.u32 %v1625, 16
      %v1798 = vrot.slane %v1796, 3
      %v1799 = vor.u32 %v1795, %v1798
      %v1800 = vsel %vm1756, %v1790, %v1799
      %v1802 = vshrl.u32 %v1755, 16
      %v1804 = vrot.slane %v1802, 2
      %v1805 = vshll.u32 %v1755, 16
      %v1807 = vrot.slane %v1805, 3
      %v1808 = vor.u32 %v1804, %v1807
      %v1809 = vsel %vm1756, %v1799, %v1808
      %v1831 = vunpack.c.l.b16 %v1737
      %v1832 = vunpack.c.l.b16 %v1738
      %v1833 = vunpack.c.l.b16 %v1739
      %v1834 = vunpack.c.l.b16 %v1740
      %v1835 = vunpack.c.l.b16 %v1741
      %v1836 = vunpack.c.l.b16 %v1742
      %v1837 = vunpack.c.l.b16 %v1743
      %v1838 = vunpack.c.l.b16 %v1744
      %v1839 = vunpack.c.l.b16 %v1745
      %v1840 = vunpack.c.l.b16 %v1746
      %v1841 = vunpack.c.l.b16 %v1747
      %v1842 = vunpack.c.l.b16 %v1748
      %v1843 = vunpack.c.l.b16 %v1749
      %v1844 = vunpack.c.l.b16 %v1750
      %v1845 = vunpack.c.l.b16 %v1751
      %v1846 = vunpack.c.l.b16 %v1752
      %v1847 = vpack.c.b16 %v1832, %v1831
      %v1848 = vpack.c.b16 %v1834, %v1833
      %v1849 = vpack.c.b16 %v1836, %v1835
      %v1850 = vpack.c.b16 %v1838, %v1837
      %v1851 = vpack.c.b16 %v1840, %v1839
      %v1852 = vpack.c.b16 %v1842, %v1841
      %v1853 = vpack.c.b16 %v1844, %v1843
      %v1854 = vpack.c.b16 %v1846, %v1845
      %1863 = vmatpush.bf16.msra.mxu0 %v1854
      %1864 = vmatpush.bf16.msra.mxu0 %v1853
      %1865 = vmatpush.bf16.msra.mxu0 %v1852
      %1866 = vmatpush.bf16.msra.mxu0 %v1851
      %1867 = vmatpush.bf16.msra.mxu0 %v1850
      %1868 = vmatpush.bf16.msra.mxu0 %v1849
      %1869 = vmatpush.bf16.msra.mxu0 %v1848
      %1870 = vmatpush.bf16.msra.mxu0 %v1847
      %1871 = vmatmul.bf16.gmra.mxu0 %v1773
      %v1872 = vpop.f32.mrf.mxu0
      %v1873 = vadd.f32 0.0, %v1872
      %v1874 = vpop.f32.mrf.mxu0
      %v1875 = vadd.f32 0.0, %v1874
      %1876 = vmatmul.bf16.gmra.mxu0 %v1782
      %v1877 = vpop.f32.mrf.mxu0
      %v1878 = vadd.f32 0.0, %v1877
      %v1879 = vpop.f32.mrf.mxu0
      %v1880 = vadd.f32 0.0, %v1879
      %1881 = vmatmul.bf16.gmra.mxu0 %v1791
      %v1882 = vpop.f32.mrf.mxu0
      %v1883 = vadd.f32 0.0, %v1882
      %v1884 = vpop.f32.mrf.mxu0
      %v1885 = vadd.f32 0.0, %v1884
      %1886 = vmatmul.bf16.gmra.mxu0 %v1800
      %v1887 = vpop.f32.mrf.mxu0
      %v1888 = vadd.f32 0.0, %v1887
      %v1889 = vpop.f32.mrf.mxu0
      %v1890 = vadd.f32 0.0, %v1889
      %1891 = vmatmul.bf16.gmra.mxu0 %v1809
      %v1892 = vpop.f32.mrf.mxu0
      %v1893 = vadd.f32 0.0, %v1892
      %v1894 = vpop.f32.mrf.mxu0
      %v1895 = vadd.f32 0.0, %v1894
      %1896 = vdwg.mxu0
      %v1897 = vadd.f32 %v1725, %v1873
      %v1898 = vadd.f32 %v1726, %v1875
      %v1899 = vadd.f32 %v1727, %v1878
      %v1900 = vadd.f32 %v1728, %v1880
      %v1901 = vadd.f32 %v1729, %v1883
      %v1902 = vadd.f32 %v1730, %v1885
      %v1903 = vadd.f32 %v1731, %v1888
      %v1904 = vadd.f32 %v1732, %v1890
      %v1905 = vadd.f32 %v1733, %v1893
      %v1906 = vadd.f32 %v1734, %v1895
      %v1907 = vld [vmem:[#allocation2 + $0x8] sm:$0x8]
      %s1908 = scalar_lea.vmem %s6, 512
      %v1909 = vld [vmem:[%s1908] sm:$0xf]
      %v1910 = vld [vmem:[%s1908 + $0x4] sm:$0xf]
      %v1911 = vld [vmem:[%s1908 + $0x8] sm:$0xf]
      %v1912 = vld [vmem:[%s1908 + $0xc] sm:$0xf]
      %v1913 = vld [vmem:[%s1908 + $0x10] sm:$0xf]
      %v1914 = vld [vmem:[%s1908 + $0x14] sm:$0xf]
      %v1915 = vld [vmem:[%s1908 + $0x18] sm:$0xf]
      %v1916 = vld [vmem:[%s1908 + $0x1c] sm:$0xf]
      %v1917 = vld [vmem:[%s1908 + $0x20] sm:$0xf]
      %v1918 = vld [vmem:[%s1908 + $0x24] sm:$0xf]
      %v1919 = vld [vmem:[%s1908 + $0x28] sm:$0xf]
      %v1920 = vld [vmem:[%s1908 + $0x2c] sm:$0xf]
      %v1921 = vld [vmem:[%s1908 + $0x30] sm:$0xf]
      %v1922 = vld [vmem:[%s1908 + $0x34] sm:$0xf]
      %v1923 = vld [vmem:[%s1908 + $0x38] sm:$0xf]
      %v1924 = vld [vmem:[%s1908 + $0x3c] sm:$0xf]
      %v1926 = vunpack.c.l.b16 %v1907
      %v1927 = vpack.c.b16 %v1611, %v1926
      %vm1928 = vcmask 1044480
      %v1929 = vrot.slane %v1927, 3
      %v1930 = vrot.slane %v1622, 3
      %v1931 = vsel %vm1928, %v1929, %v1930
      %v1932 = vrot.slane %v1623, 3
      %v1933 = vsel %vm1928, %v1930, %v1932
      %v1934 = vrot.slane %v1624, 3
      %v1935 = vsel %vm1928, %v1932, %v1934
      %v1936 = vrot.slane %v1625, 3
      %v1937 = vsel %vm1928, %v1934, %v1936
      %v1938 = vrot.slane %v1755, 3
      %v1939 = vsel %vm1928, %v1936, %v1938
      %v1961 = vunpack.c.l.b16 %v1909
      %v1962 = vunpack.c.l.b16 %v1910
      %v1963 = vunpack.c.l.b16 %v1911
      %v1964 = vunpack.c.l.b16 %v1912
      %v1965 = vunpack.c.l.b16 %v1913
      %v1966 = vunpack.c.l.b16 %v1914
      %v1967 = vunpack.c.l.b16 %v1915
      %v1968 = vunpack.c.l.b16 %v1916
      %v1969 = vunpack.c.l.b16 %v1917
      %v1970 = vunpack.c.l.b16 %v1918
      %v1971 = vunpack.c.l.b16 %v1919
      %v1972 = vunpack.c.l.b16 %v1920
      %v1973 = vunpack.c.l.b16 %v1921
      %v1974 = vunpack.c.l.b16 %v1922
      %v1975 = vunpack.c.l.b16 %v1923
      %v1976 = vunpack.c.l.b16 %v1924
      %v1977 = vpack.c.b16 %v1962, %v1961
      %v1978 = vpack.c.b16 %v1964, %v1963
      %v1979 = vpack.c.b16 %v1966, %v1965
      %v1980 = vpack.c.b16 %v1968, %v1967
      %v1981 = vpack.c.b16 %v1970, %v1969
      %v1982 = vpack.c.b16 %v1972, %v1971
      %v1983 = vpack.c.b16 %v1974, %v1973
      %v1984 = vpack.c.b16 %v1976, %v1975
      %1993 = vmatpush.bf16.msra.mxu0 %v1984
      %1994 = vmatpush.bf16.msra.mxu0 %v1983
      %1995 = vmatpush.bf16.msra.mxu0 %v1982
      %1996 = vmatpush.bf16.msra.mxu0 %v1981
      %1997 = vmatpush.bf16.msra.mxu0 %v1980
      %1998 = vmatpush.bf16.msra.mxu0 %v1979
      %1999 = vmatpush.bf16.msra.mxu0 %v1978
      %2000 = vmatpush.bf16.msra.mxu0 %v1977
      %2001 = vmatmul.bf16.gmra.mxu0 %v1931
      %v2002 = vpop.f32.mrf.mxu0
      %v2003 = vadd.f32 0.0, %v2002
      %v2004 = vpop.f32.mrf.mxu0
      %v2005 = vadd.f32 0.0, %v2004
      %2006 = vmatmul.bf16.gmra.mxu0 %v1933
      %v2007 = vpop.f32.mrf.mxu0
      %v2008 = vadd.f32 0.0, %v2007
      %v2009 = vpop.f32.mrf.mxu0
      %v2010 = vadd.f32 0.0, %v2009
      %2011 = vmatmul.bf16.gmra.mxu0 %v1935
      %v2012 = vpop.f32.mrf.mxu0
      %v2013 = vadd.f32 0.0, %v2012
      %v2014 = vpop.f32.mrf.mxu0
      %v2015 = vadd.f32 0.0, %v2014
      %2016 = vmatmul.bf16.gmra.mxu0 %v1937
      %v2017 = vpop.f32.mrf.mxu0
      %v2018 = vadd.f32 0.0, %v2017
      %v2019 = vpop.f32.mrf.mxu0
      %v2020 = vadd.f32 0.0, %v2019
      %2021 = vmatmul.bf16.gmra.mxu0 %v1939
      %v2022 = vpop.f32.mrf.mxu0
      %v2023 = vadd.f32 0.0, %v2022
      %v2024 = vpop.f32.mrf.mxu0
      %v2025 = vadd.f32 0.0, %v2024
      %2026 = vdwg.mxu0
      %v2027 = vadd.f32 %v1897, %v2003
      %v2028 = vadd.f32 %v1898, %v2005
      %v2029 = vadd.f32 %v1899, %v2008
      %v2030 = vadd.f32 %v1900, %v2010
      %v2031 = vadd.f32 %v1901, %v2013
      %v2032 = vadd.f32 %v1902, %v2015
      %v2033 = vadd.f32 %v1903, %v2018
      %v2034 = vadd.f32 %v1904, %v2020
      %v2035 = vadd.f32 %v1905, %v2023
      %v2036 = vadd.f32 %v1906, %v2025
      %v2037 = vld [vmem:[%s7] sm:$0x1]
      %v2039 = vperm.slane %v2037, 0
      %v2041 = vadd.f32 %v2027, %v2039
      %v2042 = vadd.f32 %v2028, %v2039
      %v2043 = vadd.f32 %v2029, %v2039
      %v2044 = vadd.f32 %v2030, %v2039
      %v2045 = vadd.f32 %v2031, %v2039
      %v2046 = vadd.f32 %v2032, %v2039
      %v2047 = vadd.f32 %v2033, %v2039
      %v2048 = vadd.f32 %v2034, %v2039
      %v2049 = vadd.f32 %v2035, %v2039
      %v2050 = vadd.f32 %v2036, %v2039
      %v2051 = vmax.f32 %v2041, 0.0
      %v2052 = vmax.f32 %v2042, 0.0
      %v2053 = vmax.f32 %v2043, 0.0
      %v2054 = vmax.f32 %v2044, 0.0
      %v2055 = vmax.f32 %v2045, 0.0
      %v2056 = vmax.f32 %v2046, 0.0
      %v2057 = vmax.f32 %v2047, 0.0
      %v2058 = vmax.f32 %v2048, 0.0
      %v2059 = vmax.f32 %v2049, 0.0
      %v2060 = vmax.f32 %v2050, 0.0
      %v2061 = vld [vmem:[%s354 + $0x4] sm:$0xe]
      %v2062 = vld [vmem:[%s354 + $0x8] sm:$0xf]
      %v2063 = vld [vmem:[%s354 + $0xc] sm:$0xf]
      %v2064 = vld [vmem:[%s354 + $0x10] sm:$0xf]
      %v2065 = vld [vmem:[%s354 + $0x14] sm:$0xf]
      %v2066 = vld [vmem:[%s354 + $0x18] sm:$0xf]
      %v2067 = vld [vmem:[%s354 + $0x1c] sm:$0xf]
      %v2068 = vld [vmem:[%s354 + $0x20] sm:$0xf]
      %v2069 = vld [vmem:[%s354 + $0x24] sm:$0xf]
      %v2070 = vld [vmem:[%s354 + $0x28] sm:$0xf]
      %v2071 = vld [vmem:[%s354 + $0x2c] sm:$0x3]
      %v2072 = vunpack.c.l.bf16 %v2061
      %v2073 = vunpack.c.l.bf16 %v2062
      %v2074 = vunpack.c.l.bf16 %v2063
      %v2075 = vunpack.c.l.bf16 %v2064
      %v2076 = vunpack.c.l.bf16 %v2065
      %v2077 = vunpack.c.l.bf16 %v2066
      %v2078 = vunpack.c.l.bf16 %v2067
      %v2079 = vunpack.c.l.bf16 %v2068
      %v2080 = vunpack.c.l.bf16 %v2069
      %v2081 = vunpack.c.l.bf16 %v2070
      %v2082 = vunpack.c.l.bf16 %v2071
      %v2083 = vpack.c.bf16 %v2052, %v2051
      %v2084 = vpack.c.bf16 %v2054, %v2053
      %v2085 = vpack.c.bf16 %v2056, %v2055
      %v2086 = vpack.c.bf16 %v2058, %v2057
      %v2087 = vpack.c.bf16 %v2060, %v2059
      %v2088 = vld [vmem:[%s8] sm:$0xf]
      %v2089 = vld [vmem:[%s8 + $0x4] sm:$0xf]
      %v2090 = vld [vmem:[%s8 + $0x8] sm:$0xf]
      %v2091 = vld [vmem:[%s8 + $0xc] sm:$0xf]
      %v2092 = vld [vmem:[%s8 + $0x10] sm:$0xf]
      %v2093 = vld [vmem:[%s8 + $0x14] sm:$0xf]
      %v2094 = vld [vmem:[%s8 + $0x18] sm:$0xf]
      %v2095 = vld [vmem:[%s8 + $0x1c] sm:$0xf]
      %v2096 = vld [vmem:[%s8 + $0x20] sm:$0xf]
      %v2097 = vld [vmem:[%s8 + $0x24] sm:$0xf]
      %v2098 = vld [vmem:[%s8 + $0x28] sm:$0xf]
      %v2099 = vld [vmem:[%s8 + $0x2c] sm:$0xf]
      %v2100 = vld [vmem:[%s8 + $0x30] sm:$0xf]
      %v2101 = vld [vmem:[%s8 + $0x34] sm:$0xf]
      %v2102 = vld [vmem:[%s8 + $0x38] sm:$0xf]
      %v2103 = vld [vmem:[%s8 + $0x3c] sm:$0xf]
      %v2104 = vld [vmem:[%s9] sm:$0x1]
      %v2106 = vperm.slane %v2104, 0
      %v2124 = vunpack.c.l.b16 %v2088
      %v2125 = vunpack.c.l.b16 %v2089
      %v2126 = vunpack.c.l.b16 %v2090
      %v2127 = vunpack.c.l.b16 %v2091
      %v2128 = vunpack.c.l.b16 %v2092
      %v2129 = vunpack.c.l.b16 %v2093
      %v2130 = vunpack.c.l.b16 %v2094
      %v2131 = vunpack.c.l.b16 %v2095
      %v2132 = vunpack.c.l.b16 %v2096
      %v2133 = vunpack.c.l.b16 %v2097
      %v2134 = vunpack.c.l.b16 %v2098
      %v2135 = vunpack.c.l.b16 %v2099
      %v2136 = vunpack.c.l.b16 %v2100
      %v2137 = vunpack.c.l.b16 %v2101
      %v2138 = vunpack.c.l.b16 %v2102
      %v2139 = vunpack.c.l.b16 %v2103
      %v2140 = vpack.c.b16 %v2125, %v2124
      %v2141 = vpack.c.b16 %v2127, %v2126
      %v2142 = vpack.c.b16 %v2129, %v2128
      %v2143 = vpack.c.b16 %v2131, %v2130
      %v2144 = vpack.c.b16 %v2133, %v2132
      %v2145 = vpack.c.b16 %v2135, %v2134
      %v2146 = vpack.c.b16 %v2137, %v2136
      %v2147 = vpack.c.b16 %v2139, %v2138
      %2156 = vmatpush.bf16.msra.mxu0 %v2147
      %2157 = vmatpush.bf16.msra.mxu0 %v2146
      %2158 = vmatpush.bf16.msra.mxu0 %v2145
      %2159 = vmatpush.bf16.msra.mxu0 %v2144
      %2160 = vmatpush.bf16.msra.mxu0 %v2143
      %2161 = vmatpush.bf16.msra.mxu0 %v2142
      %2162 = vmatpush.bf16.msra.mxu0 %v2141
      %2163 = vmatpush.bf16.msra.mxu0 %v2140
      %2164 = vmatmul.bf16.gmra.mxu0 %v2083
      %v2165 = vpop.f32.mrf.mxu0
      %v2166 = vadd.f32 %v2106, %v2165
      %v2167 = vpop.f32.mrf.mxu0
      %v2168 = vadd.f32 %v2106, %v2167
      %2169 = vmatmul.bf16.gmra.mxu0 %v2084
      %v2170 = vpop.f32.mrf.mxu0
      %v2171 = vadd.f32 %v2106, %v2170
      %v2172 = vpop.f32.mrf.mxu0
      %v2173 = vadd.f32 %v2106, %v2172
      %2174 = vmatmul.bf16.gmra.mxu0 %v2085
      %v2175 = vpop.f32.mrf.mxu0
      %v2176 = vadd.f32 %v2106, %v2175
      %v2177 = vpop.f32.mrf.mxu0
      %v2178 = vadd.f32 %v2106, %v2177
      %2179 = vmatmul.bf16.gmra.mxu0 %v2086
      %v2180 = vpop.f32.mrf.mxu0
      %v2181 = vadd.f32 %v2106, %v2180
      %v2182 = vpop.f32.mrf.mxu0
      %v2183 = vadd.f32 %v2106, %v2182
      %2184 = vmatmul.bf16.gmra.mxu0 %v2087
      %v2185 = vpop.f32.mrf.mxu0
      %v2186 = vadd.f32 %v2106, %v2185
      %v2187 = vpop.f32.mrf.mxu0
      %v2188 = vadd.f32 %v2106, %v2187
      %2189 = vdwg.mxu0
      %vm2201 = vcmask 1044480
      %v2202 = vrot.slane %v2072, 3
      %v2203 = vrot.slane %v2073, 3
      %v2204 = vsel %vm2201, %v2202, %v2203
      %v2205 = vrot.slane %v2074, 3
      %v2206 = vsel %vm2201, %v2203, %v2205
      %v2207 = vrot.slane %v2075, 3
      %v2208 = vsel %vm2201, %v2205, %v2207
      %v2209 = vrot.slane %v2076, 3
      %v2210 = vsel %vm2201, %v2207, %v2209
      %v2211 = vrot.slane %v2077, 3
      %v2212 = vsel %vm2201, %v2209, %v2211
      %v2213 = vrot.slane %v2078, 3
      %v2214 = vsel %vm2201, %v2211, %v2213
      %v2215 = vrot.slane %v2079, 3
      %v2216 = vsel %vm2201, %v2213, %v2215
      %v2217 = vrot.slane %v2080, 3
      %v2218 = vsel %vm2201, %v2215, %v2217
      %v2219 = vrot.slane %v2081, 3
      %v2220 = vsel %vm2201, %v2217, %v2219
      %v2221 = vrot.slane %v2082, 3
      %v2222 = vsel %vm2201, %v2219, %v2221
      %v2233 = vadd.f32 %v2166, %v2204
      %v2234 = vadd.f32 %v2168, %v2206
      %v2235 = vadd.f32 %v2171, %v2208
      %v2236 = vadd.f32 %v2173, %v2210
      %v2237 = vadd.f32 %v2176, %v2212
      %v2238 = vadd.f32 %v2178, %v2214
      %v2239 = vadd.f32 %v2181, %v2216
      %v2240 = vadd.f32 %v2183, %v2218
      %v2241 = vadd.f32 %v2186, %v2220
      %v2242 = vadd.f32 %v2188, %v2222
      %2243 = vst [vmem:[%s359] sm:$0xff] %v2233
      %2244 = vst [vmem:[%s359 + $0x8] sm:$0xff] %v2234
      %2245 = vst [vmem:[%s359 + $0x10] sm:$0xff] %v2235
      %2246 = vst [vmem:[%s359 + $0x18] sm:$0xff] %v2236
      %2247 = vst [vmem:[%s359 + $0x20] sm:$0xff] %v2237
      %2248 = vst [vmem:[%s359 + $0x28] sm:$0xff] %v2238
      %2249 = vst [vmem:[%s359 + $0x30] sm:$0xff] %v2239
      %2250 = vst [vmem:[%s359 + $0x38] sm:$0xff] %v2240
      %2251 = vst [vmem:[%s359 + $0x40] sm:$0xff] %v2241
      %2252 = vst [vmem:[%s359 + $0x48] sm:$0xff] %v2242
      %p2253 = scmp.lt.s32.totalorder %s21, 1
      %s2254 = scalar_select %p2253, %s21, 1
      %s2255 = smul.addr %s2254, 10
      %s2256 = smul.addr %s2255, 8
      %s2257 = scalar_lea.vmem %s10, %s2256
      // Predicated region
      $region61: #{down_forward.3} parent=59 // pred_check
        %p2258 = pneg %p254
      $region62: #{down_forward.3} parent=59 // pred_check_branch
        %2260 = sbr.rel (%p2258) target = $region64
      $region63: #{down_forward.3} parent=59 // pred_region
        _
      $region64: #{down_forward.3} parent=59 // pred_fallthru
        _
    $region60: #{down_forward.3} parent=5 // pred_fallthru
      _
    %p2261 = scmp.le.s32.totalorder 2, %s16
    // Predicated region
    $region65: #{down_forward.3} parent=5 // pred_check
      %p2262 = pneg %p2261
    $region66: #{down_forward.3} parent=5 // pred_check_branch
      %2264 = sbr.rel (%p2262) target = $region68
    $region67: #{down_forward.3} parent=5 // pred_region
      %s2265 = ssub.s32 %s16, 2
      // Predicated region
      $region69: #{down_forward.3} parent=67 // pred_check
        %p2266 = pneg %p260
      $region70: #{down_forward.3} parent=67 // pred_check_branch
        %2268 = sbr.rel (%p2266) target = $region72
      $region71: #{down_forward.3} parent=67 // pred_region
        %p2269 = scmp.lt.s32.totalorder %s22, 1
        %s2270 = scalar_select %p2269, %s22, 1
        %s2271 = smul.addr %s2270, 10
        %s2272 = smul.addr %s2271, 8
        %s2273 = scalar_lea.vmem %s10, %s2272
      $region72: #{down_forward.3} parent=67 // pred_fallthru
        _
    $region68: #{down_forward.3} parent=5 // pred_fallthru
      _
  $region6: #{down_forward.3} parent=0 // loop_footer
    %s20 = sadd.s32 1, %s16
  $region7: #{down_forward.3} parent=0 // loop_footer_branch
    %15 = sbr.rel target = $region3
  $region8: #{down_forward.3} parent=0 // loop_exit
    _

// kernel: down_forward.2
$region0: #{down_forward.2}
  #allocation0 [shape = 'u32[]', space=smem, size = 0x4, offset = 0x4, fixed_abs, tag = 'smem constant byte address 0x4 - core index']
  #allocation1 [shape = 'u32[72,128]{1,0:T(1,128)}', space=vmem, size = 0x9000, scoped, tag = 'internal scratch']
  #allocation2 [shape = 'bf16[4,108,128]{2,1,0:T(8,128)(2,1)}', space=vmem, size = 0x1c000, scoped, tag = 'scratch operand']
  %s0 = inlined_call_operand.vmem [shape: f32[2,4,100,128], index: 0, kind: input, shape index: {}]
  %s1 = inlined_call_operand.vmem [shape: f32[4,100,1], index: 1, kind: input, shape index: {}]
  %s2 = inlined_call_operand.vmem [shape: f32[1,128], index: 2, kind: input, shape index: {}]
  %s3 = inlined_call_operand.vmem [shape: f32[1,128], index: 3, kind: input, shape index: {}]
  %s4 = inlined_call_operand.vmem [shape: bf16[128,128], index: 4, kind: input, shape index: {}]
  %s5 = inlined_call_operand.vmem [shape: f32[1,128], index: 5, kind: input, shape index: {}]
  %s6 = inlined_call_operand.vmem [shape: bf16[9,128,128], index: 6, kind: input, shape index: {}]
  %s7 = inlined_call_operand.vmem [shape: f32[1,128], index: 7, kind: input, shape index: {}]
  %s8 = inlined_call_operand.vmem [shape: bf16[256,128], index: 8, kind: input, shape index: {}]
  %s9 = inlined_call_operand.vmem [shape: f32[1,128], index: 9, kind: input, shape index: {}]
  %s10 = inlined_call_operand.vmem [shape: bf16[2,100,128], index: 10, kind: output, shape index: {}]
  %s11 = sld [smem:[#allocation0]]
  $region73: #{down_forward.2} parent=0
    _
  %s13 = ssub.s32 1, %s11
  %s14 = scalar_select 0, %s13, %s11
  loop: start=0, step=1, limit=4
  $region2: #{down_forward.2} parent=0 // loop_pre_header
    _
  $region3: #{down_forward.2} parent=0 // loop_header
    %s16 = sphi 0, %s20
    %p17 = scmp.ge.s32.totalorder %s16, 4
    %s26 = sphi 0, %s28
    %s29 = sphi 0, %s26
    %s30 = sphi 0, %s29
    %s46 = sphi 0, %s30
    %s50 = sphi 0, %s50
    %s52 = sphi 0, %s50
    %s53 = sphi 0, %s52
    %s67 = sphi 0, %s53
    %s71 = sphi 0, %s71
    %s73 = sphi 0, %s71
    %s74 = sphi 0, %s73
    %s88 = sphi 0, %s74
    %s92 = sphi 0, %s92
    %s94 = sphi 0, %s92
    %s95 = sphi 0, %s94
    %s109 = sphi 0, %s95
    %s113 = sphi 0, %s113
    %s115 = sphi 0, %s113
    %s116 = sphi 0, %s115
    %s130 = sphi 0, %s116
    %s134 = sphi 0, %s134
    %s136 = sphi 0, %s134
    %s137 = sphi 0, %s136
    %s151 = sphi 0, %s137
    %s155 = sphi 0, %s155
    %s157 = sphi 0, %s155
    %s158 = sphi 0, %s157
    %s172 = sphi 0, %s158
    %s176 = sphi 0, %s176
    %s178 = sphi 0, %s176
    %s179 = sphi 0, %s178
    %s193 = sphi 0, %s179
    %s197 = sphi 0, %s197
    %s199 = sphi 0, %s197
    %s200 = sphi 0, %s199
    %s214 = sphi 0, %s200
    %s218 = sphi 0, %s218
    %s220 = sphi 0, %s218
    %s221 = sphi 0, %s220
    %s235 = sphi 0, %s221
    %s241 = sphi 0, %s243
    %s244 = sphi 0, %s241
    %s245 = sphi 0, %s244
    %s261 = sphi 0, %s245
  $region4: #{down_forward.2} parent=0 // loop_header_branch
    %19 = sbr.rel (%p17) target = $region8
  $region5: #{down_forward.2} parent=0 // loop_body
    %s21 = ssub.s32 %s16, 1
    %s22 = ssub.s32 %s16, 2
    %s23 = sadd.s32 %s16, 1
    %s24 = ssub.s32 %s16, %s23
    %p25 = scmp.eq.s32.totalorder %s24, 0
    %s27 = sadd.s32 %s26, 1
    %s28 = scalar_select %p25, %s26, %s27
    %p31 = pneg %p25
    %p32 = scmp.eq.s32.totalorder %s16, 1
    %p33 = por %p31, %p32
    %p34 = scmp.ne.s32.totalorder %s26, %s29
    %p35 = scmp.eq.s32.totalorder %s16, 0
    %p36 = por %p34, %p35
    %p37 = scmp.ne.s32.totalorder %s26, %s29
    %p38 = scmp.eq.s32.totalorder %s21, 1
    %p39 = por %p37, %p38
    %p40 = scmp.ne.s32.totalorder %s29, %s30
    %p41 = scmp.eq.s32.totalorder %s21, 0
    %p42 = por %p40, %p41
    %p43 = scmp.ne.s32.totalorder %s29, %s30
    %p44 = scmp.eq.s32.totalorder %s22, 1
    %p45 = por %p43, %p44
    %p47 = scmp.ne.s32.totalorder %s30, %s46
    %p48 = scmp.eq.s32.totalorder %s22, 0
    %p49 = por %p47, %p48
    %s51 = sadd.s32 %s50, 1
    %p54 = scmp.eq.s32.totalorder %s16, 1
    %p55 = scmp.ne.s32.totalorder %s50, %s52
    %p56 = scmp.eq.s32.totalorder %s16, 0
    %p57 = por %p55, %p56
    %p58 = scmp.ne.s32.totalorder %s50, %s52
    %p59 = scmp.eq.s32.totalorder %s21, 1
    %p60 = por %p58, %p59
    %p61 = scmp.ne.s32.totalorder %s52, %s53
    %p62 = scmp.eq.s32.totalorder %s21, 0
    %p63 = por %p61, %p62
    %p64 = scmp.ne.s32.totalorder %s52, %s53
    %p65 = scmp.eq.s32.totalorder %s22, 1
    %p66 = por %p64, %p65
    %p68 = scmp.ne.s32.totalorder %s53, %s67
    %p69 = scmp.eq.s32.totalorder %s22, 0
    %p70 = por %p68, %p69
    %s72 = sadd.s32 %s71, 1
    %p75 = scmp.eq.s32.totalorder %s16, 1
    %p76 = scmp.ne.s32.totalorder %s71, %s73
    %p77 = scmp.eq.s32.totalorder %s16, 0
    %p78 = por %p76, %p77
    %p79 = scmp.ne.s32.totalorder %s71, %s73
    %p80 = scmp.eq.s32.totalorder %s21, 1
    %p81 = por %p79, %p80
    %p82 = scmp.ne.s32.totalorder %s73, %s74
    %p83 = scmp.eq.s32.totalorder %s21, 0
    %p84 = por %p82, %p83
    %p85 = scmp.ne.s32.totalorder %s73, %s74
    %p86 = scmp.eq.s32.totalorder %s22, 1
    %p87 = por %p85, %p86
    %p89 = scmp.ne.s32.totalorder %s74, %s88
    %p90 = scmp.eq.s32.totalorder %s22, 0
    %p91 = por %p89, %p90
    %s93 = sadd.s32 %s92, 1
    %p96 = scmp.eq.s32.totalorder %s16, 1
    %p97 = scmp.ne.s32.totalorder %s92, %s94
    %p98 = scmp.eq.s32.totalorder %s16, 0
    %p99 = por %p97, %p98
    %p100 = scmp.ne.s32.totalorder %s92, %s94
    %p101 = scmp.eq.s32.totalorder %s21, 1
    %p102 = por %p100, %p101
    %p103 = scmp.ne.s32.totalorder %s94, %s95
    %p104 = scmp.eq.s32.totalorder %s21, 0
    %p105 = por %p103, %p104
    %p106 = scmp.ne.s32.totalorder %s94, %s95
    %p107 = scmp.eq.s32.totalorder %s22, 1
    %p108 = por %p106, %p107
    %p110 = scmp.ne.s32.totalorder %s95, %s109
    %p111 = scmp.eq.s32.totalorder %s22, 0
    %p112 = por %p110, %p111
    %s114 = sadd.s32 %s113, 1
    %p117 = scmp.eq.s32.totalorder %s16, 1
    %p118 = scmp.ne.s32.totalorder %s113, %s115
    %p119 = scmp.eq.s32.totalorder %s16, 0
    %p120 = por %p118, %p119
    %p121 = scmp.ne.s32.totalorder %s113, %s115
    %p122 = scmp.eq.s32.totalorder %s21, 1
    %p123 = por %p121, %p122
    %p124 = scmp.ne.s32.totalorder %s115, %s116
    %p125 = scmp.eq.s32.totalorder %s21, 0
    %p126 = por %p124, %p125
    %p127 = scmp.ne.s32.totalorder %s115, %s116
    %p128 = scmp.eq.s32.totalorder %s22, 1
    %p129 = por %p127, %p128
    %p131 = scmp.ne.s32.totalorder %s116, %s130
    %p132 = scmp.eq.s32.totalorder %s22, 0
    %p133 = por %p131, %p132
    %s135 = sadd.s32 %s134, 1
    %p138 = scmp.eq.s32.totalorder %s16, 1
    %p139 = scmp.ne.s32.totalorder %s134, %s136
    %p140 = scmp.eq.s32.totalorder %s16, 0
    %p141 = por %p139, %p140
    %p142 = scmp.ne.s32.totalorder %s134, %s136
    %p143 = scmp.eq.s32.totalorder %s21, 1
    %p144 = por %p142, %p143
    %p145 = scmp.ne.s32.totalorder %s136, %s137
    %p146 = scmp.eq.s32.totalorder %s21, 0
    %p147 = por %p145, %p146
    %p148 = scmp.ne.s32.totalorder %s136, %s137
    %p149 = scmp.eq.s32.totalorder %s22, 1
    %p150 = por %p148, %p149
    %p152 = scmp.ne.s32.totalorder %s137, %s151
    %p153 = scmp.eq.s32.totalorder %s22, 0
    %p154 = por %p152, %p153
    %s156 = sadd.s32 %s155, 1
    %p159 = scmp.eq.s32.totalorder %s16, 1
    %p160 = scmp.ne.s32.totalorder %s155, %s157
    %p161 = scmp.eq.s32.totalorder %s16, 0
    %p162 = por %p160, %p161
    %p163 = scmp.ne.s32.totalorder %s155, %s157
    %p164 = scmp.eq.s32.totalorder %s21, 1
    %p165 = por %p163, %p164
    %p166 = scmp.ne.s32.totalorder %s157, %s158
    %p167 = scmp.eq.s32.totalorder %s21, 0
    %p168 = por %p166, %p167
    %p169 = scmp.ne.s32.totalorder %s157, %s158
    %p170 = scmp.eq.s32.totalorder %s22, 1
    %p171 = por %p169, %p170
    %p173 = scmp.ne.s32.totalorder %s158, %s172
    %p174 = scmp.eq.s32.totalorder %s22, 0
    %p175 = por %p173, %p174
    %s177 = sadd.s32 %s176, 1
    %p180 = scmp.eq.s32.totalorder %s16, 1
    %p181 = scmp.ne.s32.totalorder %s176, %s178
    %p182 = scmp.eq.s32.totalorder %s16, 0
    %p183 = por %p181, %p182
    %p184 = scmp.ne.s32.totalorder %s176, %s178
    %p185 = scmp.eq.s32.totalorder %s21, 1
    %p186 = por %p184, %p185
    %p187 = scmp.ne.s32.totalorder %s178, %s179
    %p188 = scmp.eq.s32.totalorder %s21, 0
    %p189 = por %p187, %p188
    %p190 = scmp.ne.s32.totalorder %s178, %s179
    %p191 = scmp.eq.s32.totalorder %s22, 1
    %p192 = por %p190, %p191
    %p194 = scmp.ne.s32.totalorder %s179, %s193
    %p195 = scmp.eq.s32.totalorder %s22, 0
    %p196 = por %p194, %p195
    %s198 = sadd.s32 %s197, 1
    %p201 = scmp.eq.s32.totalorder %s16, 1
    %p202 = scmp.ne.s32.totalorder %s197, %s199
    %p203 = scmp.eq.s32.totalorder %s16, 0
    %p204 = por %p202, %p203
    %p205 = scmp.ne.s32.totalorder %s197, %s199
    %p206 = scmp.eq.s32.totalorder %s21, 1
    %p207 = por %p205, %p206
    %p208 = scmp.ne.s32.totalorder %s199, %s200
    %p209 = scmp.eq.s32.totalorder %s21, 0
    %p210 = por %p208, %p209
    %p211 = scmp.ne.s32.totalorder %s199, %s200
    %p212 = scmp.eq.s32.totalorder %s22, 1
    %p213 = por %p211, %p212
    %p215 = scmp.ne.s32.totalorder %s200, %s214
    %p216 = scmp.eq.s32.totalorder %s22, 0
    %p217 = por %p215, %p216
    %s219 = sadd.s32 %s218, 1
    %p222 = scmp.eq.s32.totalorder %s16, 1
    %p223 = scmp.ne.s32.totalorder %s218, %s220
    %p224 = scmp.eq.s32.totalorder %s16, 0
    %p225 = por %p223, %p224
    %p226 = scmp.ne.s32.totalorder %s218, %s220
    %p227 = scmp.eq.s32.totalorder %s21, 1
    %p228 = por %p226, %p227
    %p229 = scmp.ne.s32.totalorder %s220, %s221
    %p230 = scmp.eq.s32.totalorder %s21, 0
    %p231 = por %p229, %p230
    %p232 = scmp.ne.s32.totalorder %s220, %s221
    %p233 = scmp.eq.s32.totalorder %s22, 1
    %p234 = por %p232, %p233
    %p236 = scmp.ne.s32.totalorder %s221, %s235
    %p237 = scmp.eq.s32.totalorder %s22, 0
    %p238 = por %p236, %p237
    %s239 = ssub.s32 %s16, %s23
    %p240 = scmp.eq.s32.totalorder %s239, 0
    %s242 = sadd.s32 %s241, 1
    %s243 = scalar_select %p240, %s241, %s242
    %p246 = pneg %p240
    %p247 = scmp.eq.s32.totalorder %s16, 1
    %p248 = por %p246, %p247
    %p249 = scmp.ne.s32.totalorder %s241, %s244
    %p250 = scmp.eq.s32.totalorder %s16, 0
    %p251 = por %p249, %p250
    %p252 = scmp.ne.s32.totalorder %s241, %s244
    %p253 = scmp.eq.s32.totalorder %s21, 1
    %p254 = por %p252, %p253
    %p255 = scmp.ne.s32.totalorder %s244, %s245
    %p256 = scmp.eq.s32.totalorder %s21, 0
    %p257 = por %p255, %p256
    %p258 = scmp.ne.s32.totalorder %s244, %s245
    %p259 = scmp.eq.s32.totalorder %s22, 1
    %p260 = por %p258, %p259
    %p262 = scmp.ne.s32.totalorder %s245, %s261
    %p263 = scmp.eq.s32.totalorder %s22, 0
    %p264 = por %p262, %p263
    %p265 = scmp.le.s32.totalorder 1, %s16
    %p266 = scmp.lt.s32.totalorder %s16, 3
    %p267 = pnand %p265, %p266
    %p268 = pneg %p267
    // Predicated region
    $region9: #{down_forward.2} parent=5 // pred_check
      _
    $region10: #{down_forward.2} parent=5 // pred_check_branch
      %270 = sbr.rel (%p267) target = $region12
    $region11: #{down_forward.2} parent=5 // pred_region
      %s271 = ssub.s32 %s16, 1
      // Predicated region
      $region13: #{down_forward.2} parent=11 // pred_check
        %p272 = pneg %p63
      $region14: #{down_forward.2} parent=11 // pred_check_branch
        %274 = sbr.rel (%p272) target = $region16
      $region15: #{down_forward.2} parent=11 // pred_region
        _
      $region16: #{down_forward.2} parent=11 // pred_fallthru
        _
      // Predicated region
      $region17: #{down_forward.2} parent=11 // pred_check
        %p275 = pneg %p84
      $region18: #{down_forward.2} parent=11 // pred_check_branch
        %277 = sbr.rel (%p275) target = $region20
      $region19: #{down_forward.2} parent=11 // pred_region
        _
      $region20: #{down_forward.2} parent=11 // pred_fallthru
        _
      // Predicated region
      $region21: #{down_forward.2} parent=11 // pred_check
        %p278 = pneg %p105
      $region22: #{down_forward.2} parent=11 // pred_check_branch
        %280 = sbr.rel (%p278) target = $region24
      $region23: #{down_forward.2} parent=11 // pred_region
        _
      $region24: #{down_forward.2} parent=11 // pred_fallthru
        _
      // Predicated region
      $region25: #{down_forward.2} parent=11 // pred_check
        %p281 = pneg %p126
      $region26: #{down_forward.2} parent=11 // pred_check_branch
        %283 = sbr.rel (%p281) target = $region28
      $region27: #{down_forward.2} parent=11 // pred_region
        _
      $region28: #{down_forward.2} parent=11 // pred_fallthru
        _
      // Predicated region
      $region29: #{down_forward.2} parent=11 // pred_check
        %p284 = pneg %p147
      $region30: #{down_forward.2} parent=11 // pred_check_branch
        %286 = sbr.rel (%p284) target = $region32
      $region31: #{down_forward.2} parent=11 // pred_region
        _
      $region32: #{down_forward.2} parent=11 // pred_fallthru
        _
      // Predicated region
      $region33: #{down_forward.2} parent=11 // pred_check
        %p287 = pneg %p168
      $region34: #{down_forward.2} parent=11 // pred_check_branch
        %289 = sbr.rel (%p287) target = $region36
      $region35: #{down_forward.2} parent=11 // pred_region
        _
      $region36: #{down_forward.2} parent=11 // pred_fallthru
        _
      // Predicated region
      $region37: #{down_forward.2} parent=11 // pred_check
        %p290 = pneg %p189
      $region38: #{down_forward.2} parent=11 // pred_check_branch
        %292 = sbr.rel (%p290) target = $region40
      $region39: #{down_forward.2} parent=11 // pred_region
        _
      $region40: #{down_forward.2} parent=11 // pred_fallthru
        _
      // Predicated region
      $region41: #{down_forward.2} parent=11 // pred_check
        %p293 = pneg %p210
      $region42: #{down_forward.2} parent=11 // pred_check_branch
        %295 = sbr.rel (%p293) target = $region44
      $region43: #{down_forward.2} parent=11 // pred_region
        _
      $region44: #{down_forward.2} parent=11 // pred_fallthru
        _
      // Predicated region
      $region45: #{down_forward.2} parent=11 // pred_check
        %p296 = pneg %p231
      $region46: #{down_forward.2} parent=11 // pred_check_branch
        %298 = sbr.rel (%p296) target = $region48
      $region47: #{down_forward.2} parent=11 // pred_region
        _
      $region48: #{down_forward.2} parent=11 // pred_fallthru
        _
    $region12: #{down_forward.2} parent=5 // pred_fallthru
      _
    %p299 = scmp.lt.s32.totalorder %s16, 2
    // Predicated region
    $region49: #{down_forward.2} parent=5 // pred_check
      %p300 = pneg %p299
    $region50: #{down_forward.2} parent=5 // pred_check_branch
      %302 = sbr.rel (%p300) target = $region52
    $region51: #{down_forward.2} parent=5 // pred_region
      // Predicated region
      $region53: #{down_forward.2} parent=51 // pred_check
        %p303 = pneg %p36
      $region54: #{down_forward.2} parent=51 // pred_check_branch
        %305 = sbr.rel (%p303) target = $region56
      $region55: #{down_forward.2} parent=51 // pred_region
        %p306 = scmp.lt.s32.totalorder %s16, 1
        %s307 = scalar_select %p306, %s16, 1
        %s308 = smul.addr %s307, 52
        %s309 = smul.addr %s308, 8
        %s310 = scalar_lea.vmem %s0, %s309
      $region56: #{down_forward.2} parent=51 // pred_fallthru
        _
    $region52: #{down_forward.2} parent=5 // pred_fallthru
      _
    %p311 = scmp.le.s32.totalorder 1, %s16
    %p312 = scmp.lt.s32.totalorder %s16, 3
    %p313 = pnand %p311, %p312
    %p314 = pneg %p313
    // Predicated region
    $region57: #{down_forward.2} parent=5 // pred_check
      _
    $region58: #{down_forward.2} parent=5 // pred_check_branch
      %316 = sbr.rel (%p313) target = $region60
    $region59: #{down_forward.2} parent=5 // pred_region
      %s317 = ssub.s32 %s16, 1
      %p318 = scmp.lt.s32.totalorder %s21, 1
      %s319 = scalar_select %p318, %s21, 1
      %s320 = smul.addr %s319, 52
      %s321 = smul.addr %s320, 8
      %s322 = scalar_lea.vmem %s0, %s321
      %p323 = pneg %p42
      %p324 = pneg %p39
      %p325 = pneg %p63
      %p326 = pneg %p60
      %p327 = pneg %p84
      %p328 = pneg %p81
      %p329 = pneg %p105
      %p330 = pneg %p102
      %p331 = pneg %p126
      %p332 = pneg %p123
      %p333 = pneg %p147
      %p334 = pneg %p144
      %p335 = pneg %p168
      %p336 = pneg %p165
      %p337 = pneg %p189
      %p338 = pneg %p186
      %p339 = pneg %p210
      %p340 = pneg %p207
      %p341 = pneg %p231
      %p342 = pneg %p228
      %p343 = pneg %p257
      %p344 = pneg %p254
      %p345 = scmp.lt.s32.totalorder %s21, 1
      %s346 = scalar_select %p345, %s21, 1
      %s347 = smul.addr %s346, 13
      %s348 = smul.addr %s347, 4
      %s349 = scalar_lea.vmem %s10, %s348
      %p350 = scmp.lt.s32.totalorder %s21, 1
      %s351 = scalar_select %p350, %s21, 1
      %s352 = smul.addr %s351, 52
      %s353 = smul.addr %s352, 8
      %s354 = scalar_lea.vmem %s0, %s353
      %p355 = scmp.lt.s32.totalorder %s21, 1
      %s356 = scalar_select %p355, %s21, 1
      %s357 = smul.addr %s356, 13
      %s358 = smul.addr %s357, 4
      %s359 = scalar_lea.vmem %s10, %s358
      %361 = vst [vmem:[#allocation2 + $0x30] sm:$0xc] 0
      %362 = vst [vmem:[#allocation2 + $0x34] sm:$0x3] 0
      %v363 = vld [vmem:[%s354] sm:$0xff]
      %v364 = vld [vmem:[%s354 + $0x8] sm:$0xff]
      %v365 = vld [vmem:[%s354 + $0x10] sm:$0xff]
      %v366 = vld [vmem:[%s354 + $0x18] sm:$0xff]
      %v367 = vld [vmem:[%s354 + $0x20] sm:$0xff]
      %v368 = vld [vmem:[%s354 + $0x28] sm:$0xff]
      %v369 = vld [vmem:[%s354 + $0x30] sm:$0xff]
      %v370 = vld [vmem:[%s354 + $0x38] sm:$0xff]
      %v371 = vld [vmem:[%s354 + $0x40] sm:$0xff]
      %v372 = vld [vmem:[%s354 + $0x48] sm:$0xff]
      %v373 = vld [vmem:[%s354 + $0x50] sm:$0xff]
      %v374 = vld [vmem:[%s354 + $0x58] sm:$0xff]
      %v375 = vld [vmem:[%s354 + $0x60] sm:$0xf]
      %v376 = vld [vmem:[%s2] sm:$0x1]
      %v378 = vperm.slane %v376, 0
      %v380 = vmul.f32 %v363, %v378
      %v381 = vmul.f32 %v364, %v378
      %v382 = vmul.f32 %v365, %v378
      %v383 = vmul.f32 %v366, %v378
      %v384 = vmul.f32 %v367, %v378
      %v385 = vmul.f32 %v368, %v378
      %v386 = vmul.f32 %v369, %v378
      %v387 = vmul.f32 %v370, %v378
      %v388 = vmul.f32 %v371, %v378
      %v389 = vmul.f32 %v372, %v378
      %v390 = vmul.f32 %v373, %v378
      %v391 = vmul.f32 %v374, %v378
      %v392 = vmul.f32 %v375, %v378
      %v393 = vld [vmem:[%s3] sm:$0x1]
      %v395 = vperm.slane %v393, 0
      %v397 = vadd.f32 %v380, %v395
      %v398 = vadd.f32 %v381, %v395
      %v399 = vadd.f32 %v382, %v395
      %v400 = vadd.f32 %v383, %v395
      %v401 = vadd.f32 %v384, %v395
      %v402 = vadd.f32 %v385, %v395
      %v403 = vadd.f32 %v386, %v395
      %v404 = vadd.f32 %v387, %v395
      %v405 = vadd.f32 %v388, %v395
      %v406 = vadd.f32 %v389, %v395
      %v407 = vadd.f32 %v390, %v395
      %v408 = vadd.f32 %v391, %v395
      %v409 = vadd.f32 %v392, %v395
      %v410 = vmax.f32 %v397, 0.0
      %v411 = vmax.f32 %v398, 0.0
      %v412 = vmax.f32 %v399, 0.0
      %v413 = vmax.f32 %v400, 0.0
      %v414 = vmax.f32 %v401, 0.0
      %v415 = vmax.f32 %v402, 0.0
      %v416 = vmax.f32 %v403, 0.0
      %v417 = vmax.f32 %v404, 0.0
      %v418 = vmax.f32 %v405, 0.0
      %v419 = vmax.f32 %v406, 0.0
      %v420 = vmax.f32 %v407, 0.0
      %v421 = vmax.f32 %v408, 0.0
      %v422 = vmax.f32 %v409, 0.0
      %v423 = vpack.c.bf16 %v411, %v410
      %v424 = vpack.c.bf16 %v413, %v412
      %v425 = vpack.c.bf16 %v415, %v414
      %v426 = vpack.c.bf16 %v417, %v416
      %v427 = vpack.c.bf16 %v419, %v418
      %v428 = vpack.c.bf16 %v421, %v420
      %v429 = vpack.c.bf16 %v422, %v422
      %v430 = vld [vmem:[%s4] sm:$0xf]
      %v431 = vld [vmem:[%s4 + $0x4] sm:$0xf]
      %v432 = vld [vmem:[%s4 + $0x8] sm:$0xf]
      %v433 = vld [vmem:[%s4 + $0xc] sm:$0xf]
      %v434 = vld [vmem:[%s4 + $0x10] sm:$0xf]
      %v435 = vld [vmem:[%s4 + $0x14] sm:$0xf]
      %v436 = vld [vmem:[%s4 + $0x18] sm:$0xf]
      %v437 = vld [vmem:[%s4 + $0x1c] sm:$0xf]
      %v438 = vld [vmem:[%s4 + $0x20] sm:$0xf]
      %v439 = vld [vmem:[%s4 + $0x24] sm:$0xf]
      %v440 = vld [vmem:[%s4 + $0x28] sm:$0xf]
      %v441 = vld [vmem:[%s4 + $0x2c] sm:$0xf]
      %v442 = vld [vmem:[%s4 + $0x30] sm:$0xf]
      %v443 = vld [vmem:[%s4 + $0x34] sm:$0xf]
      %v444 = vld [vmem:[%s4 + $0x38] sm:$0xf]
      %v445 = vld [vmem:[%s4 + $0x3c] sm:$0xf]
      %v446 = vld [vmem:[%s5] sm:$0x1]
      %v448 = vperm.slane %v446, 0
      %v466 = vunpack.c.l.b16 %v430
      %v467 = vunpack.c.l.b16 %v431
      %v468 = vunpack.c.l.b16 %v432
      %v469 = vunpack.c.l.b16 %v433
      %v470 = vunpack.c.l.b16 %v434
      %v471 = vunpack.c.l.b16 %v435
      %v472 = vunpack.c.l.b16 %v436
      %v473 = vunpack.c.l.b16 %v437
      %v474 = vunpack.c.l.b16 %v438
      %v475 = vunpack.c.l.b16 %v439
      %v476 = vunpack.c.l.b16 %v440
      %v477 = vunpack.c.l.b16 %v441
      %v478 = vunpack.c.l.b16 %v442
      %v479 = vunpack.c.l.b16 %v443
      %v480 = vunpack.c.l.b16 %v444
      %v481 = vunpack.c.l.b16 %v445
      %v482 = vpack.c.b16 %v467, %v466
      %v483 = vpack.c.b16 %v469, %v468
      %v484 = vpack.c.b16 %v471, %v470
      %v485 = vpack.c.b16 %v473, %v472
      %v486 = vpack.c.b16 %v475, %v474
      %v487 = vpack.c.b16 %v477, %v476
      %v488 = vpack.c.b16 %v479, %v478
      %v489 = vpack.c.b16 %v481, %v480
      %498 = vmatpush.bf16.msra.mxu0 %v489
      %499 = vmatpush.bf16.msra.mxu0 %v488
      %500 = vmatpush.bf16.msra.mxu0 %v487
      %501 = vmatpush.bf16.msra.mxu0 %v486
      %502 = vmatpush.bf16.msra.mxu0 %v485
      %503 = vmatpush.bf16.msra.mxu0 %v484
      %504 = vmatpush.bf16.msra.mxu0 %v483
      %505 = vmatpush.bf16.msra.mxu0 %v482
      %506 = vmatmul.bf16.gmra.mxu0 %v423
      %v507 = vpop.f32.mrf.mxu0
      %v508 = vadd.f32 %v448, %v507
      %v509 = vpop.f32.mrf.mxu0
      %v510 = vadd.f32 %v448, %v509
      %511 = vmatmul.bf16.gmra.mxu0 %v424
      %v512 = vpop.f32.mrf.mxu0
      %v513 = vadd.f32 %v448, %v512
      %v514 = vpop.f32.mrf.mxu0
      %v515 = vadd.f32 %v448, %v514
      %516 = vmatmul.bf16.gmra.mxu0 %v425
      %v517 = vpop.f32.mrf.mxu0
      %v518 = vadd.f32 %v448, %v517
      %v519 = vpop.f32.mrf.mxu0
      %v520 = vadd.f32 %v448, %v519
      %521 = vmatmul.bf16.gmra.mxu0 %v426
      %v522 = vpop.f32.mrf.mxu0
      %v523 = vadd.f32 %v448, %v522
      %v524 = vpop.f32.mrf.mxu0
      %v525 = vadd.f32 %v448, %v524
      %526 = vmatmul.bf16.gmra.mxu0 %v427
      %v527 = vpop.f32.mrf.mxu0
      %v528 = vadd.f32 %v448, %v527
      %v529 = vpop.f32.mrf.mxu0
      %v530 = vadd.f32 %v448, %v529
      %531 = vmatmul.bf16.gmra.mxu0 %v428
      %v532 = vpop.f32.mrf.mxu0
      %v533 = vadd.f32 %v448, %v532
      %v534 = vpop.f32.mrf.mxu0
      %v535 = vadd.f32 %v448, %v534
      %536 = vmatmul.bf16.gmra.mxu0 %v429
      %v537 = vpop.f32.mrf.mxu0
      %v538 = vadd.f32 %v448, %v537
      %v539 = vpop.f32.mrf.mxu0
      %540 = vdwg.mxu0
      %v541 = vmax.f32 %v508, 0.0
      %v542 = vmax.f32 %v510, 0.0
      %v543 = vmax.f32 %v513, 0.0
      %v544 = vmax.f32 %v515, 0.0
      %v545 = vmax.f32 %v518, 0.0
      %v546 = vmax.f32 %v520, 0.0
      %v547 = vmax.f32 %v523, 0.0
      %v548 = vmax.f32 %v525, 0.0
      %v549 = vmax.f32 %v528, 0.0
      %v550 = vmax.f32 %v530, 0.0
      %v551 = vmax.f32 %v533, 0.0
      %v552 = vmax.f32 %v535, 0.0
      %v553 = vmax.f32 %v538, 0.0
      %v554 = vld [vmem:[%s1] sm:$0xff]
      %v555 = vld [vmem:[%s1 + $0x8] sm:$0xff]
      %v556 = vld [vmem:[%s1 + $0x10] sm:$0xff]
      %v557 = vld [vmem:[%s1 + $0x18] sm:$0xff]
      %v558 = vld [vmem:[%s1 + $0x20] sm:$0xff]
      %v559 = vld [vmem:[%s1 + $0x28] sm:$0xff]
      %v560 = vld [vmem:[%s1 + $0x30] sm:$0xff]
      %v561 = vld [vmem:[%s1 + $0x38] sm:$0xff]
      %v562 = vld [vmem:[%s1 + $0x40] sm:$0xff]
      %v563 = vld [vmem:[%s1 + $0x48] sm:$0xff]
      %v564 = vld [vmem:[%s1 + $0x50] sm:$0xff]
      %v565 = vld [vmem:[%s1 + $0x58] sm:$0xff]
      %v566 = vld [vmem:[%s1 + $0x60] sm:$0xf]
      %568 = vset.pattern.permute.xlu0 0
      %569 = vperm.xlu0 %568, %v554
      %v570 = vpop.permute.xlu0 %569
      %573 = vset.pattern.permute.xlu0 0
      %574 = vperm.xlu0 %573, %v555
      %v575 = vpop.permute.xlu0 %574
      %578 = vset.pattern.permute.xlu0 0
      %579 = vperm.xlu0 %578, %v556
      %v580 = vpop.permute.xlu0 %579
      %583 = vset.pattern.permute.xlu0 0
      %584 = vperm.xlu0 %583, %v557
      %v585 = vpop.permute.xlu0 %584
      %588 = vset.pattern.permute.xlu0 0
      %589 = vperm.xlu0 %588, %v558
      %v590 = vpop.permute.xlu0 %589
      %593 = vset.pattern.permute.xlu0 0
      %594 = vperm.xlu0 %593, %v559
      %v595 = vpop.permute.xlu0 %594
      %598 = vset.pattern.permute.xlu0 0
      %599 = vperm.xlu0 %598, %v560
      %v600 = vpop.permute.xlu0 %599
      %603 = vset.pattern.permute.xlu0 0
      %604 = vperm.xlu0 %603, %v561
      %v605 = vpop.permute.xlu0 %604
      %608 = vset.pattern.permute.xlu0 0
      %609 = vperm.xlu0 %608, %v562
      %v610 = vpop.permute.xlu0 %609
      %613 = vset.pattern.permute.xlu0 0
      %614 = vperm.xlu0 %613, %v563
      %v615 = vpop.permute.xlu0 %614
      %618 = vset.pattern.permute.xlu0 0
      %619 = vperm.xlu0 %618, %v564
      %v620 = vpop.permute.xlu0 %619
      %623 = vset.pattern.permute.xlu0 0
      %624 = vperm.xlu0 %623, %v565
      %v625 = vpop.permute.xlu0 %624
      %628 = vset.pattern.permute.xlu0 0
      %629 = vperm.xlu0 %628, %v566
      %v630 = vpop.permute.xlu0 %629
      %v632 = vmul.f32 %v541, %v570
      %v633 = vmul.f32 %v542, %v575
      %v634 = vmul.f32 %v543, %v580
      %v635 = vmul.f32 %v544, %v585
      %v636 = vmul.f32 %v545, %v590
      %v637 = vmul.f32 %v546, %v595
      %v638 = vmul.f32 %v547, %v600
      %v639 = vmul.f32 %v548, %v605
      %v640 = vmul.f32 %v549, %v610
      %v641 = vmul.f32 %v550, %v615
      %v642 = vmul.f32 %v551, %v620
      %v643 = vmul.f32 %v552, %v625
      %v644 = vmul.f32 %v553, %v630
      %v645 = vpack.c.bf16 %v632, %v632
      %v646 = vpack.c.bf16 %v633, %v633
      %v647 = vpack.c.bf16 %v634, %v634
      %v648 = vpack.c.bf16 %v635, %v635
      %v649 = vpack.c.bf16 %v636, %v636
      %v650 = vpack.c.bf16 %v637, %v637
      %v651 = vpack.c.bf16 %v638, %v638
      %v652 = vpack.c.bf16 %v639, %v639
      %v653 = vpack.c.bf16 %v640, %v640
      %v654 = vpack.c.bf16 %v641, %v641
      %v655 = vpack.c.bf16 %v642, %v642
      %v656 = vpack.c.bf16 %v643, %v643
      %v657 = vpack.c.bf16 %v644, %v644
      %658 = vst [vmem:[#allocation2] sm:$0xf] %v645
      %659 = vst [vmem:[#allocation2 + $0x4] sm:$0xf] %v646
      %660 = vst [vmem:[#allocation2 + $0x8] sm:$0xf] %v647
      %661 = vst [vmem:[#allocation2 + $0xc] sm:$0xf] %v648
      %662 = vst [vmem:[#allocation2 + $0x10] sm:$0xf] %v649
      %663 = vst [vmem:[#allocation2 + $0x14] sm:$0xf] %v650
      %664 = vst [vmem:[#allocation2 + $0x18] sm:$0xf] %v651
      %665 = vst [vmem:[#allocation2 + $0x1c] sm:$0xf] %v652
      %666 = vst [vmem:[#allocation2 + $0x20] sm:$0xf] %v653
      %667 = vst [vmem:[#allocation2 + $0x24] sm:$0xf] %v654
      %668 = vst [vmem:[#allocation2 + $0x28] sm:$0xf] %v655
      %669 = vst [vmem:[#allocation2 + $0x2c] sm:$0xf] %v656
      %670 = vst [vmem:[#allocation2 + $0x30] sm:$0x3] %v657
      %s671 = scalar_lea.vmem [#allocation2], 56
      %672 = vst [vmem:[%s671 + $0x30] sm:$0xc] 0
      %673 = vst [vmem:[%s671 + $0x34] sm:$0x3] 0
      %s674 = scalar_lea.vmem %s354, 104
      %v675 = vld [vmem:[%s674] sm:$0xff]
      %v676 = vld [vmem:[%s674 + $0x8] sm:$0xff]
      %v677 = vld [vmem:[%s674 + $0x10] sm:$0xff]
      %v678 = vld [vmem:[%s674 + $0x18] sm:$0xff]
      %v679 = vld [vmem:[%s674 + $0x20] sm:$0xff]
      %v680 = vld [vmem:[%s674 + $0x28] sm:$0xff]
      %v681 = vld [vmem:[%s674 + $0x30] sm:$0xff]
      %v682 = vld [vmem:[%s674 + $0x38] sm:$0xff]
      %v683 = vld [vmem:[%s674 + $0x40] sm:$0xff]
      %v684 = vld [vmem:[%s674 + $0x48] sm:$0xff]
      %v685 = vld [vmem:[%s674 + $0x50] sm:$0xff]
      %v686 = vld [vmem:[%s674 + $0x58] sm:$0xff]
      %v687 = vld [vmem:[%s674 + $0x60] sm:$0xf]
      %v688 = vld [vmem:[%s2] sm:$0x1]
      %v690 = vperm.slane %v688, 0
      %v692 = vmul.f32 %v675, %v690
      %v693 = vmul.f32 %v676, %v690
      %v694 = vmul.f32 %v677, %v690
      %v695 = vmul.f32 %v678, %v690
      %v696 = vmul.f32 %v679, %v690
      %v697 = vmul.f32 %v680, %v690
      %v698 = vmul.f32 %v681, %v690
      %v699 = vmul.f32 %v682, %v690
      %v700 = vmul.f32 %v683, %v690
      %v701 = vmul.f32 %v684, %v690
      %v702 = vmul.f32 %v685, %v690
      %v703 = vmul.f32 %v686, %v690
      %v704 = vmul.f32 %v687, %v690
      %v705 = vld [vmem:[%s3] sm:$0x1]
      %v707 = vperm.slane %v705, 0
      %v709 = vadd.f32 %v692, %v707
      %v710 = vadd.f32 %v693, %v707
      %v711 = vadd.f32 %v694, %v707
      %v712 = vadd.f32 %v695, %v707
      %v713 = vadd.f32 %v696, %v707
      %v714 = vadd.f32 %v697, %v707
      %v715 = vadd.f32 %v698, %v707
      %v716 = vadd.f32 %v699, %v707
      %v717 = vadd.f32 %v700, %v707
      %v718 = vadd.f32 %v701, %v707
      %v719 = vadd.f32 %v702, %v707
      %v720 = vadd.f32 %v703, %v707
      %v721 = vadd.f32 %v704, %v707
      %v722 = vmax.f32 %v709, 0.0
      %v723 = vmax.f32 %v710, 0.0
      %v724 = vmax.f32 %v711, 0.0
      %v725 = vmax.f32 %v712, 0.0
      %v726 = vmax.f32 %v713, 0.0
      %v727 = vmax.f32 %v714, 0.0
      %v728 = vmax.f32 %v715, 0.0
      %v729 = vmax.f32 %v716, 0.0
      %v730 = vmax.f32 %v717, 0.0
      %v731 = vmax.f32 %v718, 0.0
      %v732 = vmax.f32 %v719, 0.0
      %v733 = vmax.f32 %v720, 0.0
      %v734 = vmax.f32 %v721, 0.0
      %v735 = vpack.c.bf16 %v723, %v722
      %v736 = vpack.c.bf16 %v725, %v724
      %v737 = vpack.c.bf16 %v727, %v726
      %v738 = vpack.c.bf16 %v729, %v728
      %v739 = vpack.c.bf16 %v731, %v730
      %v740 = vpack.c.bf16 %v733, %v732
      %v741 = vpack.c.bf16 %v734, %v734
      %v742 = vld [vmem:[%s4] sm:$0xf]
      %v743 = vld [vmem:[%s4 + $0x4] sm:$0xf]
      %v744 = vld [vmem:[%s4 + $0x8] sm:$0xf]
      %v745 = vld [vmem:[%s4 + $0xc] sm:$0xf]
      %v746 = vld [vmem:[%s4 + $0x10] sm:$0xf]
      %v747 = vld [vmem:[%s4 + $0x14] sm:$0xf]
      %v748 = vld [vmem:[%s4 + $0x18] sm:$0xf]
      %v749 = vld [vmem:[%s4 + $0x1c] sm:$0xf]
      %v750 = vld [vmem:[%s4 + $0x20] sm:$0xf]
      %v751 = vld [vmem:[%s4 + $0x24] sm:$0xf]
      %v752 = vld [vmem:[%s4 + $0x28] sm:$0xf]
      %v753 = vld [vmem:[%s4 + $0x2c] sm:$0xf]
      %v754 = vld [vmem:[%s4 + $0x30] sm:$0xf]
      %v755 = vld [vmem:[%s4 + $0x34] sm:$0xf]
      %v756 = vld [vmem:[%s4 + $0x38] sm:$0xf]
      %v757 = vld [vmem:[%s4 + $0x3c] sm:$0xf]
      %v758 = vld [vmem:[%s5] sm:$0x1]
      %v760 = vperm.slane %v758, 0
      %v778 = vunpack.c.l.b16 %v742
      %v779 = vunpack.c.l.b16 %v743
      %v780 = vunpack.c.l.b16 %v744
      %v781 = vunpack.c.l.b16 %v745
      %v782 = vunpack.c.l.b16 %v746
      %v783 = vunpack.c.l.b16 %v747
      %v784 = vunpack.c.l.b16 %v748
      %v785 = vunpack.c.l.b16 %v749
      %v786 = vunpack.c.l.b16 %v750
      %v787 = vunpack.c.l.b16 %v751
      %v788 = vunpack.c.l.b16 %v752
      %v789 = vunpack.c.l.b16 %v753
      %v790 = vunpack.c.l.b16 %v754
      %v791 = vunpack.c.l.b16 %v755
      %v792 = vunpack.c.l.b16 %v756
      %v793 = vunpack.c.l.b16 %v757
      %v794 = vpack.c.b16 %v779, %v778
      %v795 = vpack.c.b16 %v781, %v780
      %v796 = vpack.c.b16 %v783, %v782
      %v797 = vpack.c.b16 %v785, %v784
      %v798 = vpack.c.b16 %v787, %v786
      %v799 = vpack.c.b16 %v789, %v788
      %v800 = vpack.c.b16 %v791, %v790
      %v801 = vpack.c.b16 %v793, %v792
      %810 = vmatpush.bf16.msra.mxu0 %v801
      %811 = vmatpush.bf16.msra.mxu0 %v800
      %812 = vmatpush.bf16.msra.mxu0 %v799
      %813 = vmatpush.bf16.msra.mxu0 %v798
      %814 = vmatpush.bf16.msra.mxu0 %v797
      %815 = vmatpush.bf16.msra.mxu0 %v796
      %816 = vmatpush.bf16.msra.mxu0 %v795
      %817 = vmatpush.bf16.msra.mxu0 %v794
      %818 = vmatmul.bf16.gmra.mxu0 %v735
      %v819 = vpop.f32.mrf.mxu0
      %v820 = vadd.f32 %v760, %v819
      %v821 = vpop.f32.mrf.mxu0
      %v822 = vadd.f32 %v760, %v821
      %823 = vmatmul.bf16.gmra.mxu0 %v736
      %v824 = vpop.f32.mrf.mxu0
      %v825 = vadd.f32 %v760, %v824
      %v826 = vpop.f32.mrf.mxu0
      %v827 = vadd.f32 %v760, %v826
      %828 = vmatmul.bf16.gmra.mxu0 %v737
      %v829 = vpop.f32.mrf.mxu0
      %v830 = vadd.f32 %v760, %v829
      %v831 = vpop.f32.mrf.mxu0
      %v832 = vadd.f32 %v760, %v831
      %833 = vmatmul.bf16.gmra.mxu0 %v738
      %v834 = vpop.f32.mrf.mxu0
      %v835 = vadd.f32 %v760, %v834
      %v836 = vpop.f32.mrf.mxu0
      %v837 = vadd.f32 %v760, %v836
      %838 = vmatmul.bf16.gmra.mxu0 %v739
      %v839 = vpop.f32.mrf.mxu0
      %v840 = vadd.f32 %v760, %v839
      %v841 = vpop.f32.mrf.mxu0
      %v842 = vadd.f32 %v760, %v841
      %843 = vmatmul.bf16.gmra.mxu0 %v740
      %v844 = vpop.f32.mrf.mxu0
      %v845 = vadd.f32 %v760, %v844
      %v846 = vpop.f32.mrf.mxu0
      %v847 = vadd.f32 %v760, %v846
      %848 = vmatmul.bf16.gmra.mxu0 %v741
      %v849 = vpop.f32.mrf.mxu0
      %v850 = vadd.f32 %v760, %v849
      %v851 = vpop.f32.mrf.mxu0
      %852 = vdwg.mxu0
      %v853 = vmax.f32 %v820, 0.0
      %v854 = vmax.f32 %v822, 0.0
      %v855 = vmax.f32 %v825, 0.0
      %v856 = vmax.f32 %v827, 0.0
      %v857 = vmax.f32 %v830, 0.0
      %v858 = vmax.f32 %v832, 0.0
      %v859 = vmax.f32 %v835, 0.0
      %v860 = vmax.f32 %v837, 0.0
      %v861 = vmax.f32 %v840, 0.0
      %v862 = vmax.f32 %v842, 0.0
      %v863 = vmax.f32 %v845, 0.0
      %v864 = vmax.f32 %v847, 0.0
      %v865 = vmax.f32 %v850, 0.0
      %s866 = scalar_lea.vmem %s1, 104
      %v867 = vld [vmem:[%s866] sm:$0xff]
      %v868 = vld [vmem:[%s866 + $0x8] sm:$0xff]
      %v869 = vld [vmem:[%s866 + $0x10] sm:$0xff]
      %v870 = vld [vmem:[%s866 + $0x18] sm:$0xff]
      %v871 = vld [vmem:[%s866 + $0x20] sm:$0xff]
      %v872 = vld [vmem:[%s866 + $0x28] sm:$0xff]
      %v873 = vld [vmem:[%s866 + $0x30] sm:$0xff]
      %v874 = vld [vmem:[%s866 + $0x38] sm:$0xff]
      %v875 = vld [vmem:[%s866 + $0x40] sm:$0xff]
      %v876 = vld [vmem:[%s866 + $0x48] sm:$0xff]
      %v877 = vld [vmem:[%s866 + $0x50] sm:$0xff]
      %v878 = vld [vmem:[%s866 + $0x58] sm:$0xff]
      %v879 = vld [vmem:[%s866 + $0x60] sm:$0xf]
      %881 = vset.pattern.permute.xlu0 0
      %882 = vperm.xlu0 %881, %v867
      %v883 = vpop.permute.xlu0 %882
      %886 = vset.pattern.permute.xlu0 0
      %887 = vperm.xlu0 %886, %v868
      %v888 = vpop.permute.xlu0 %887
      %891 = vset.pattern.permute.xlu0 0
      %892 = vperm.xlu0 %891, %v869
      %v893 = vpop.permute.xlu0 %892
      %896 = vset.pattern.permute.xlu0 0
      %897 = vperm.xlu0 %896, %v870
      %v898 = vpop.permute.xlu0 %897
      %901 = vset.pattern.permute.xlu0 0
      %902 = vperm.xlu0 %901, %v871
      %v903 = vpop.permute.xlu0 %902
      %906 = vset.pattern.permute.xlu0 0
      %907 = vperm.xlu0 %906, %v872
      %v908 = vpop.permute.xlu0 %907
      %911 = vset.pattern.permute.xlu0 0
      %912 = vperm.xlu0 %911, %v873
      %v913 = vpop.permute.xlu0 %912
      %916 = vset.pattern.permute.xlu0 0
      %917 = vperm.xlu0 %916, %v874
      %v918 = vpop.permute.xlu0 %917
      %921 = vset.pattern.permute.xlu0 0
      %922 = vperm.xlu0 %921, %v875
      %v923 = vpop.permute.xlu0 %922
      %926 = vset.pattern.permute.xlu0 0
      %927 = vperm.xlu0 %926, %v876
      %v928 = vpop.permute.xlu0 %927
      %931 = vset.pattern.permute.xlu0 0
      %932 = vperm.xlu0 %931, %v877
      %v933 = vpop.permute.xlu0 %932
      %936 = vset.pattern.permute.xlu0 0
      %937 = vperm.xlu0 %936, %v878
      %v938 = vpop.permute.xlu0 %937
      %941 = vset.pattern.permute.xlu0 0
      %942 = vperm.xlu0 %941, %v879
      %v943 = vpop.permute.xlu0 %942
      %v945 = vmul.f32 %v853, %v883
      %v946 = vmul.f32 %v854, %v888
      %v947 = vmul.f32 %v855, %v893
      %v948 = vmul.f32 %v856, %v898
      %v949 = vmul.f32 %v857, %v903
      %v950 = vmul.f32 %v858, %v908
      %v951 = vmul.f32 %v859, %v913
      %v952 = vmul.f32 %v860, %v918
      %v953 = vmul.f32 %v861, %v923
      %v954 = vmul.f32 %v862, %v928
      %v955 = vmul.f32 %v863, %v933
      %v956 = vmul.f32 %v864, %v938
      %v957 = vmul.f32 %v865, %v943
      %v958 = vpack.c.bf16 %v945, %v945
      %v959 = vpack.c.bf16 %v946, %v946
      %v960 = vpack.c.bf16 %v947, %v947
      %v961 = vpack.c.bf16 %v948, %v948
      %v962 = vpack.c.bf16 %v949, %v949
      %v963 = vpack.c.bf16 %v950, %v950
      %v964 = vpack.c.bf16 %v951, %v951
      %v965 = vpack.c.bf16 %v952, %v952
      %v966 = vpack.c.bf16 %v953, %v953
      %v967 = vpack.c.bf16 %v954, %v954
      %v968 = vpack.c.bf16 %v955, %v955
      %v969 = vpack.c.bf16 %v956, %v956
      %v970 = vpack.c.bf16 %v957, %v957
      %971 = vst [vmem:[%s671] sm:$0xf] %v958
      %972 = vst [vmem:[%s671 + $0x4] sm:$0xf] %v959
      %973 = vst [vmem:[%s671 + $0x8] sm:$0xf] %v960
      %974 = vst [vmem:[%s671 + $0xc] sm:$0xf] %v961
      %975 = vst [vmem:[%s671 + $0x10] sm:$0xf] %v962
      %976 = vst [vmem:[%s671 + $0x14] sm:$0xf] %v963
      %977 = vst [vmem:[%s671 + $0x18] sm:$0xf] %v964
      %978 = vst [vmem:[%s671 + $0x1c] sm:$0xf] %v965
      %979 = vst [vmem:[%s671 + $0x20] sm:$0xf] %v966
      %980 = vst [vmem:[%s671 + $0x24] sm:$0xf] %v967
      %981 = vst [vmem:[%s671 + $0x28] sm:$0xf] %v968
      %982 = vst [vmem:[%s671 + $0x2c] sm:$0xf] %v969
      %983 = vst [vmem:[%s671 + $0x30] sm:$0x3] %v970
      %s984 = scalar_lea.vmem [#allocation2], 112
      %985 = vst [vmem:[%s984 + $0x30] sm:$0xc] 0
      %986 = vst [vmem:[%s984 + $0x34] sm:$0x3] 0
      %s987 = scalar_lea.vmem %s354, 208
      %v988 = vld [vmem:[%s987] sm:$0xff]
      %v989 = vld [vmem:[%s987 + $0x8] sm:$0xff]
      %v990 = vld [vmem:[%s987 + $0x10] sm:$0xff]
      %v991 = vld [vmem:[%s987 + $0x18] sm:$0xff]
      %v992 = vld [vmem:[%s987 + $0x20] sm:$0xff]
      %v993 = vld [vmem:[%s987 + $0x28] sm:$0xff]
      %v994 = vld [vmem:[%s987 + $0x30] sm:$0xff]
      %v995 = vld [vmem:[%s987 + $0x38] sm:$0xff]
      %v996 = vld [vmem:[%s987 + $0x40] sm:$0xff]
      %v997 = vld [vmem:[%s987 + $0x48] sm:$0xff]
      %v998 = vld [vmem:[%s987 + $0x50] sm:$0xff]
      %v999 = vld [vmem:[%s987 + $0x58] sm:$0xff]
      %v1000 = vld [vmem:[%s987 + $0x60] sm:$0xf]
      %v1001 = vld [vmem:[%s2] sm:$0x1]
      %v1003 = vperm.slane %v1001, 0
      %v1005 = vmul.f32 %v988, %v1003
      %v1006 = vmul.f32 %v989, %v1003
      %v1007 = vmul.f32 %v990, %v1003
      %v1008 = vmul.f32 %v991, %v1003
      %v1009 = vmul.f32 %v992, %v1003
      %v1010 = vmul.f32 %v993, %v1003
      %v1011 = vmul.f32 %v994, %v1003
      %v1012 = vmul.f32 %v995, %v1003
      %v1013 = vmul.f32 %v996, %v1003
      %v1014 = vmul.f32 %v997, %v1003
      %v1015 = vmul.f32 %v998, %v1003
      %v1016 = vmul.f32 %v999, %v1003
      %v1017 = vmul.f32 %v1000, %v1003
      %v1018 = vld [vmem:[%s3] sm:$0x1]
      %v1020 = vperm.slane %v1018, 0
      %v1022 = vadd.f32 %v1005, %v1020
      %v1023 = vadd.f32 %v1006, %v1020
      %v1024 = vadd.f32 %v1007, %v1020
      %v1025 = vadd.f32 %v1008, %v1020
      %v1026 = vadd.f32 %v1009, %v1020
      %v1027 = vadd.f32 %v1010, %v1020
      %v1028 = vadd.f32 %v1011, %v1020
      %v1029 = vadd.f32 %v1012, %v1020
      %v1030 = vadd.f32 %v1013, %v1020
      %v1031 = vadd.f32 %v1014, %v1020
      %v1032 = vadd.f32 %v1015, %v1020
      %v1033 = vadd.f32 %v1016, %v1020
      %v1034 = vadd.f32 %v1017, %v1020
      %v1035 = vmax.f32 %v1022, 0.0
      %v1036 = vmax.f32 %v1023, 0.0
      %v1037 = vmax.f32 %v1024, 0.0
      %v1038 = vmax.f32 %v1025, 0.0
      %v1039 = vmax.f32 %v1026, 0.0
      %v1040 = vmax.f32 %v1027, 0.0
      %v1041 = vmax.f32 %v1028, 0.0
      %v1042 = vmax.f32 %v1029, 0.0
      %v1043 = vmax.f32 %v1030, 0.0
      %v1044 = vmax.f32 %v1031, 0.0
      %v1045 = vmax.f32 %v1032, 0.0
      %v1046 = vmax.f32 %v1033, 0.0
      %v1047 = vmax.f32 %v1034, 0.0
      %v1048 = vpack.c.bf16 %v1036, %v1035
      %v1049 = vpack.c.bf16 %v1038, %v1037
      %v1050 = vpack.c.bf16 %v1040, %v1039
      %v1051 = vpack.c.bf16 %v1042, %v1041
      %v1052 = vpack.c.bf16 %v1044, %v1043
      %v1053 = vpack.c.bf16 %v1046, %v1045
      %v1054 = vpack.c.bf16 %v1047, %v1047
      %v1055 = vld [vmem:[%s4] sm:$0xf]
      %v1056 = vld [vmem:[%s4 + $0x4] sm:$0xf]
      %v1057 = vld [vmem:[%s4 + $0x8] sm:$0xf]
      %v1058 = vld [vmem:[%s4 + $0xc] sm:$0xf]
      %v1059 = vld [vmem:[%s4 + $0x10] sm:$0xf]
      %v1060 = vld [vmem:[%s4 + $0x14] sm:$0xf]
      %v1061 = vld [vmem:[%s4 + $0x18] sm:$0xf]
      %v1062 = vld [vmem:[%s4 + $0x1c] sm:$0xf]
      %v1063 = vld [vmem:[%s4 + $0x20] sm:$0xf]
      %v1064 = vld [vmem:[%s4 + $0x24] sm:$0xf]
      %v1065 = vld [vmem:[%s4 + $0x28] sm:$0xf]
      %v1066 = vld [vmem:[%s4 + $0x2c] sm:$0xf]
      %v1067 = vld [vmem:[%s4 + $0x30] sm:$0xf]
      %v1068 = vld [vmem:[%s4 + $0x34] sm:$0xf]
      %v1069 = vld [vmem:[%s4 + $0x38] sm:$0xf]
      %v1070 = vld [vmem:[%s4 + $0x3c] sm:$0xf]
      %v1071 = vld [vmem:[%s5] sm:$0x1]
      %v1073 = vperm.slane %v1071, 0
      %v1091 = vunpack.c.l.b16 %v1055
      %v1092 = vunpack.c.l.b16 %v1056
      %v1093 = vunpack.c.l.b16 %v1057
      %v1094 = vunpack.c.l.b16 %v1058
      %v1095 = vunpack.c.l.b16 %v1059
      %v1096 = vunpack.c.l.b16 %v1060
      %v1097 = vunpack.c.l.b16 %v1061
      %v1098 = vunpack.c.l.b16 %v1062
      %v1099 = vunpack.c.l.b16 %v1063
      %v1100 = vunpack.c.l.b16 %v1064
      %v1101 = vunpack.c.l.b16 %v1065
      %v1102 = vunpack.c.l.b16 %v1066
      %v1103 = vunpack.c.l.b16 %v1067
      %v1104 = vunpack.c.l.b16 %v1068
      %v1105 = vunpack.c.l.b16 %v1069
      %v1106 = vunpack.c.l.b16 %v1070
      %v1107 = vpack.c.b16 %v1092, %v1091
      %v1108 = vpack.c.b16 %v1094, %v1093
      %v1109 = vpack.c.b16 %v1096, %v1095
      %v1110 = vpack.c.b16 %v1098, %v1097
      %v1111 = vpack.c.b16 %v1100, %v1099
      %v1112 = vpack.c.b16 %v1102, %v1101
      %v1113 = vpack.c.b16 %v1104, %v1103
      %v1114 = vpack.c.b16 %v1106, %v1105
      %1123 = vmatpush.bf16.msra.mxu0 %v1114
      %1124 = vmatpush.bf16.msra.mxu0 %v1113
      %1125 = vmatpush.bf16.msra.mxu0 %v1112
      %1126 = vmatpush.bf16.msra.mxu0 %v1111
      %1127 = vmatpush.bf16.msra.mxu0 %v1110
      %1128 = vmatpush.bf16.msra.mxu0 %v1109
      %1129 = vmatpush.bf16.msra.mxu0 %v1108
      %1130 = vmatpush.bf16.msra.mxu0 %v1107
      %1131 = vmatmul.bf16.gmra.mxu0 %v1048
      %v1132 = vpop.f32.mrf.mxu0
      %v1133 = vadd.f32 %v1073, %v1132
      %v1134 = vpop.f32.mrf.mxu0
      %v1135 = vadd.f32 %v1073, %v1134
      %1136 = vmatmul.bf16.gmra.mxu0 %v1049
      %v1137 = vpop.f32.mrf.mxu0
      %v1138 = vadd.f32 %v1073, %v1137
      %v1139 = vpop.f32.mrf.mxu0
      %v1140 = vadd.f32 %v1073, %v1139
      %1141 = vmatmul.bf16.gmra.mxu0 %v1050
      %v1142 = vpop.f32.mrf.mxu0
      %v1143 = vadd.f32 %v1073, %v1142
      %v1144 = vpop.f32.mrf.mxu0
      %v1145 = vadd.f32 %v1073, %v1144
      %1146 = vmatmul.bf16.gmra.mxu0 %v1051
      %v1147 = vpop.f32.mrf.mxu0
      %v1148 = vadd.f32 %v1073, %v1147
      %v1149 = vpop.f32.mrf.mxu0
      %v1150 = vadd.f32 %v1073, %v1149
      %1151 = vmatmul.bf16.gmra.mxu0 %v1052
      %v1152 = vpop.f32.mrf.mxu0
      %v1153 = vadd.f32 %v1073, %v1152
      %v1154 = vpop.f32.mrf.mxu0
      %v1155 = vadd.f32 %v1073, %v1154
      %1156 = vmatmul.bf16.gmra.mxu0 %v1053
      %v1157 = vpop.f32.mrf.mxu0
      %v1158 = vadd.f32 %v1073, %v1157
      %v1159 = vpop.f32.mrf.mxu0
      %v1160 = vadd.f32 %v1073, %v1159
      %1161 = vmatmul.bf16.gmra.mxu0 %v1054
      %v1162 = vpop.f32.mrf.mxu0
      %v1163 = vadd.f32 %v1073, %v1162
      %v1164 = vpop.f32.mrf.mxu0
      %1165 = vdwg.mxu0
      %v1166 = vmax.f32 %v1133, 0.0
      %v1167 = vmax.f32 %v1135, 0.0
      %v1168 = vmax.f32 %v1138, 0.0
      %v1169 = vmax.f32 %v1140, 0.0
      %v1170 = vmax.f32 %v1143, 0.0
      %v1171 = vmax.f32 %v1145, 0.0
      %v1172 = vmax.f32 %v1148, 0.0
      %v1173 = vmax.f32 %v1150, 0.0
      %v1174 = vmax.f32 %v1153, 0.0
      %v1175 = vmax.f32 %v1155, 0.0
      %v1176 = vmax.f32 %v1158, 0.0
      %v1177 = vmax.f32 %v1160, 0.0
      %v1178 = vmax.f32 %v1163, 0.0
      %s1179 = scalar_lea.vmem %s1, 208
      %v1180 = vld [vmem:[%s1179] sm:$0xff]
      %v1181 = vld [vmem:[%s1179 + $0x8] sm:$0xff]
      %v1182 = vld [vmem:[%s1179 + $0x10] sm:$0xff]
      %v1183 = vld [vmem:[%s1179 + $0x18] sm:$0xff]
      %v1184 = vld [vmem:[%s1179 + $0x20] sm:$0xff]
      %v1185 = vld [vmem:[%s1179 + $0x28] sm:$0xff]
      %v1186 = vld [vmem:[%s1179 + $0x30] sm:$0xff]
      %v1187 = vld [vmem:[%s1179 + $0x38] sm:$0xff]
      %v1188 = vld [vmem:[%s1179 + $0x40] sm:$0xff]
      %v1189 = vld [vmem:[%s1179 + $0x48] sm:$0xff]
      %v1190 = vld [vmem:[%s1179 + $0x50] sm:$0xff]
      %v1191 = vld [vmem:[%s1179 + $0x58] sm:$0xff]
      %v1192 = vld [vmem:[%s1179 + $0x60] sm:$0xf]
      %1194 = vset.pattern.permute.xlu0 0
      %1195 = vperm.xlu0 %1194, %v1180
      %v1196 = vpop.permute.xlu0 %1195
      %1199 = vset.pattern.permute.xlu0 0
      %1200 = vperm.xlu0 %1199, %v1181
      %v1201 = vpop.permute.xlu0 %1200
      %1204 = vset.pattern.permute.xlu0 0
      %1205 = vperm.xlu0 %1204, %v1182
      %v1206 = vpop.permute.xlu0 %1205
      %1209 = vset.pattern.permute.xlu0 0
      %1210 = vperm.xlu0 %1209, %v1183
      %v1211 = vpop.permute.xlu0 %1210
      %1214 = vset.pattern.permute.xlu0 0
      %1215 = vperm.xlu0 %1214, %v1184
      %v1216 = vpop.permute.xlu0 %1215
      %1219 = vset.pattern.permute.xlu0 0
      %1220 = vperm.xlu0 %1219, %v1185
      %v1221 = vpop.permute.xlu0 %1220
      %1224 = vset.pattern.permute.xlu0 0
      %1225 = vperm.xlu0 %1224, %v1186
      %v1226 = vpop.permute.xlu0 %1225
      %1229 = vset.pattern.permute.xlu0 0
      %1230 = vperm.xlu0 %1229, %v1187
      %v1231 = vpop.permute.xlu0 %1230
      %1234 = vset.pattern.permute.xlu0 0
      %1235 = vperm.xlu0 %1234, %v1188
      %v1236 = vpop.permute.xlu0 %1235
      %1239 = vset.pattern.permute.xlu0 0
      %1240 = vperm.xlu0 %1239, %v1189
      %v1241 = vpop.permute.xlu0 %1240
      %1244 = vset.pattern.permute.xlu0 0
      %1245 = vperm.xlu0 %1244, %v1190
      %v1246 = vpop.permute.xlu0 %1245
      %1249 = vset.pattern.permute.xlu0 0
      %1250 = vperm.xlu0 %1249, %v1191
      %v1251 = vpop.permute.xlu0 %1250
      %1254 = vset.pattern.permute.xlu0 0
      %1255 = vperm.xlu0 %1254, %v1192
      %v1256 = vpop.permute.xlu0 %1255
      %v1258 = vmul.f32 %v1166, %v1196
      %v1259 = vmul.f32 %v1167, %v1201
      %v1260 = vmul.f32 %v1168, %v1206
      %v1261 = vmul.f32 %v1169, %v1211
      %v1262 = vmul.f32 %v1170, %v1216
      %v1263 = vmul.f32 %v1171, %v1221
      %v1264 = vmul.f32 %v1172, %v1226
      %v1265 = vmul.f32 %v1173, %v1231
      %v1266 = vmul.f32 %v1174, %v1236
      %v1267 = vmul.f32 %v1175, %v1241
      %v1268 = vmul.f32 %v1176, %v1246
      %v1269 = vmul.f32 %v1177, %v1251
      %v1270 = vmul.f32 %v1178, %v1256
      %v1271 = vpack.c.bf16 %v1258, %v1258
      %v1272 = vpack.c.bf16 %v1259, %v1259
      %v1273 = vpack.c.bf16 %v1260, %v1260
      %v1274 = vpack.c.bf16 %v1261, %v1261
      %v1275 = vpack.c.bf16 %v1262, %v1262
      %v1276 = vpack.c.bf16 %v1263, %v1263
      %v1277 = vpack.c.bf16 %v1264, %v1264
      %v1278 = vpack.c.bf16 %v1265, %v1265
      %v1279 = vpack.c.bf16 %v1266, %v1266
      %v1280 = vpack.c.bf16 %v1267, %v1267
      %v1281 = vpack.c.bf16 %v1268, %v1268
      %v1282 = vpack.c.bf16 %v1269, %v1269
      %v1283 = vpack.c.bf16 %v1270, %v1270
      %1284 = vst [vmem:[%s984] sm:$0xf] %v1271
      %1285 = vst [vmem:[%s984 + $0x4] sm:$0xf] %v1272
      %1286 = vst [vmem:[%s984 + $0x8] sm:$0xf] %v1273
      %1287 = vst [vmem:[%s984 + $0xc] sm:$0xf] %v1274
      %1288 = vst [vmem:[%s984 + $0x10] sm:$0xf] %v1275
      %1289 = vst [vmem:[%s984 + $0x14] sm:$0xf] %v1276
      %1290 = vst [vmem:[%s984 + $0x18] sm:$0xf] %v1277
      %1291 = vst [vmem:[%s984 + $0x1c] sm:$0xf] %v1278
      %1292 = vst [vmem:[%s984 + $0x20] sm:$0xf] %v1279
      %1293 = vst [vmem:[%s984 + $0x24] sm:$0xf] %v1280
      %1294 = vst [vmem:[%s984 + $0x28] sm:$0xf] %v1281
      %1295 = vst [vmem:[%s984 + $0x2c] sm:$0xf] %v1282
      %1296 = vst [vmem:[%s984 + $0x30] sm:$0x3] %v1283
      %s1297 = scalar_lea.vmem [#allocation2], 168
      %1298 = vst [vmem:[%s1297 + $0x30] sm:$0xc] 0
      %1299 = vst [vmem:[%s1297 + $0x34] sm:$0x3] 0
      %s1300 = scalar_lea.vmem %s354, 312
      %v1301 = vld [vmem:[%s1300] sm:$0xff]
      %v1302 = vld [vmem:[%s1300 + $0x8] sm:$0xff]
      %v1303 = vld [vmem:[%s1300 + $0x10] sm:$0xff]
      %v1304 = vld [vmem:[%s1300 + $0x18] sm:$0xff]
      %v1305 = vld [vmem:[%s1300 + $0x20] sm:$0xff]
      %v1306 = vld [vmem:[%s1300 + $0x28] sm:$0xff]
      %v1307 = vld [vmem:[%s1300 + $0x30] sm:$0xff]
      %v1308 = vld [vmem:[%s1300 + $0x38] sm:$0xff]
      %v1309 = vld [vmem:[%s1300 + $0x40] sm:$0xff]
      %v1310 = vld [vmem:[%s1300 + $0x48] sm:$0xff]
      %v1311 = vld [vmem:[%s1300 + $0x50] sm:$0xff]
      %v1312 = vld [vmem:[%s1300 + $0x58] sm:$0xff]
      %v1313 = vld [vmem:[%s1300 + $0x60] sm:$0xf]
      %v1314 = vld [vmem:[%s2] sm:$0x1]
      %v1316 = vperm.slane %v1314, 0
      %v1318 = vmul.f32 %v1301, %v1316
      %v1319 = vmul.f32 %v1302, %v1316
      %v1320 = vmul.f32 %v1303, %v1316
      %v1321 = vmul.f32 %v1304, %v1316
      %v1322 = vmul.f32 %v1305, %v1316
      %v1323 = vmul.f32 %v1306, %v1316
      %v1324 = vmul.f32 %v1307, %v1316
      %v1325 = vmul.f32 %v1308, %v1316
      %v1326 = vmul.f32 %v1309, %v1316
      %v1327 = vmul.f32 %v1310, %v1316
      %v1328 = vmul.f32 %v1311, %v1316
      %v1329 = vmul.f32 %v1312, %v1316
      %v1330 = vmul.f32 %v1313, %v1316
      %v1331 = vld [vmem:[%s3] sm:$0x1]
      %v1333 = vperm.slane %v1331, 0
      %v1335 = vadd.f32 %v1318, %v1333
      %v1336 = vadd.f32 %v1319, %v1333
      %v1337 = vadd.f32 %v1320, %v1333
      %v1338 = vadd.f32 %v1321, %v1333
      %v1339 = vadd.f32 %v1322, %v1333
      %v1340 = vadd.f32 %v1323, %v1333
      %v1341 = vadd.f32 %v1324, %v1333
      %v1342 = vadd.f32 %v1325, %v1333
      %v1343 = vadd.f32 %v1326, %v1333
      %v1344 = vadd.f32 %v1327, %v1333
      %v1345 = vadd.f32 %v1328, %v1333
      %v1346 = vadd.f32 %v1329, %v1333
      %v1347 = vadd.f32 %v1330, %v1333
      %v1348 = vmax.f32 %v1335, 0.0
      %v1349 = vmax.f32 %v1336, 0.0
      %v1350 = vmax.f32 %v1337, 0.0
      %v1351 = vmax.f32 %v1338, 0.0
      %v1352 = vmax.f32 %v1339, 0.0
      %v1353 = vmax.f32 %v1340, 0.0
      %v1354 = vmax.f32 %v1341, 0.0
      %v1355 = vmax.f32 %v1342, 0.0
      %v1356 = vmax.f32 %v1343, 0.0
      %v1357 = vmax.f32 %v1344, 0.0
      %v1358 = vmax.f32 %v1345, 0.0
      %v1359 = vmax.f32 %v1346, 0.0
      %v1360 = vmax.f32 %v1347, 0.0
      %v1361 = vpack.c.bf16 %v1349, %v1348
      %v1362 = vpack.c.bf16 %v1351, %v1350
      %v1363 = vpack.c.bf16 %v1353, %v1352
      %v1364 = vpack.c.bf16 %v1355, %v1354
      %v1365 = vpack.c.bf16 %v1357, %v1356
      %v1366 = vpack.c.bf16 %v1359, %v1358
      %v1367 = vpack.c.bf16 %v1360, %v1360
      %v1368 = vld [vmem:[%s4] sm:$0xf]
      %v1369 = vld [vmem:[%s4 + $0x4] sm:$0xf]
      %v1370 = vld [vmem:[%s4 + $0x8] sm:$0xf]
      %v1371 = vld [vmem:[%s4 + $0xc] sm:$0xf]
      %v1372 = vld [vmem:[%s4 + $0x10] sm:$0xf]
      %v1373 = vld [vmem:[%s4 + $0x14] sm:$0xf]
      %v1374 = vld [vmem:[%s4 + $0x18] sm:$0xf]
      %v1375 = vld [vmem:[%s4 + $0x1c] sm:$0xf]
      %v1376 = vld [vmem:[%s4 + $0x20] sm:$0xf]
      %v1377 = vld [vmem:[%s4 + $0x24] sm:$0xf]
      %v1378 = vld [vmem:[%s4 + $0x28] sm:$0xf]
      %v1379 = vld [vmem:[%s4 + $0x2c] sm:$0xf]
      %v1380 = vld [vmem:[%s4 + $0x30] sm:$0xf]
      %v1381 = vld [vmem:[%s4 + $0x34] sm:$0xf]
      %v1382 = vld [vmem:[%s4 + $0x38] sm:$0xf]
      %v1383 = vld [vmem:[%s4 + $0x3c] sm:$0xf]
      %v1384 = vld [vmem:[%s5] sm:$0x1]
      %v1386 = vperm.slane %v1384, 0
      %v1404 = vunpack.c.l.b16 %v1368
      %v1405 = vunpack.c.l.b16 %v1369
      %v1406 = vunpack.c.l.b16 %v1370
      %v1407 = vunpack.c.l.b16 %v1371
      %v1408 = vunpack.c.l.b16 %v1372
      %v1409 = vunpack.c.l.b16 %v1373
      %v1410 = vunpack.c.l.b16 %v1374
      %v1411 = vunpack.c.l.b16 %v1375
      %v1412 = vunpack.c.l.b16 %v1376
      %v1413 = vunpack.c.l.b16 %v1377
      %v1414 = vunpack.c.l.b16 %v1378
      %v1415 = vunpack.c.l.b16 %v1379
      %v1416 = vunpack.c.l.b16 %v1380
      %v1417 = vunpack.c.l.b16 %v1381
      %v1418 = vunpack.c.l.b16 %v1382
      %v1419 = vunpack.c.l.b16 %v1383
      %v1420 = vpack.c.b16 %v1405, %v1404
      %v1421 = vpack.c.b16 %v1407, %v1406
      %v1422 = vpack.c.b16 %v1409, %v1408
      %v1423 = vpack.c.b16 %v1411, %v1410
      %v1424 = vpack.c.b16 %v1413, %v1412
      %v1425 = vpack.c.b16 %v1415, %v1414
      %v1426 = vpack.c.b16 %v1417, %v1416
      %v1427 = vpack.c.b16 %v1419, %v1418
      %1436 = vmatpush.bf16.msra.mxu0 %v1427
      %1437 = vmatpush.bf16.msra.mxu0 %v1426
      %1438 = vmatpush.bf16.msra.mxu0 %v1425
      %1439 = vmatpush.bf16.msra.mxu0 %v1424
      %1440 = vmatpush.bf16.msra.mxu0 %v1423
      %1441 = vmatpush.bf16.msra.mxu0 %v1422
      %1442 = vmatpush.bf16.msra.mxu0 %v1421
      %1443 = vmatpush.bf16.msra.mxu0 %v1420
      %1444 = vmatmul.bf16.gmra.mxu0 %v1361
      %v1445 = vpop.f32.mrf.mxu0
      %v1446 = vadd.f32 %v1386, %v1445
      %v1447 = vpop.f32.mrf.mxu0
      %v1448 = vadd.f32 %v1386, %v1447
      %1449 = vmatmul.bf16.gmra.mxu0 %v1362
      %v1450 = vpop.f32.mrf.mxu0
      %v1451 = vadd.f32 %v1386, %v1450
      %v1452 = vpop.f32.mrf.mxu0
      %v1453 = vadd.f32 %v1386, %v1452
      %1454 = vmatmul.bf16.gmra.mxu0 %v1363
      %v1455 = vpop.f32.mrf.mxu0
      %v1456 = vadd.f32 %v1386, %v1455
      %v1457 = vpop.f32.mrf.mxu0
      %v1458 = vadd.f32 %v1386, %v1457
      %1459 = vmatmul.bf16.gmra.mxu0 %v1364
      %v1460 = vpop.f32.mrf.mxu0
      %v1461 = vadd.f32 %v1386, %v1460
      %v1462 = vpop.f32.mrf.mxu0
      %v1463 = vadd.f32 %v1386, %v1462
      %1464 = vmatmul.bf16.gmra.mxu0 %v1365
      %v1465 = vpop.f32.mrf.mxu0
      %v1466 = vadd.f32 %v1386, %v1465
      %v1467 = vpop.f32.mrf.mxu0
      %v1468 = vadd.f32 %v1386, %v1467
      %1469 = vmatmul.bf16.gmra.mxu0 %v1366
      %v1470 = vpop.f32.mrf.mxu0
      %v1471 = vadd.f32 %v1386, %v1470
      %v1472 = vpop.f32.mrf.mxu0
      %v1473 = vadd.f32 %v1386, %v1472
      %1474 = vmatmul.bf16.gmra.mxu0 %v1367
      %v1475 = vpop.f32.mrf.mxu0
      %v1476 = vadd.f32 %v1386, %v1475
      %v1477 = vpop.f32.mrf.mxu0
      %1478 = vdwg.mxu0
      %v1479 = vmax.f32 %v1446, 0.0
      %v1480 = vmax.f32 %v1448, 0.0
      %v1481 = vmax.f32 %v1451, 0.0
      %v1482 = vmax.f32 %v1453, 0.0
      %v1483 = vmax.f32 %v1456, 0.0
      %v1484 = vmax.f32 %v1458, 0.0
      %v1485 = vmax.f32 %v1461, 0.0
      %v1486 = vmax.f32 %v1463, 0.0
      %v1487 = vmax.f32 %v1466, 0.0
      %v1488 = vmax.f32 %v1468, 0.0
      %v1489 = vmax.f32 %v1471, 0.0
      %v1490 = vmax.f32 %v1473, 0.0
      %v1491 = vmax.f32 %v1476, 0.0
      %s1492 = scalar_lea.vmem %s1, 312
      %v1493 = vld [vmem:[%s1492] sm:$0xff]
      %v1494 = vld [vmem:[%s1492 + $0x8] sm:$0xff]
      %v1495 = vld [vmem:[%s1492 + $0x10] sm:$0xff]
      %v1496 = vld [vmem:[%s1492 + $0x18] sm:$0xff]
      %v1497 = vld [vmem:[%s1492 + $0x20] sm:$0xff]
      %v1498 = vld [vmem:[%s1492 + $0x28] sm:$0xff]
      %v1499 = vld [vmem:[%s1492 + $0x30] sm:$0xff]
      %v1500 = vld [vmem:[%s1492 + $0x38] sm:$0xff]
      %v1501 = vld [vmem:[%s1492 + $0x40] sm:$0xff]
      %v1502 = vld [vmem:[%s1492 + $0x48] sm:$0xff]
      %v1503 = vld [vmem:[%s1492 + $0x50] sm:$0xff]
      %v1504 = vld [vmem:[%s1492 + $0x58] sm:$0xff]
      %v1505 = vld [vmem:[%s1492 + $0x60] sm:$0xf]
      %1507 = vset.pattern.permute.xlu0 0
      %1508 = vperm.xlu0 %1507, %v1493
      %v1509 = vpop.permute.xlu0 %1508
      %1512 = vset.pattern.permute.xlu0 0
      %1513 = vperm.xlu0 %1512, %v1494
      %v1514 = vpop.permute.xlu0 %1513
      %1517 = vset.pattern.permute.xlu0 0
      %1518 = vperm.xlu0 %1517, %v1495
      %v1519 = vpop.permute.xlu0 %1518
      %1522 = vset.pattern.permute.xlu0 0
      %1523 = vperm.xlu0 %1522, %v1496
      %v1524 = vpop.permute.xlu0 %1523
      %1527 = vset.pattern.permute.xlu0 0
      %1528 = vperm.xlu0 %1527, %v1497
      %v1529 = vpop.permute.xlu0 %1528
      %1532 = vset.pattern.permute.xlu0 0
      %1533 = vperm.xlu0 %1532, %v1498
      %v1534 = vpop.permute.xlu0 %1533
      %1537 = vset.pattern.permute.xlu0 0
      %1538 = vperm.xlu0 %1537, %v1499
      %v1539 = vpop.permute.xlu0 %1538
      %1542 = vset.pattern.permute.xlu0 0
      %1543 = vperm.xlu0 %1542, %v1500
      %v1544 = vpop.permute.xlu0 %1543
      %1547 = vset.pattern.permute.xlu0 0
      %1548 = vperm.xlu0 %1547, %v1501
      %v1549 = vpop.permute.xlu0 %1548
      %1552 = vset.pattern.permute.xlu0 0
      %1553 = vperm.xlu0 %1552, %v1502
      %v1554 = vpop.permute.xlu0 %1553
      %1557 = vset.pattern.permute.xlu0 0
      %1558 = vperm.xlu0 %1557, %v1503
      %v1559 = vpop.permute.xlu0 %1558
      %1562 = vset.pattern.permute.xlu0 0
      %1563 = vperm.xlu0 %1562, %v1504
      %v1564 = vpop.permute.xlu0 %1563
      %1567 = vset.pattern.permute.xlu0 0
      %1568 = vperm.xlu0 %1567, %v1505
      %v1569 = vpop.permute.xlu0 %1568
      %v1571 = vmul.f32 %v1479, %v1509
      %v1572 = vmul.f32 %v1480, %v1514
      %v1573 = vmul.f32 %v1481, %v1519
      %v1574 = vmul.f32 %v1482, %v1524
      %v1575 = vmul.f32 %v1483, %v1529
      %v1576 = vmul.f32 %v1484, %v1534
      %v1577 = vmul.f32 %v1485, %v1539
      %v1578 = vmul.f32 %v1486, %v1544
      %v1579 = vmul.f32 %v1487, %v1549
      %v1580 = vmul.f32 %v1488, %v1554
      %v1581 = vmul.f32 %v1489, %v1559
      %v1582 = vmul.f32 %v1490, %v1564
      %v1583 = vmul.f32 %v1491, %v1569
      %v1584 = vpack.c.bf16 %v1571, %v1571
      %v1585 = vpack.c.bf16 %v1572, %v1572
      %v1586 = vpack.c.bf16 %v1573, %v1573
      %v1587 = vpack.c.bf16 %v1574, %v1574
      %v1588 = vpack.c.bf16 %v1575, %v1575
      %v1589 = vpack.c.bf16 %v1576, %v1576
      %v1590 = vpack.c.bf16 %v1577, %v1577
      %v1591 = vpack.c.bf16 %v1578, %v1578
      %v1592 = vpack.c.bf16 %v1579, %v1579
      %v1593 = vpack.c.bf16 %v1580, %v1580
      %v1594 = vpack.c.bf16 %v1581, %v1581
      %v1595 = vpack.c.bf16 %v1582, %v1582
      %v1596 = vpack.c.bf16 %v1583, %v1583
      %1597 = vst [vmem:[%s1297] sm:$0xf] %v1584
      %1598 = vst [vmem:[%s1297 + $0x4] sm:$0xf] %v1585
      %1599 = vst [vmem:[%s1297 + $0x8] sm:$0xf] %v1586
      %1600 = vst [vmem:[%s1297 + $0xc] sm:$0xf] %v1587
      %1601 = vst [vmem:[%s1297 + $0x10] sm:$0xf] %v1588
      %1602 = vst [vmem:[%s1297 + $0x14] sm:$0xf] %v1589
      %1603 = vst [vmem:[%s1297 + $0x18] sm:$0xf] %v1590
      %1604 = vst [vmem:[%s1297 + $0x1c] sm:$0xf] %v1591
      %1605 = vst [vmem:[%s1297 + $0x20] sm:$0xf] %v1592
      %1606 = vst [vmem:[%s1297 + $0x24] sm:$0xf] %v1593
      %1607 = vst [vmem:[%s1297 + $0x28] sm:$0xf] %v1594
      %1608 = vst [vmem:[%s1297 + $0x2c] sm:$0xf] %v1595
      %1609 = vst [vmem:[%s1297 + $0x30] sm:$0x3] %v1596
      %v1610 = vld [vmem:[#allocation2] sm:$0xf]
      %v1611 = vld [vmem:[#allocation2 + $0x4] sm:$0xf]
      %v1612 = vld [vmem:[#allocation2 + $0x8] sm:$0xf]
      %v1613 = vld [vmem:[#allocation2 + $0xc] sm:$0xf]
      %v1614 = vld [vmem:[#allocation2 + $0x10] sm:$0xf]
      %v1615 = vld [vmem:[#allocation2 + $0x14] sm:$0xf]
      %v1616 = vld [vmem:[#allocation2 + $0x18] sm:$0xf]
      %v1617 = vld [vmem:[#allocation2 + $0x1c] sm:$0xf]
      %v1618 = vld [vmem:[#allocation2 + $0x20] sm:$0xf]
      %v1619 = vld [vmem:[#allocation2 + $0x24] sm:$0xf]
      %v1620 = vld [vmem:[%s6] sm:$0xf]
      %v1621 = vld [vmem:[%s6 + $0x4] sm:$0xf]
      %v1622 = vld [vmem:[%s6 + $0x8] sm:$0xf]
      %v1623 = vld [vmem:[%s6 + $0xc] sm:$0xf]
      %v1624 = vld [vmem:[%s6 + $0x10] sm:$0xf]
      %v1625 = vld [vmem:[%s6 + $0x14] sm:$0xf]
      %v1626 = vld [vmem:[%s6 + $0x18] sm:$0xf]
      %v1627 = vld [vmem:[%s6 + $0x1c] sm:$0xf]
      %v1628 = vld [vmem:[%s6 + $0x20] sm:$0xf]
      %v1629 = vld [vmem:[%s6 + $0x24] sm:$0xf]
      %v1630 = vld [vmem:[%s6 + $0x28] sm:$0xf]
      %v1631 = vld [vmem:[%s6 + $0x2c] sm:$0xf]
      %v1632 = vld [vmem:[%s6 + $0x30] sm:$0xf]
      %v1633 = vld [vmem:[%s6 + $0x34] sm:$0xf]
      %v1634 = vld [vmem:[%s6 + $0x38] sm:$0xf]
      %v1635 = vld [vmem:[%s6 + $0x3c] sm:$0xf]
      %v1636 = vld [vmem:[%s671] sm:$0xf]
      %v1637 = vld [vmem:[%s671 + $0x4] sm:$0xf]
      %v1638 = vld [vmem:[%s671 + $0x8] sm:$0xf]
      %v1639 = vld [vmem:[%s671 + $0xc] sm:$0xf]
      %v1640 = vld [vmem:[%s671 + $0x10] sm:$0xf]
      %v1641 = vld [vmem:[%s671 + $0x14] sm:$0xf]
      %v1642 = vld [vmem:[%s671 + $0x18] sm:$0xf]
      %v1643 = vld [vmem:[%s671 + $0x1c] sm:$0xf]
      %v1644 = vld [vmem:[%s671 + $0x20] sm:$0xf]
      %v1645 = vld [vmem:[%s671 + $0x24] sm:$0xf]
      %s1646 = scalar_lea.vmem %s6, 64
      %v1647 = vld [vmem:[%s1646] sm:$0xf]
      %v1648 = vld [vmem:[%s1646 + $0x4] sm:$0xf]
      %v1649 = vld [vmem:[%s1646 + $0x8] sm:$0xf]
      %v1650 = vld [vmem:[%s1646 + $0xc] sm:$0xf]
      %v1651 = vld [vmem:[%s1646 + $0x10] sm:$0xf]
      %v1652 = vld [vmem:[%s1646 + $0x14] sm:$0xf]
      %v1653 = vld [vmem:[%s1646 + $0x18] sm:$0xf]
      %v1654 = vld [vmem:[%s1646 + $0x1c] sm:$0xf]
      %v1655 = vld [vmem:[%s1646 + $0x20] sm:$0xf]
      %v1656 = vld [vmem:[%s1646 + $0x24] sm:$0xf]
      %v1657 = vld [vmem:[%s1646 + $0x28] sm:$0xf]
      %v1658 = vld [vmem:[%s1646 + $0x2c] sm:$0xf]
      %v1659 = vld [vmem:[%s1646 + $0x30] sm:$0xf]
      %v1660 = vld [vmem:[%s1646 + $0x34] sm:$0xf]
      %v1661 = vld [vmem:[%s1646 + $0x38] sm:$0xf]
      %v1662 = vld [vmem:[%s1646 + $0x3c] sm:$0xf]
      %v1673 = vunpack.c.l.b16 %v1636
      %v1674 = vunpack.c.l.b16 %v1637
      %v1675 = vunpack.c.l.b16 %v1638
      %v1676 = vunpack.c.l.b16 %v1639
      %v1677 = vunpack.c.l.b16 %v1640
      %v1678 = vunpack.c.l.b16 %v1641
      %v1679 = vunpack.c.l.b16 %v1642
      %v1680 = vunpack.c.l.b16 %v1643
      %v1681 = vunpack.c.l.b16 %v1644
      %v1682 = vunpack.c.l.b16 %v1645
      %v1683 = vpack.c.b16 %v1674, %v1673
      %v1684 = vpack.c.b16 %v1676, %v1675
      %v1685 = vpack.c.b16 %v1678, %v1677
      %v1686 = vpack.c.b16 %v1680, %v1679
      %v1687 = vpack.c.b16 %v1682, %v1681
      %v1709 = vunpack.c.l.b16 %v1647
      %v1710 = vunpack.c.l.b16 %v1648
      %v1711 = vunpack.c.l.b16 %v1649
      %v1712 = vunpack.c.l.b16 %v1650
      %v1713 = vunpack.c.l.b16 %v1651
      %v1714 = vunpack.c.l.b16 %v1652
      %v1715 = vunpack.c.l.b16 %v1653
      %v1716 = vunpack.c.l.b16 %v1654
      %v1717 = vunpack.c.l.b16 %v1655
      %v1718 = vunpack.c.l.b16 %v1656
      %v1719 = vunpack.c.l.b16 %v1657
      %v1720 = vunpack.c.l.b16 %v1658
      %v1721 = vunpack.c.l.b16 %v1659
      %v1722 = vunpack.c.l.b16 %v1660
      %v1723 = vunpack.c.l.b16 %v1661
      %v1724 = vunpack.c.l.b16 %v1662
      %v1725 = vpack.c.b16 %v1710, %v1709
      %v1726 = vpack.c.b16 %v1712, %v1711
      %v1727 = vpack.c.b16 %v1714, %v1713
      %v1728 = vpack.c.b16 %v1716, %v1715
      %v1729 = vpack.c.b16 %v1718, %v1717
      %v1730 = vpack.c.b16 %v1720, %v1719
      %v1731 = vpack.c.b16 %v1722, %v1721
      %v1732 = vpack.c.b16 %v1724, %v1723
      %1741 = vmatpush.bf16.msra.mxu0 %v1732
      %1742 = vmatpush.bf16.msra.mxu0 %v1731
      %1743 = vmatpush.bf16.msra.mxu0 %v1730
      %1744 = vmatpush.bf16.msra.mxu0 %v1729
      %1745 = vmatpush.bf16.msra.mxu0 %v1728
      %1746 = vmatpush.bf16.msra.mxu0 %v1727
      %1747 = vmatpush.bf16.msra.mxu0 %v1726
      %1748 = vmatpush.bf16.msra.mxu0 %v1725
      %1749 = vmatmul.bf16.gmra.mxu0 %v1683
      %v1750 = vpop.f32.mrf.mxu0
      %v1751 = vadd.f32 0.0, %v1750
      %v1752 = vpop.f32.mrf.mxu0
      %v1753 = vadd.f32 0.0, %v1752
      %1754 = vmatmul.bf16.gmra.mxu0 %v1684
      %v1755 = vpop.f32.mrf.mxu0
      %v1756 = vadd.f32 0.0, %v1755
      %v1757 = vpop.f32.mrf.mxu0
      %v1758 = vadd.f32 0.0, %v1757
      %1759 = vmatmul.bf16.gmra.mxu0 %v1685
      %v1760 = vpop.f32.mrf.mxu0
      %v1761 = vadd.f32 0.0, %v1760
      %v1762 = vpop.f32.mrf.mxu0
      %v1763 = vadd.f32 0.0, %v1762
      %1764 = vmatmul.bf16.gmra.mxu0 %v1686
      %v1765 = vpop.f32.mrf.mxu0
      %v1766 = vadd.f32 0.0, %v1765
      %v1767 = vpop.f32.mrf.mxu0
      %v1768 = vadd.f32 0.0, %v1767
      %1769 = vmatmul.bf16.gmra.mxu0 %v1687
      %v1770 = vpop.f32.mrf.mxu0
      %v1771 = vadd.f32 0.0, %v1770
      %v1772 = vpop.f32.mrf.mxu0
      %v1773 = vadd.f32 0.0, %v1772
      %1774 = vdwg.mxu0
      %v1785 = vunpack.c.l.b16 %v1610
      %v1786 = vunpack.c.l.b16 %v1611
      %v1787 = vunpack.c.l.b16 %v1612
      %v1788 = vunpack.c.l.b16 %v1613
      %v1789 = vunpack.c.l.b16 %v1614
      %v1790 = vunpack.c.l.b16 %v1615
      %v1791 = vunpack.c.l.b16 %v1616
      %v1792 = vunpack.c.l.b16 %v1617
      %v1793 = vunpack.c.l.b16 %v1618
      %v1794 = vunpack.c.l.b16 %v1619
      %v1795 = vpack.c.b16 %v1786, %v1785
      %v1796 = vpack.c.b16 %v1788, %v1787
      %v1797 = vpack.c.b16 %v1790, %v1789
      %v1798 = vpack.c.b16 %v1792, %v1791
      %v1799 = vpack.c.b16 %v1794, %v1793
      %v1821 = vunpack.c.l.b16 %v1620
      %v1822 = vunpack.c.l.b16 %v1621
      %v1823 = vunpack.c.l.b16 %v1622
      %v1824 = vunpack.c.l.b16 %v1623
      %v1825 = vunpack.c.l.b16 %v1624
      %v1826 = vunpack.c.l.b16 %v1625
      %v1827 = vunpack.c.l.b16 %v1626
      %v1828 = vunpack.c.l.b16 %v1627
      %v1829 = vunpack.c.l.b16 %v1628
      %v1830 = vunpack.c.l.b16 %v1629
      %v1831 = vunpack.c.l.b16 %v1630
      %v1832 = vunpack.c.l.b16 %v1631
      %v1833 = vunpack.c.l.b16 %v1632
      %v1834 = vunpack.c.l.b16 %v1633
      %v1835 = vunpack.c.l.b16 %v1634
      %v1836 = vunpack.c.l.b16 %v1635
      %v1837 = vpack.c.b16 %v1822, %v1821
      %v1838 = vpack.c.b16 %v1824, %v1823
      %v1839 = vpack.c.b16 %v1826, %v1825
      %v1840 = vpack.c.b16 %v1828, %v1827
      %v1841 = vpack.c.b16 %v1830, %v1829
      %v1842 = vpack.c.b16 %v1832, %v1831
      %v1843 = vpack.c.b16 %v1834, %v1833
      %v1844 = vpack.c.b16 %v1836, %v1835
      %1853 = vmatpush.bf16.msra.mxu0 %v1844
      %1854 = vmatpush.bf16.msra.mxu0 %v1843
      %1855 = vmatpush.bf16.msra.mxu0 %v1842
      %1856 = vmatpush.bf16.msra.mxu0 %v1841
      %1857 = vmatpush.bf16.msra.mxu0 %v1840
      %1858 = vmatpush.bf16.msra.mxu0 %v1839
      %1859 = vmatpush.bf16.msra.mxu0 %v1838
      %1860 = vmatpush.bf16.msra.mxu0 %v1837
      %1861 = vmatmul.bf16.gmra.mxu0 %v1795
      %v1862 = vpop.f32.mrf.mxu0
      %v1863 = vadd.f32 %v1751, %v1862
      %v1864 = vpop.f32.mrf.mxu0
      %v1865 = vadd.f32 %v1753, %v1864
      %1866 = vmatmul.bf16.gmra.mxu0 %v1796
      %v1867 = vpop.f32.mrf.mxu0
      %v1868 = vadd.f32 %v1756, %v1867
      %v1869 = vpop.f32.mrf.mxu0
      %v1870 = vadd.f32 %v1758, %v1869
      %1871 = vmatmul.bf16.gmra.mxu0 %v1797
      %v1872 = vpop.f32.mrf.mxu0
      %v1873 = vadd.f32 %v1761, %v1872
      %v1874 = vpop.f32.mrf.mxu0
      %v1875 = vadd.f32 %v1763, %v1874
      %1876 = vmatmul.bf16.gmra.mxu0 %v1798
      %v1877 = vpop.f32.mrf.mxu0
      %v1878 = vadd.f32 %v1766, %v1877
      %v1879 = vpop.f32.mrf.mxu0
      %v1880 = vadd.f32 %v1768, %v1879
      %1881 = vmatmul.bf16.gmra.mxu0 %v1799
      %v1882 = vpop.f32.mrf.mxu0
      %v1883 = vadd.f32 %v1771, %v1882
      %v1884 = vpop.f32.mrf.mxu0
      %v1885 = vadd.f32 %v1773, %v1884
      %1886 = vdwg.mxu0
      %v1887 = vld [vmem:[#allocation2] sm:$0xf]
      %v1888 = vld [vmem:[#allocation2 + $0x4] sm:$0xf]
      %v1889 = vld [vmem:[#allocation2 + $0x8] sm:$0xf]
      %v1890 = vld [vmem:[#allocation2 + $0xc] sm:$0xf]
      %v1891 = vld [vmem:[#allocation2 + $0x10] sm:$0xf]
      %v1892 = vld [vmem:[#allocation2 + $0x14] sm:$0xf]
      %v1893 = vld [vmem:[#allocation2 + $0x18] sm:$0xf]
      %v1894 = vld [vmem:[#allocation2 + $0x1c] sm:$0xf]
      %v1895 = vld [vmem:[#allocation2 + $0x20] sm:$0xf]
      %v1896 = vld [vmem:[#allocation2 + $0x24] sm:$0xf]
      %v1897 = vld [vmem:[#allocation2 + $0x28] sm:$0x1]
      %s1898 = scalar_lea.vmem %s6, 128
      %v1899 = vld [vmem:[%s1898] sm:$0xf]
      %v1900 = vld [vmem:[%s1898 + $0x4] sm:$0xf]
      %v1901 = vld [vmem:[%s1898 + $0x8] sm:$0xf]
      %v1902 = vld [vmem:[%s1898 + $0xc] sm:$0xf]
      %v1903 = vld [vmem:[%s1898 + $0x10] sm:$0xf]
      %v1904 = vld [vmem:[%s1898 + $0x14] sm:$0xf]
      %v1905 = vld [vmem:[%s1898 + $0x18] sm:$0xf]
      %v1906 = vld [vmem:[%s1898 + $0x1c] sm:$0xf]
      %v1907 = vld [vmem:[%s1898 + $0x20] sm:$0xf]
      %v1908 = vld [vmem:[%s1898 + $0x24] sm:$0xf]
      %v1909 = vld [vmem:[%s1898 + $0x28] sm:$0xf]
      %v1910 = vld [vmem:[%s1898 + $0x2c] sm:$0xf]
      %v1911 = vld [vmem:[%s1898 + $0x30] sm:$0xf]
      %v1912 = vld [vmem:[%s1898 + $0x34] sm:$0xf]
      %v1913 = vld [vmem:[%s1898 + $0x38] sm:$0xf]
      %v1914 = vld [vmem:[%s1898 + $0x3c] sm:$0xf]
      %v1926 = vunpack.c.l.b16 %v1887
      %v1927 = vunpack.c.l.b16 %v1888
      %v1928 = vunpack.c.l.b16 %v1889
      %v1929 = vunpack.c.l.b16 %v1890
      %v1930 = vunpack.c.l.b16 %v1891
      %v1931 = vunpack.c.l.b16 %v1892
      %v1932 = vunpack.c.l.b16 %v1893
      %v1933 = vunpack.c.l.b16 %v1894
      %v1934 = vunpack.c.l.b16 %v1895
      %v1935 = vunpack.c.l.b16 %v1896
      %v1936 = vunpack.c.l.b16 %v1897
      %v1937 = vpack.c.b16 %v1927, %v1926
      %v1938 = vpack.c.b16 %v1929, %v1928
      %v1939 = vpack.c.b16 %v1931, %v1930
      %v1940 = vpack.c.b16 %v1933, %v1932
      %v1941 = vpack.c.b16 %v1935, %v1934
      %v1942 = vpack.c.b16 %v1936, %v1936
      %vm1943 = vsmask.f32 7424
      %v1945 = vshrl.u32 %v1937, 16
      %v1947 = vshll.u32 %v1937, 16
      %v1949 = vrot.slane %v1947, 1
      %v1950 = vor.u32 %v1945, %v1949
      %v1952 = vshll.u32 %v1938, 16
      %v1954 = vrot.slane %v1952, 1
      %v1955 = vsel %vm1943, %v1950, %v1954
      %v1956 = vshrl.u32 %v1938, 16
      %v1958 = vor.u32 %v1956, %v1954
      %v1960 = vshll.u32 %v1939, 16
      %v1962 = vrot.slane %v1960, 1
      %v1963 = vsel %vm1943, %v1958, %v1962
      %v1964 = vshrl.u32 %v1939, 16
      %v1966 = vor.u32 %v1964, %v1962
      %v1968 = vshll.u32 %v1940, 16
      %v1970 = vrot.slane %v1968, 1
      %v1971 = vsel %vm1943, %v1966, %v1970
      %v1972 = vshrl.u32 %v1940, 16
      %v1974 = vor.u32 %v1972, %v1970
      %v1976 = vshll.u32 %v1941, 16
      %v1978 = vrot.slane %v1976, 1
      %v1979 = vsel %vm1943, %v1974, %v1978
      %v1980 = vshrl.u32 %v1941, 16
      %v1982 = vor.u32 %v1980, %v1978
      %v1984 = vshll.u32 %v1942, 16
      %v1986 = vrot.slane %v1984, 1
      %v1987 = vsel %vm1943, %v1982, %v1986
      %v2009 = vunpack.c.l.b16 %v1899
      %v2010 = vunpack.c.l.b16 %v1900
      %v2011 = vunpack.c.l.b16 %v1901
      %v2012 = vunpack.c.l.b16 %v1902
      %v2013 = vunpack.c.l.b16 %v1903
      %v2014 = vunpack.c.l.b16 %v1904
      %v2015 = vunpack.c.l.b16 %v1905
      %v2016 = vunpack.c.l.b16 %v1906
      %v2017 = vunpack.c.l.b16 %v1907
      %v2018 = vunpack.c.l.b16 %v1908
      %v2019 = vunpack.c.l.b16 %v1909
      %v2020 = vunpack.c.l.b16 %v1910
      %v2021 = vunpack.c.l.b16 %v1911
      %v2022 = vunpack.c.l.b16 %v1912
      %v2023 = vunpack.c.l.b16 %v1913
      %v2024 = vunpack.c.l.b16 %v1914
      %v2025 = vpack.c.b16 %v2010, %v2009
      %v2026 = vpack.c.b16 %v2012, %v2011
      %v2027 = vpack.c.b16 %v2014, %v2013
      %v2028 = vpack.c.b16 %v2016, %v2015
      %v2029 = vpack.c.b16 %v2018, %v2017
      %v2030 = vpack.c.b16 %v2020, %v2019
      %v2031 = vpack.c.b16 %v2022, %v2021
      %v2032 = vpack.c.b16 %v2024, %v2023
      %2041 = vmatpush.bf16.msra.mxu0 %v2032
      %2042 = vmatpush.bf16.msra.mxu0 %v2031
      %2043 = vmatpush.bf16.msra.mxu0 %v2030
      %2044 = vmatpush.bf16.msra.mxu0 %v2029
      %2045 = vmatpush.bf16.msra.mxu0 %v2028
      %2046 = vmatpush.bf16.msra.mxu0 %v2027
      %2047 = vmatpush.bf16.msra.mxu0 %v2026
      %2048 = vmatpush.bf16.msra.mxu0 %v2025
      %2049 = vmatmul.bf16.gmra.mxu0 %v1955
      %v2050 = vpop.f32.mrf.mxu0
      %v2051 = vadd.f32 0.0, %v2050
      %v2052 = vpop.f32.mrf.mxu0
      %v2053 = vadd.f32 0.0, %v2052
      %2054 = vmatmul.bf16.gmra.mxu0 %v1963
      %v2055 = vpop.f32.mrf.mxu0
      %v2056 = vadd.f32 0.0, %v2055
      %v2057 = vpop.f32.mrf.mxu0
      %v2058 = vadd.f32 0.0, %v2057
      %2059 = vmatmul.bf16.gmra.mxu0 %v1971
      %v2060 = vpop.f32.mrf.mxu0
      %v2061 = vadd.f32 0.0, %v2060
      %v2062 = vpop.f32.mrf.mxu0
      %v2063 = vadd.f32 0.0, %v2062
      %2064 = vmatmul.bf16.gmra.mxu0 %v1979
      %v2065 = vpop.f32.mrf.mxu0
      %v2066 = vadd.f32 0.0, %v2065
      %v2067 = vpop.f32.mrf.mxu0
      %v2068 = vadd.f32 0.0, %v2067
      %2069 = vmatmul.bf16.gmra.mxu0 %v1987
      %v2070 = vpop.f32.mrf.mxu0
      %v2071 = vadd.f32 0.0, %v2070
      %v2072 = vpop.f32.mrf.mxu0
      %v2073 = vadd.f32 0.0, %v2072
      %2074 = vdwg.mxu0
      %v2075 = vadd.f32 %v1863, %v2051
      %v2076 = vadd.f32 %v1865, %v2053
      %v2077 = vadd.f32 %v1868, %v2056
      %v2078 = vadd.f32 %v1870, %v2058
      %v2079 = vadd.f32 %v1873, %v2061
      %v2080 = vadd.f32 %v1875, %v2063
      %v2081 = vadd.f32 %v1878, %v2066
      %v2082 = vadd.f32 %v1880, %v2068
      %v2083 = vadd.f32 %v1883, %v2071
      %v2084 = vadd.f32 %v1885, %v2073
      %v2085 = vld [vmem:[%s984] sm:$0xf]
      %v2086 = vld [vmem:[%s984 + $0x4] sm:$0xf]
      %v2087 = vld [vmem:[%s984 + $0x8] sm:$0xf]
      %v2088 = vld [vmem:[%s984 + $0xc] sm:$0xf]
      %v2089 = vld [vmem:[%s984 + $0x10] sm:$0xf]
      %v2090 = vld [vmem:[%s984 + $0x14] sm:$0xf]
      %v2091 = vld [vmem:[%s984 + $0x18] sm:$0xf]
      %v2092 = vld [vmem:[%s984 + $0x1c] sm:$0xf]
      %v2093 = vld [vmem:[%s984 + $0x20] sm:$0xf]
      %v2094 = vld [vmem:[%s984 + $0x24] sm:$0xf]
      %s2095 = scalar_lea.vmem %s6, 192
      %v2096 = vld [vmem:[%s2095] sm:$0xf]
      %v2097 = vld [vmem:[%s2095 + $0x4] sm:$0xf]
      %v2098 = vld [vmem:[%s2095 + $0x8] sm:$0xf]
      %v2099 = vld [vmem:[%s2095 + $0xc] sm:$0xf]
      %v2100 = vld [vmem:[%s2095 + $0x10] sm:$0xf]
      %v2101 = vld [vmem:[%s2095 + $0x14] sm:$0xf]
      %v2102 = vld [vmem:[%s2095 + $0x18] sm:$0xf]
      %v2103 = vld [vmem:[%s2095 + $0x1c] sm:$0xf]
      %v2104 = vld [vmem:[%s2095 + $0x20] sm:$0xf]
      %v2105 = vld [vmem:[%s2095 + $0x24] sm:$0xf]
      %v2106 = vld [vmem:[%s2095 + $0x28] sm:$0xf]
      %v2107 = vld [vmem:[%s2095 + $0x2c] sm:$0xf]
      %v2108 = vld [vmem:[%s2095 + $0x30] sm:$0xf]
      %v2109 = vld [vmem:[%s2095 + $0x34] sm:$0xf]
      %v2110 = vld [vmem:[%s2095 + $0x38] sm:$0xf]
      %v2111 = vld [vmem:[%s2095 + $0x3c] sm:$0xf]
      %v2122 = vunpack.c.l.b16 %v2085
      %v2123 = vunpack.c.l.b16 %v2086
      %v2124 = vunpack.c.l.b16 %v2087
      %v2125 = vunpack.c.l.b16 %v2088
      %v2126 = vunpack.c.l.b16 %v2089
      %v2127 = vunpack.c.l.b16 %v2090
      %v2128 = vunpack.c.l.b16 %v2091
      %v2129 = vunpack.c.l.b16 %v2092
      %v2130 = vunpack.c.l.b16 %v2093
      %v2131 = vunpack.c.l.b16 %v2094
      %v2132 = vpack.c.b16 %v2123, %v2122
      %v2133 = vpack.c.b16 %v2125, %v2124
      %v2134 = vpack.c.b16 %v2127, %v2126
      %v2135 = vpack.c.b16 %v2129, %v2128
      %v2136 = vpack.c.b16 %v2131, %v2130
      %v2158 = vunpack.c.l.b16 %v2096
      %v2159 = vunpack.c.l.b16 %v2097
      %v2160 = vunpack.c.l.b16 %v2098
      %v2161 = vunpack.c.l.b16 %v2099
      %v2162 = vunpack.c.l.b16 %v2100
      %v2163 = vunpack.c.l.b16 %v2101
      %v2164 = vunpack.c.l.b16 %v2102
      %v2165 = vunpack.c.l.b16 %v2103
      %v2166 = vunpack.c.l.b16 %v2104
      %v2167 = vunpack.c.l.b16 %v2105
      %v2168 = vunpack.c.l.b16 %v2106
      %v2169 = vunpack.c.l.b16 %v2107
      %v2170 = vunpack.c.l.b16 %v2108
      %v2171 = vunpack.c.l.b16 %v2109
      %v2172 = vunpack.c.l.b16 %v2110
      %v2173 = vunpack.c.l.b16 %v2111
      %v2174 = vpack.c.b16 %v2159, %v2158
      %v2175 = vpack.c.b16 %v2161, %v2160
      %v2176 = vpack.c.b16 %v2163, %v2162
      %v2177 = vpack.c.b16 %v2165, %v2164
      %v2178 = vpack.c.b16 %v2167, %v2166
      %v2179 = vpack.c.b16 %v2169, %v2168
      %v2180 = vpack.c.b16 %v2171, %v2170
      %v2181 = vpack.c.b16 %v2173, %v2172
      %2190 = vmatpush.bf16.msra.mxu0 %v2181
      %2191 = vmatpush.bf16.msra.mxu0 %v2180
      %2192 = vmatpush.bf16.msra.mxu0 %v2179
      %2193 = vmatpush.bf16.msra.mxu0 %v2178
      %2194 = vmatpush.bf16.msra.mxu0 %v2177
      %2195 = vmatpush.bf16.msra.mxu0 %v2176
      %2196 = vmatpush.bf16.msra.mxu0 %v2175
      %2197 = vmatpush.bf16.msra.mxu0 %v2174
      %2198 = vmatmul.bf16.gmra.mxu0 %v2132
      %v2199 = vpop.f32.mrf.mxu0
      %v2200 = vadd.f32 0.0, %v2199
      %v2201 = vpop.f32.mrf.mxu0
      %v2202 = vadd.f32 0.0, %v2201
      %2203 = vmatmul.bf16.gmra.mxu0 %v2133
      %v2204 = vpop.f32.mrf.mxu0
      %v2205 = vadd.f32 0.0, %v2204
      %v2206 = vpop.f32.mrf.mxu0
      %v2207 = vadd.f32 0.0, %v2206
      %2208 = vmatmul.bf16.gmra.mxu0 %v2134
      %v2209 = vpop.f32.mrf.mxu0
      %v2210 = vadd.f32 0.0, %v2209
      %v2211 = vpop.f32.mrf.mxu0
      %v2212 = vadd.f32 0.0, %v2211
      %2213 = vmatmul.bf16.gmra.mxu0 %v2135
      %v2214 = vpop.f32.mrf.mxu0
      %v2215 = vadd.f32 0.0, %v2214
      %v2216 = vpop.f32.mrf.mxu0
      %v2217 = vadd.f32 0.0, %v2216
      %2218 = vmatmul.bf16.gmra.mxu0 %v2136
      %v2219 = vpop.f32.mrf.mxu0
      %v2220 = vadd.f32 0.0, %v2219
      %v2221 = vpop.f32.mrf.mxu0
      %v2222 = vadd.f32 0.0, %v2221
      %2223 = vdwg.mxu0
      %v2224 = vadd.f32 %v2075, %v2200
      %v2225 = vadd.f32 %v2076, %v2202
      %v2226 = vadd.f32 %v2077, %v2205
      %v2227 = vadd.f32 %v2078, %v2207
      %v2228 = vadd.f32 %v2079, %v2210
      %v2229 = vadd.f32 %v2080, %v2212
      %v2230 = vadd.f32 %v2081, %v2215
      %v2231 = vadd.f32 %v2082, %v2217
      %v2232 = vadd.f32 %v2083, %v2220
      %v2233 = vadd.f32 %v2084, %v2222
      %v2234 = vld [vmem:[%s1297] sm:$0xf]
      %v2235 = vld [vmem:[%s1297 + $0x4] sm:$0xf]
      %v2236 = vld [vmem:[%s1297 + $0x8] sm:$0xf]
      %v2237 = vld [vmem:[%s1297 + $0xc] sm:$0xf]
      %v2238 = vld [vmem:[%s1297 + $0x10] sm:$0xf]
      %v2239 = vld [vmem:[%s1297 + $0x14] sm:$0xf]
      %v2240 = vld [vmem:[%s1297 + $0x18] sm:$0xf]
      %v2241 = vld [vmem:[%s1297 + $0x1c] sm:$0xf]
      %v2242 = vld [vmem:[%s1297 + $0x20] sm:$0xf]
      %v2243 = vld [vmem:[%s1297 + $0x24] sm:$0xf]
      %s2244 = scalar_lea.vmem %s6, 256
      %v2245 = vld [vmem:[%s2244] sm:$0xf]
      %v2246 = vld [vmem:[%s2244 + $0x4] sm:$0xf]
      %v2247 = vld [vmem:[%s2244 + $0x8] sm:$0xf]
      %v2248 = vld [vmem:[%s2244 + $0xc] sm:$0xf]
      %v2249 = vld [vmem:[%s2244 + $0x10] sm:$0xf]
      %v2250 = vld [vmem:[%s2244 + $0x14] sm:$0xf]
      %v2251 = vld [vmem:[%s2244 + $0x18] sm:$0xf]
      %v2252 = vld [vmem:[%s2244 + $0x1c] sm:$0xf]
      %v2253 = vld [vmem:[%s2244 + $0x20] sm:$0xf]
      %v2254 = vld [vmem:[%s2244 + $0x24] sm:$0xf]
      %v2255 = vld [vmem:[%s2244 + $0x28] sm:$0xf]
      %v2256 = vld [vmem:[%s2244 + $0x2c] sm:$0xf]
      %v2257 = vld [vmem:[%s2244 + $0x30] sm:$0xf]
      %v2258 = vld [vmem:[%s2244 + $0x34] sm:$0xf]
      %v2259 = vld [vmem:[%s2244 + $0x38] sm:$0xf]
      %v2260 = vld [vmem:[%s2244 + $0x3c] sm:$0xf]
      %v2271 = vunpack.c.l.b16 %v2234
      %v2272 = vunpack.c.l.b16 %v2235
      %v2273 = vunpack.c.l.b16 %v2236
      %v2274 = vunpack.c.l.b16 %v2237
      %v2275 = vunpack.c.l.b16 %v2238
      %v2276 = vunpack.c.l.b16 %v2239
      %v2277 = vunpack.c.l.b16 %v2240
      %v2278 = vunpack.c.l.b16 %v2241
      %v2279 = vunpack.c.l.b16 %v2242
      %v2280 = vunpack.c.l.b16 %v2243
      %v2281 = vpack.c.b16 %v2272, %v2271
      %v2282 = vpack.c.b16 %v2274, %v2273
      %v2283 = vpack.c.b16 %v2276, %v2275
      %v2284 = vpack.c.b16 %v2278, %v2277
      %v2285 = vpack.c.b16 %v2280, %v2279
      %v2307 = vunpack.c.l.b16 %v2245
      %v2308 = vunpack.c.l.b16 %v2246
      %v2309 = vunpack.c.l.b16 %v2247
      %v2310 = vunpack.c.l.b16 %v2248
      %v2311 = vunpack.c.l.b16 %v2249
      %v2312 = vunpack.c.l.b16 %v2250
      %v2313 = vunpack.c.l.b16 %v2251
      %v2314 = vunpack.c.l.b16 %v2252
      %v2315 = vunpack.c.l.b16 %v2253
      %v2316 = vunpack.c.l.b16 %v2254
      %v2317 = vunpack.c.l.b16 %v2255
      %v2318 = vunpack.c.l.b16 %v2256
      %v2319 = vunpack.c.l.b16 %v2257
      %v2320 = vunpack.c.l.b16 %v2258
      %v2321 = vunpack.c.l.b16 %v2259
      %v2322 = vunpack.c.l.b16 %v2260
      %v2323 = vpack.c.b16 %v2308, %v2307
      %v2324 = vpack.c.b16 %v2310, %v2309
      %v2325 = vpack.c.b16 %v2312, %v2311
      %v2326 = vpack.c.b16 %v2314, %v2313
      %v2327 = vpack.c.b16 %v2316, %v2315
      %v2328 = vpack.c.b16 %v2318, %v2317
      %v2329 = vpack.c.b16 %v2320, %v2319
      %v2330 = vpack.c.b16 %v2322, %v2321
      %2339 = vmatpush.bf16.msra.mxu0 %v2330
      %2340 = vmatpush.bf16.msra.mxu0 %v2329
      %2341 = vmatpush.bf16.msra.mxu0 %v2328
      %2342 = vmatpush.bf16.msra.mxu0 %v2327
      %2343 = vmatpush.bf16.msra.mxu0 %v2326
      %2344 = vmatpush.bf16.msra.mxu0 %v2325
      %2345 = vmatpush.bf16.msra.mxu0 %v2324
      %2346 = vmatpush.bf16.msra.mxu0 %v2323
      %2347 = vmatmul.bf16.gmra.mxu0 %v2281
      %v2348 = vpop.f32.mrf.mxu0
      %v2349 = vadd.f32 0.0, %v2348
      %v2350 = vpop.f32.mrf.mxu0
      %v2351 = vadd.f32 0.0, %v2350
      %2352 = vmatmul.bf16.gmra.mxu0 %v2282
      %v2353 = vpop.f32.mrf.mxu0
      %v2354 = vadd.f32 0.0, %v2353
      %v2355 = vpop.f32.mrf.mxu0
      %v2356 = vadd.f32 0.0, %v2355
      %2357 = vmatmul.bf16.gmra.mxu0 %v2283
      %v2358 = vpop.f32.mrf.mxu0
      %v2359 = vadd.f32 0.0, %v2358
      %v2360 = vpop.f32.mrf.mxu0
      %v2361 = vadd.f32 0.0, %v2360
      %2362 = vmatmul.bf16.gmra.mxu0 %v2284
      %v2363 = vpop.f32.mrf.mxu0
      %v2364 = vadd.f32 0.0, %v2363
      %v2365 = vpop.f32.mrf.mxu0
      %v2366 = vadd.f32 0.0, %v2365
      %2367 = vmatmul.bf16.gmra.mxu0 %v2285
      %v2368 = vpop.f32.mrf.mxu0
      %v2369 = vadd.f32 0.0, %v2368
      %v2370 = vpop.f32.mrf.mxu0
      %v2371 = vadd.f32 0.0, %v2370
      %2372 = vdwg.mxu0
      %v2373 = vadd.f32 %v2224, %v2349
      %v2374 = vadd.f32 %v2225, %v2351
      %v2375 = vadd.f32 %v2226, %v2354
      %v2376 = vadd.f32 %v2227, %v2356
      %v2377 = vadd.f32 %v2228, %v2359
      %v2378 = vadd.f32 %v2229, %v2361
      %v2379 = vadd.f32 %v2230, %v2364
      %v2380 = vadd.f32 %v2231, %v2366
      %v2381 = vadd.f32 %v2232, %v2369
      %v2382 = vadd.f32 %v2233, %v2371
      %v2383 = vld [vmem:[%s984] sm:$0xf]
      %v2384 = vld [vmem:[%s984 + $0x4] sm:$0xf]
      %v2385 = vld [vmem:[%s984 + $0x8] sm:$0xf]
      %v2386 = vld [vmem:[%s984 + $0xc] sm:$0xf]
      %v2387 = vld [vmem:[%s984 + $0x10] sm:$0xf]
      %v2388 = vld [vmem:[%s984 + $0x14] sm:$0xf]
      %v2389 = vld [vmem:[%s984 + $0x18] sm:$0xf]
      %v2390 = vld [vmem:[%s984 + $0x1c] sm:$0xf]
      %v2391 = vld [vmem:[%s984 + $0x20] sm:$0xf]
      %v2392 = vld [vmem:[%s984 + $0x24] sm:$0xf]
      %v2393 = vld [vmem:[%s984 + $0x28] sm:$0x1]
      %s2394 = scalar_lea.vmem %s6, 320
      %v2395 = vld [vmem:[%s2394] sm:$0xf]
      %v2396 = vld [vmem:[%s2394 + $0x4] sm:$0xf]
      %v2397 = vld [vmem:[%s2394 + $0x8] sm:$0xf]
      %v2398 = vld [vmem:[%s2394 + $0xc] sm:$0xf]
      %v2399 = vld [vmem:[%s2394 + $0x10] sm:$0xf]
      %v2400 = vld [vmem:[%s2394 + $0x14] sm:$0xf]
      %v2401 = vld [vmem:[%s2394 + $0x18] sm:$0xf]
      %v2402 = vld [vmem:[%s2394 + $0x1c] sm:$0xf]
      %v2403 = vld [vmem:[%s2394 + $0x20] sm:$0xf]
      %v2404 = vld [vmem:[%s2394 + $0x24] sm:$0xf]
      %v2405 = vld [vmem:[%s2394 + $0x28] sm:$0xf]
      %v2406 = vld [vmem:[%s2394 + $0x2c] sm:$0xf]
      %v2407 = vld [vmem:[%s2394 + $0x30] sm:$0xf]
      %v2408 = vld [vmem:[%s2394 + $0x34] sm:$0xf]
      %v2409 = vld [vmem:[%s2394 + $0x38] sm:$0xf]
      %v2410 = vld [vmem:[%s2394 + $0x3c] sm:$0xf]
      %v2422 = vunpack.c.l.b16 %v2383
      %v2423 = vunpack.c.l.b16 %v2384
      %v2424 = vunpack.c.l.b16 %v2385
      %v2425 = vunpack.c.l.b16 %v2386
      %v2426 = vunpack.c.l.b16 %v2387
      %v2427 = vunpack.c.l.b16 %v2388
      %v2428 = vunpack.c.l.b16 %v2389
      %v2429 = vunpack.c.l.b16 %v2390
      %v2430 = vunpack.c.l.b16 %v2391
      %v2431 = vunpack.c.l.b16 %v2392
      %v2432 = vunpack.c.l.b16 %v2393
      %v2433 = vpack.c.b16 %v2423, %v2422
      %v2434 = vpack.c.b16 %v2425, %v2424
      %v2435 = vpack.c.b16 %v2427, %v2426
      %v2436 = vpack.c.b16 %v2429, %v2428
      %v2437 = vpack.c.b16 %v2431, %v2430
      %v2438 = vpack.c.b16 %v2432, %v2432
      %v2440 = vshrl.u32 %v2433, 16
      %v2442 = vshll.u32 %v2433, 16
      %v2444 = vrot.slane %v2442, 1
      %v2445 = vor.u32 %v2440, %v2444
      %v2447 = vshll.u32 %v2434, 16
      %v2449 = vrot.slane %v2447, 1
      %v2450 = vsel %vm1943, %v2445, %v2449
      %v2451 = vshrl.u32 %v2434, 16
      %v2453 = vor.u32 %v2451, %v2449
      %v2455 = vshll.u32 %v2435, 16
      %v2457 = vrot.slane %v2455, 1
      %v2458 = vsel %vm1943, %v2453, %v2457
      %v2459 = vshrl.u32 %v2435, 16
      %v2461 = vor.u32 %v2459, %v2457
      %v2463 = vshll.u32 %v2436, 16
      %v2465 = vrot.slane %v2463, 1
      %v2466 = vsel %vm1943, %v2461, %v2465
      %v2467 = vshrl.u32 %v2436, 16
      %v2469 = vor.u32 %v2467, %v2465
      %v2471 = vshll.u32 %v2437, 16
      %v2473 = vrot.slane %v2471, 1
      %v2474 = vsel %vm1943, %v2469, %v2473
      %v2475 = vshrl.u32 %v2437, 16
      %v2477 = vor.u32 %v2475, %v2473
      %v2479 = vshll.u32 %v2438, 16
      %v2481 = vrot.slane %v2479, 1
      %v2482 = vsel %vm1943, %v2477, %v2481
      %v2504 = vunpack.c.l.b16 %v2395
      %v2505 = vunpack.c.l.b16 %v2396
      %v2506 = vunpack.c.l.b16 %v2397
      %v2507 = vunpack.c.l.b16 %v2398
      %v2508 = vunpack.c.l.b16 %v2399
      %v2509 = vunpack.c.l.b16 %v2400
      %v2510 = vunpack.c.l.b16 %v2401
      %v2511 = vunpack.c.l.b16 %v2402
      %v2512 = vunpack.c.l.b16 %v2403
      %v2513 = vunpack.c.l.b16 %v2404
      %v2514 = vunpack.c.l.b16 %v2405
      %v2515 = vunpack.c.l.b16 %v2406
      %v2516 = vunpack.c.l.b16 %v2407
      %v2517 = vunpack.c.l.b16 %v2408
      %v2518 = vunpack.c.l.b16 %v2409
      %v2519 = vunpack.c.l.b16 %v2410
      %v2520 = vpack.c.b16 %v2505, %v2504
      %v2521 = vpack.c.b16 %v2507, %v2506
      %v2522 = vpack.c.b16 %v2509, %v2508
      %v2523 = vpack.c.b16 %v2511, %v2510
      %v2524 = vpack.c.b16 %v2513, %v2512
      %v2525 = vpack.c.b16 %v2515, %v2514
      %v2526 = vpack.c.b16 %v2517, %v2516
      %v2527 = vpack.c.b16 %v2519, %v2518
      %2536 = vmatpush.bf16.msra.mxu0 %v2527
      %2537 = vmatpush.bf16.msra.mxu0 %v2526
      %2538 = vmatpush.bf16.msra.mxu0 %v2525
      %2539 = vmatpush.bf16.msra.mxu0 %v2524
      %2540 = vmatpush.bf16.msra.mxu0 %v2523
      %2541 = vmatpush.bf16.msra.mxu0 %v2522
      %2542 = vmatpush.bf16.msra.mxu0 %v2521
      %2543 = vmatpush.bf16.msra.mxu0 %v2520
      %2544 = vmatmul.bf16.gmra.mxu0 %v2450
      %v2545 = vpop.f32.mrf.mxu0
      %v2546 = vadd.f32 0.0, %v2545
      %v2547 = vpop.f32.mrf.mxu0
      %v2548 = vadd.f32 0.0, %v2547
      %2549 = vmatmul.bf16.gmra.mxu0 %v2458
      %v2550 = vpop.f32.mrf.mxu0
      %v2551 = vadd.f32 0.0, %v2550
      %v2552 = vpop.f32.mrf.mxu0
      %v2553 = vadd.f32 0.0, %v2552
      %2554 = vmatmul.bf16.gmra.mxu0 %v2466
      %v2555 = vpop.f32.mrf.mxu0
      %v2556 = vadd.f32 0.0, %v2555
      %v2557 = vpop.f32.mrf.mxu0
      %v2558 = vadd.f32 0.0, %v2557
      %2559 = vmatmul.bf16.gmra.mxu0 %v2474
      %v2560 = vpop.f32.mrf.mxu0
      %v2561 = vadd.f32 0.0, %v2560
      %v2562 = vpop.f32.mrf.mxu0
      %v2563 = vadd.f32 0.0, %v2562
      %2564 = vmatmul.bf16.gmra.mxu0 %v2482
      %v2565 = vpop.f32.mrf.mxu0
      %v2566 = vadd.f32 0.0, %v2565
      %v2567 = vpop.f32.mrf.mxu0
      %v2568 = vadd.f32 0.0, %v2567
      %2569 = vdwg.mxu0
      %v2570 = vadd.f32 %v2373, %v2546
      %v2571 = vadd.f32 %v2374, %v2548
      %v2572 = vadd.f32 %v2375, %v2551
      %v2573 = vadd.f32 %v2376, %v2553
      %v2574 = vadd.f32 %v2377, %v2556
      %v2575 = vadd.f32 %v2378, %v2558
      %v2576 = vadd.f32 %v2379, %v2561
      %v2577 = vadd.f32 %v2380, %v2563
      %v2578 = vadd.f32 %v2381, %v2566
      %v2579 = vadd.f32 %v2382, %v2568
      %v2580 = vld [vmem:[#allocation2 + $0x4] sm:$0xe]
      %v2581 = vld [vmem:[#allocation2 + $0x8] sm:$0xf]
      %v2582 = vld [vmem:[#allocation2 + $0xc] sm:$0xf]
      %v2583 = vld [vmem:[#allocation2 + $0x10] sm:$0xf]
      %v2584 = vld [vmem:[#allocation2 + $0x14] sm:$0xf]
      %v2585 = vld [vmem:[#allocation2 + $0x18] sm:$0xf]
      %v2586 = vld [vmem:[#allocation2 + $0x1c] sm:$0xf]
      %v2587 = vld [vmem:[#allocation2 + $0x20] sm:$0xf]
      %v2588 = vld [vmem:[#allocation2 + $0x24] sm:$0xf]
      %v2589 = vld [vmem:[#allocation2 + $0x28] sm:$0xf]
      %v2590 = vld [vmem:[#allocation2 + $0x2c] sm:$0x1]
      %s2591 = scalar_lea.vmem %s6, 384
      %v2592 = vld [vmem:[%s2591] sm:$0xf]
      %v2593 = vld [vmem:[%s2591 + $0x4] sm:$0xf]
      %v2594 = vld [vmem:[%s2591 + $0x8] sm:$0xf]
      %v2595 = vld [vmem:[%s2591 + $0xc] sm:$0xf]
      %v2596 = vld [vmem:[%s2591 + $0x10] sm:$0xf]
      %v2597 = vld [vmem:[%s2591 + $0x14] sm:$0xf]
      %v2598 = vld [vmem:[%s2591 + $0x18] sm:$0xf]
      %v2599 = vld [vmem:[%s2591 + $0x1c] sm:$0xf]
      %v2600 = vld [vmem:[%s2591 + $0x20] sm:$0xf]
      %v2601 = vld [vmem:[%s2591 + $0x24] sm:$0xf]
      %v2602 = vld [vmem:[%s2591 + $0x28] sm:$0xf]
      %v2603 = vld [vmem:[%s2591 + $0x2c] sm:$0xf]
      %v2604 = vld [vmem:[%s2591 + $0x30] sm:$0xf]
      %v2605 = vld [vmem:[%s2591 + $0x34] sm:$0xf]
      %v2606 = vld [vmem:[%s2591 + $0x38] sm:$0xf]
      %v2607 = vld [vmem:[%s2591 + $0x3c] sm:$0xf]
      %v2619 = vunpack.c.l.b16 %v2580
      %v2620 = vunpack.c.l.b16 %v2581
      %v2621 = vunpack.c.l.b16 %v2582
      %v2622 = vunpack.c.l.b16 %v2583
      %v2623 = vunpack.c.l.b16 %v2584
      %v2624 = vunpack.c.l.b16 %v2585
      %v2625 = vunpack.c.l.b16 %v2586
      %v2626 = vunpack.c.l.b16 %v2587
      %v2627 = vunpack.c.l.b16 %v2588
      %v2628 = vunpack.c.l.b16 %v2589
      %v2629 = vunpack.c.l.b16 %v2590
      %v2630 = vpack.c.b16 %v2620, %v2619
      %v2631 = vpack.c.b16 %v2622, %v2621
      %v2632 = vpack.c.b16 %v2624, %v2623
      %v2633 = vpack.c.b16 %v2626, %v2625
      %v2634 = vpack.c.b16 %v2628, %v2627
      %v2635 = vpack.c.b16 %v2629, %v2629
      %vm2636 = vcmask 1046528
      %v2637 = vrot.slane %v2630, 1
      %v2638 = vrot.slane %v2631, 1
      %v2639 = vsel %vm2636, %v2637, %v2638
      %v2640 = vrot.slane %v2632, 1
      %v2641 = vsel %vm2636, %v2638, %v2640
      %v2642 = vrot.slane %v2633, 1
      %v2643 = vsel %vm2636, %v2640, %v2642
      %v2644 = vrot.slane %v2634, 1
      %v2645 = vsel %vm2636, %v2642, %v2644
      %v2646 = vrot.slane %v2635, 1
      %v2647 = vsel %vm2636, %v2644, %v2646
      %v2669 = vunpack.c.l.b16 %v2592
      %v2670 = vunpack.c.l.b16 %v2593
      %v2671 = vunpack.c.l.b16 %v2594
      %v2672 = vunpack.c.l.b16 %v2595
      %v2673 = vunpack.c.l.b16 %v2596
      %v2674 = vunpack.c.l.b16 %v2597
      %v2675 = vunpack.c.l.b16 %v2598
      %v2676 = vunpack.c.l.b16 %v2599
      %v2677 = vunpack.c.l.b16 %v2600
      %v2678 = vunpack.c.l.b16 %v2601
      %v2679 = vunpack.c.l.b16 %v2602
      %v2680 = vunpack.c.l.b16 %v2603
      %v2681 = vunpack.c.l.b16 %v2604
      %v2682 = vunpack.c.l.b16 %v2605
      %v2683 = vunpack.c.l.b16 %v2606
      %v2684 = vunpack.c.l.b16 %v2607
      %v2685 = vpack.c.b16 %v2670, %v2669
      %v2686 = vpack.c.b16 %v2672, %v2671
      %v2687 = vpack.c.b16 %v2674, %v2673
      %v2688 = vpack.c.b16 %v2676, %v2675
      %v2689 = vpack.c.b16 %v2678, %v2677
      %v2690 = vpack.c.b16 %v2680, %v2679
      %v2691 = vpack.c.b16 %v2682, %v2681
      %v2692 = vpack.c.b16 %v2684, %v2683
      %2701 = vmatpush.bf16.msra.mxu0 %v2692
      %2702 = vmatpush.bf16.msra.mxu0 %v2691
      %2703 = vmatpush.bf16.msra.mxu0 %v2690
      %2704 = vmatpush.bf16.msra.mxu0 %v2689
      %2705 = vmatpush.bf16.msra.mxu0 %v2688
      %2706 = vmatpush.bf16.msra.mxu0 %v2687
      %2707 = vmatpush.bf16.msra.mxu0 %v2686
      %2708 = vmatpush.bf16.msra.mxu0 %v2685
      %2709 = vmatmul.bf16.gmra.mxu0 %v2639
      %v2710 = vpop.f32.mrf.mxu0
      %v2711 = vadd.f32 0.0, %v2710
      %v2712 = vpop.f32.mrf.mxu0
      %v2713 = vadd.f32 0.0, %v2712
      %2714 = vmatmul.bf16.gmra.mxu0 %v2641
      %v2715 = vpop.f32.mrf.mxu0
      %v2716 = vadd.f32 0.0, %v2715
      %v2717 = vpop.f32.mrf.mxu0
      %v2718 = vadd.f32 0.0, %v2717
      %2719 = vmatmul.bf16.gmra.mxu0 %v2643
      %v2720 = vpop.f32.mrf.mxu0
      %v2721 = vadd.f32 0.0, %v2720
      %v2722 = vpop.f32.mrf.mxu0
      %v2723 = vadd.f32 0.0, %v2722
      %2724 = vmatmul.bf16.gmra.mxu0 %v2645
      %v2725 = vpop.f32.mrf.mxu0
      %v2726 = vadd.f32 0.0, %v2725
      %v2727 = vpop.f32.mrf.mxu0
      %v2728 = vadd.f32 0.0, %v2727
      %2729 = vmatmul.bf16.gmra.mxu0 %v2647
      %v2730 = vpop.f32.mrf.mxu0
      %v2731 = vadd.f32 0.0, %v2730
      %v2732 = vpop.f32.mrf.mxu0
      %v2733 = vadd.f32 0.0, %v2732
      %2734 = vdwg.mxu0
      %v2735 = vadd.f32 %v2570, %v2711
      %v2736 = vadd.f32 %v2571, %v2713
      %v2737 = vadd.f32 %v2572, %v2716
      %v2738 = vadd.f32 %v2573, %v2718
      %v2739 = vadd.f32 %v2574, %v2721
      %v2740 = vadd.f32 %v2575, %v2723
      %v2741 = vadd.f32 %v2576, %v2726
      %v2742 = vadd.f32 %v2577, %v2728
      %v2743 = vadd.f32 %v2578, %v2731
      %v2744 = vadd.f32 %v2579, %v2733
      %v2745 = vld [vmem:[%s671 + $0x4] sm:$0xe]
      %v2746 = vld [vmem:[%s671 + $0x8] sm:$0xf]
      %v2747 = vld [vmem:[%s671 + $0xc] sm:$0xf]
      %v2748 = vld [vmem:[%s671 + $0x10] sm:$0xf]
      %v2749 = vld [vmem:[%s671 + $0x14] sm:$0xf]
      %v2750 = vld [vmem:[%s671 + $0x18] sm:$0xf]
      %v2751 = vld [vmem:[%s671 + $0x1c] sm:$0xf]
      %v2752 = vld [vmem:[%s671 + $0x20] sm:$0xf]
      %v2753 = vld [vmem:[%s671 + $0x24] sm:$0xf]
      %v2754 = vld [vmem:[%s671 + $0x28] sm:$0xf]
      %v2755 = vld [vmem:[%s671 + $0x2c] sm:$0x1]
      %s2756 = scalar_lea.vmem %s6, 448
      %v2757 = vld [vmem:[%s2756] sm:$0xf]
      %v2758 = vld [vmem:[%s2756 + $0x4] sm:$0xf]
      %v2759 = vld [vmem:[%s2756 + $0x8] sm:$0xf]
      %v2760 = vld [vmem:[%s2756 + $0xc] sm:$0xf]
      %v2761 = vld [vmem:[%s2756 + $0x10] sm:$0xf]
      %v2762 = vld [vmem:[%s2756 + $0x14] sm:$0xf]
      %v2763 = vld [vmem:[%s2756 + $0x18] sm:$0xf]
      %v2764 = vld [vmem:[%s2756 + $0x1c] sm:$0xf]
      %v2765 = vld [vmem:[%s2756 + $0x20] sm:$0xf]
      %v2766 = vld [vmem:[%s2756 + $0x24] sm:$0xf]
      %v2767 = vld [vmem:[%s2756 + $0x28] sm:$0xf]
      %v2768 = vld [vmem:[%s2756 + $0x2c] sm:$0xf]
      %v2769 = vld [vmem:[%s2756 + $0x30] sm:$0xf]
      %v2770 = vld [vmem:[%s2756 + $0x34] sm:$0xf]
      %v2771 = vld [vmem:[%s2756 + $0x38] sm:$0xf]
      %v2772 = vld [vmem:[%s2756 + $0x3c] sm:$0xf]
      %v2784 = vunpack.c.l.b16 %v2745
      %v2785 = vunpack.c.l.b16 %v2746
      %v2786 = vunpack.c.l.b16 %v2747
      %v2787 = vunpack.c.l.b16 %v2748
      %v2788 = vunpack.c.l.b16 %v2749
      %v2789 = vunpack.c.l.b16 %v2750
      %v2790 = vunpack.c.l.b16 %v2751
      %v2791 = vunpack.c.l.b16 %v2752
      %v2792 = vunpack.c.l.b16 %v2753
      %v2793 = vunpack.c.l.b16 %v2754
      %v2794 = vunpack.c.l.b16 %v2755
      %v2795 = vpack.c.b16 %v2785, %v2784
      %v2796 = vpack.c.b16 %v2787, %v2786
      %v2797 = vpack.c.b16 %v2789, %v2788
      %v2798 = vpack.c.b16 %v2791, %v2790
      %v2799 = vpack.c.b16 %v2793, %v2792
      %v2800 = vpack.c.b16 %v2794, %v2794
      %v2801 = vrot.slane %v2795, 1
      %v2802 = vrot.slane %v2796, 1
      %v2803 = vsel %vm2636, %v2801, %v2802
      %v2804 = vrot.slane %v2797, 1
      %v2805 = vsel %vm2636, %v2802, %v2804
      %v2806 = vrot.slane %v2798, 1
      %v2807 = vsel %vm2636, %v2804, %v2806
      %v2808 = vrot.slane %v2799, 1
      %v2809 = vsel %vm2636, %v2806, %v2808
      %v2810 = vrot.slane %v2800, 1
      %v2811 = vsel %vm2636, %v2808, %v2810
      %v2833 = vunpack.c.l.b16 %v2757
      %v2834 = vunpack.c.l.b16 %v2758
      %v2835 = vunpack.c.l.b16 %v2759
      %v2836 = vunpack.c.l.b16 %v2760
      %v2837 = vunpack.c.l.b16 %v2761
      %v2838 = vunpack.c.l.b16 %v2762
      %v2839 = vunpack.c.l.b16 %v2763
      %v2840 = vunpack.c.l.b16 %v2764
      %v2841 = vunpack.c.l.b16 %v2765
      %v2842 = vunpack.c.l.b16 %v2766
      %v2843 = vunpack.c.l.b16 %v2767
      %v2844 = vunpack.c.l.b16 %v2768
      %v2845 = vunpack.c.l.b16 %v2769
      %v2846 = vunpack.c.l.b16 %v2770
      %v2847 = vunpack.c.l.b16 %v2771
      %v2848 = vunpack.c.l.b16 %v2772
      %v2849 = vpack.c.b16 %v2834, %v2833
      %v2850 = vpack.c.b16 %v2836, %v2835
      %v2851 = vpack.c.b16 %v2838, %v2837
      %v2852 = vpack.c.b16 %v2840, %v2839
      %v2853 = vpack.c.b16 %v2842, %v2841
      %v2854 = vpack.c.b16 %v2844, %v2843
      %v2855 = vpack.c.b16 %v2846, %v2845
      %v2856 = vpack.c.b16 %v2848, %v2847
      %2865 = vmatpush.bf16.msra.mxu0 %v2856
      %2866 = vmatpush.bf16.msra.mxu0 %v2855
      %2867 = vmatpush.bf16.msra.mxu0 %v2854
      %2868 = vmatpush.bf16.msra.mxu0 %v2853
      %2869 = vmatpush.bf16.msra.mxu0 %v2852
      %2870 = vmatpush.bf16.msra.mxu0 %v2851
      %2871 = vmatpush.bf16.msra.mxu0 %v2850
      %2872 = vmatpush.bf16.msra.mxu0 %v2849
      %2873 = vmatmul.bf16.gmra.mxu0 %v2803
      %v2874 = vpop.f32.mrf.mxu0
      %v2875 = vadd.f32 0.0, %v2874
      %v2876 = vpop.f32.mrf.mxu0
      %v2877 = vadd.f32 0.0, %v2876
      %2878 = vmatmul.bf16.gmra.mxu0 %v2805
      %v2879 = vpop.f32.mrf.mxu0
      %v2880 = vadd.f32 0.0, %v2879
      %v2881 = vpop.f32.mrf.mxu0
      %v2882 = vadd.f32 0.0, %v2881
      %2883 = vmatmul.bf16.gmra.mxu0 %v2807
      %v2884 = vpop.f32.mrf.mxu0
      %v2885 = vadd.f32 0.0, %v2884
      %v2886 = vpop.f32.mrf.mxu0
      %v2887 = vadd.f32 0.0, %v2886
      %2888 = vmatmul.bf16.gmra.mxu0 %v2809
      %v2889 = vpop.f32.mrf.mxu0
      %v2890 = vadd.f32 0.0, %v2889
      %v2891 = vpop.f32.mrf.mxu0
      %v2892 = vadd.f32 0.0, %v2891
      %2893 = vmatmul.bf16.gmra.mxu0 %v2811
      %v2894 = vpop.f32.mrf.mxu0
      %v2895 = vadd.f32 0.0, %v2894
      %v2896 = vpop.f32.mrf.mxu0
      %v2897 = vadd.f32 0.0, %v2896
      %2898 = vdwg.mxu0
      %v2899 = vadd.f32 %v2735, %v2875
      %v2900 = vadd.f32 %v2736, %v2877
      %v2901 = vadd.f32 %v2737, %v2880
      %v2902 = vadd.f32 %v2738, %v2882
      %v2903 = vadd.f32 %v2739, %v2885
      %v2904 = vadd.f32 %v2740, %v2887
      %v2905 = vadd.f32 %v2741, %v2890
      %v2906 = vadd.f32 %v2742, %v2892
      %v2907 = vadd.f32 %v2743, %v2895
      %v2908 = vadd.f32 %v2744, %v2897
      %v2909 = vld [vmem:[#allocation2 + $0x2c] sm:$0x3]
      %s2910 = scalar_lea.vmem %s6, 512
      %v2911 = vld [vmem:[%s2910] sm:$0xf]
      %v2912 = vld [vmem:[%s2910 + $0x4] sm:$0xf]
      %v2913 = vld [vmem:[%s2910 + $0x8] sm:$0xf]
      %v2914 = vld [vmem:[%s2910 + $0xc] sm:$0xf]
      %v2915 = vld [vmem:[%s2910 + $0x10] sm:$0xf]
      %v2916 = vld [vmem:[%s2910 + $0x14] sm:$0xf]
      %v2917 = vld [vmem:[%s2910 + $0x18] sm:$0xf]
      %v2918 = vld [vmem:[%s2910 + $0x1c] sm:$0xf]
      %v2919 = vld [vmem:[%s2910 + $0x20] sm:$0xf]
      %v2920 = vld [vmem:[%s2910 + $0x24] sm:$0xf]
      %v2921 = vld [vmem:[%s2910 + $0x28] sm:$0xf]
      %v2922 = vld [vmem:[%s2910 + $0x2c] sm:$0xf]
      %v2923 = vld [vmem:[%s2910 + $0x30] sm:$0xf]
      %v2924 = vld [vmem:[%s2910 + $0x34] sm:$0xf]
      %v2925 = vld [vmem:[%s2910 + $0x38] sm:$0xf]
      %v2926 = vld [vmem:[%s2910 + $0x3c] sm:$0xf]
      %v2928 = vunpack.c.l.b16 %v2909
      %v2929 = vpack.c.b16 %v2928, %v2928
      %vm2930 = vsmask.f32 6400
      %v2932 = vshrl.u32 %v2630, 16
      %v2934 = vrot.slane %v2932, 1
      %v2935 = vshll.u32 %v2630, 16
      %v2937 = vrot.slane %v2935, 2
      %v2938 = vor.u32 %v2934, %v2937
      %v2940 = vshrl.u32 %v2631, 16
      %v2942 = vrot.slane %v2940, 1
      %v2943 = vshll.u32 %v2631, 16
      %v2945 = vrot.slane %v2943, 2
      %v2946 = vor.u32 %v2942, %v2945
      %v2947 = vsel %vm2930, %v2938, %v2946
      %v2949 = vshrl.u32 %v2632, 16
      %v2951 = vrot.slane %v2949, 1
      %v2952 = vshll.u32 %v2632, 16
      %v2954 = vrot.slane %v2952, 2
      %v2955 = vor.u32 %v2951, %v2954
      %v2956 = vsel %vm2930, %v2946, %v2955
      %v2958 = vshrl.u32 %v2633, 16
      %v2960 = vrot.slane %v2958, 1
      %v2961 = vshll.u32 %v2633, 16
      %v2963 = vrot.slane %v2961, 2
      %v2964 = vor.u32 %v2960, %v2963
      %v2965 = vsel %vm2930, %v2955, %v2964
      %v2967 = vshrl.u32 %v2634, 16
      %v2969 = vrot.slane %v2967, 1
      %v2970 = vshll.u32 %v2634, 16
      %v2972 = vrot.slane %v2970, 2
      %v2973 = vor.u32 %v2969, %v2972
      %v2974 = vsel %vm2930, %v2964, %v2973
      %v2976 = vshrl.u32 %v2929, 16
      %v2978 = vrot.slane %v2976, 1
      %v2979 = vshll.u32 %v2929, 16
      %v2981 = vrot.slane %v2979, 2
      %v2982 = vor.u32 %v2978, %v2981
      %v2983 = vsel %vm2930, %v2973, %v2982
      %v3005 = vunpack.c.l.b16 %v2911
      %v3006 = vunpack.c.l.b16 %v2912
      %v3007 = vunpack.c.l.b16 %v2913
      %v3008 = vunpack.c.l.b16 %v2914
      %v3009 = vunpack.c.l.b16 %v2915
      %v3010 = vunpack.c.l.b16 %v2916
      %v3011 = vunpack.c.l.b16 %v2917
      %v3012 = vunpack.c.l.b16 %v2918
      %v3013 = vunpack.c.l.b16 %v2919
      %v3014 = vunpack.c.l.b16 %v2920
      %v3015 = vunpack.c.l.b16 %v2921
      %v3016 = vunpack.c.l.b16 %v2922
      %v3017 = vunpack.c.l.b16 %v2923
      %v3018 = vunpack.c.l.b16 %v2924
      %v3019 = vunpack.c.l.b16 %v2925
      %v3020 = vunpack.c.l.b16 %v2926
      %v3021 = vpack.c.b16 %v3006, %v3005
      %v3022 = vpack.c.b16 %v3008, %v3007
      %v3023 = vpack.c.b16 %v3010, %v3009
      %v3024 = vpack.c.b16 %v3012, %v3011
      %v3025 = vpack.c.b16 %v3014, %v3013
      %v3026 = vpack.c.b16 %v3016, %v3015
      %v3027 = vpack.c.b16 %v3018, %v3017
      %v3028 = vpack.c.b16 %v3020, %v3019
      %3037 = vmatpush.bf16.msra.mxu0 %v3028
      %3038 = vmatpush.bf16.msra.mxu0 %v3027
      %3039 = vmatpush.bf16.msra.mxu0 %v3026
      %3040 = vmatpush.bf16.msra.mxu0 %v3025
      %3041 = vmatpush.bf16.msra.mxu0 %v3024
      %3042 = vmatpush.bf16.msra.mxu0 %v3023
      %3043 = vmatpush.bf16.msra.mxu0 %v3022
      %3044 = vmatpush.bf16.msra.mxu0 %v3021
      %3045 = vmatmul.bf16.gmra.mxu0 %v2947
      %v3046 = vpop.f32.mrf.mxu0
      %v3047 = vadd.f32 0.0, %v3046
      %v3048 = vpop.f32.mrf.mxu0
      %v3049 = vadd.f32 0.0, %v3048
      %3050 = vmatmul.bf16.gmra.mxu0 %v2956
      %v3051 = vpop.f32.mrf.mxu0
      %v3052 = vadd.f32 0.0, %v3051
      %v3053 = vpop.f32.mrf.mxu0
      %v3054 = vadd.f32 0.0, %v3053
      %3055 = vmatmul.bf16.gmra.mxu0 %v2965
      %v3056 = vpop.f32.mrf.mxu0
      %v3057 = vadd.f32 0.0, %v3056
      %v3058 = vpop.f32.mrf.mxu0
      %v3059 = vadd.f32 0.0, %v3058
      %3060 = vmatmul.bf16.gmra.mxu0 %v2974
      %v3061 = vpop.f32.mrf.mxu0
      %v3062 = vadd.f32 0.0, %v3061
      %v3063 = vpop.f32.mrf.mxu0
      %v3064 = vadd.f32 0.0, %v3063
      %3065 = vmatmul.bf16.gmra.mxu0 %v2983
      %v3066 = vpop.f32.mrf.mxu0
      %v3067 = vadd.f32 0.0, %v3066
      %v3068 = vpop.f32.mrf.mxu0
      %v3069 = vadd.f32 0.0, %v3068
      %3070 = vdwg.mxu0
      %v3071 = vadd.f32 %v2899, %v3047
      %v3072 = vadd.f32 %v2900, %v3049
      %v3073 = vadd.f32 %v2901, %v3052
      %v3074 = vadd.f32 %v2902, %v3054
      %v3075 = vadd.f32 %v2903, %v3057
      %v3076 = vadd.f32 %v2904, %v3059
      %v3077 = vadd.f32 %v2905, %v3062
      %v3078 = vadd.f32 %v2906, %v3064
      %v3079 = vadd.f32 %v2907, %v3067
      %v3080 = vadd.f32 %v2908, %v3069
      %v3081 = vld [vmem:[%s7] sm:$0x1]
      %v3083 = vperm.slane %v3081, 0
      %v3085 = vadd.f32 %v3071, %v3083
      %v3086 = vadd.f32 %v3072, %v3083
      %v3087 = vadd.f32 %v3073, %v3083
      %v3088 = vadd.f32 %v3074, %v3083
      %v3089 = vadd.f32 %v3075, %v3083
      %v3090 = vadd.f32 %v3076, %v3083
      %v3091 = vadd.f32 %v3077, %v3083
      %v3092 = vadd.f32 %v3078, %v3083
      %v3093 = vadd.f32 %v3079, %v3083
      %v3094 = vadd.f32 %v3080, %v3083
      %v3095 = vmax.f32 %v3085, 0.0
      %v3096 = vmax.f32 %v3086, 0.0
      %v3097 = vmax.f32 %v3087, 0.0
      %v3098 = vmax.f32 %v3088, 0.0
      %v3099 = vmax.f32 %v3089, 0.0
      %v3100 = vmax.f32 %v3090, 0.0
      %v3101 = vmax.f32 %v3091, 0.0
      %v3102 = vmax.f32 %v3092, 0.0
      %v3103 = vmax.f32 %v3093, 0.0
      %v3104 = vmax.f32 %v3094, 0.0
      %v3105 = vld [vmem:[%s1300] sm:$0xff]
      %v3106 = vld [vmem:[%s1300 + $0x8] sm:$0xff]
      %v3107 = vld [vmem:[%s1300 + $0x10] sm:$0xff]
      %v3108 = vld [vmem:[%s1300 + $0x18] sm:$0xff]
      %v3109 = vld [vmem:[%s1300 + $0x20] sm:$0xff]
      %v3110 = vld [vmem:[%s1300 + $0x28] sm:$0xff]
      %v3111 = vld [vmem:[%s1300 + $0x30] sm:$0xff]
      %v3112 = vld [vmem:[%s1300 + $0x38] sm:$0xff]
      %v3113 = vld [vmem:[%s1300 + $0x40] sm:$0xff]
      %v3114 = vld [vmem:[%s1300 + $0x48] sm:$0xff]
      %v3115 = vld [vmem:[%s987 + $0x1] sm:$0xff]
      %v3116 = vld [vmem:[%s987 + $0x9] sm:$0xff]
      %v3117 = vld [vmem:[%s987 + $0x11] sm:$0xff]
      %v3118 = vld [vmem:[%s987 + $0x19] sm:$0xff]
      %v3119 = vld [vmem:[%s987 + $0x21] sm:$0xff]
      %v3120 = vld [vmem:[%s987 + $0x29] sm:$0xff]
      %v3121 = vld [vmem:[%s987 + $0x31] sm:$0xff]
      %v3122 = vld [vmem:[%s987 + $0x39] sm:$0xff]
      %v3123 = vld [vmem:[%s987 + $0x41] sm:$0xff]
      %v3124 = vld [vmem:[%s987 + $0x49] sm:$0xff]
      %v3125 = vmax.f32 %v3105, %v3115
      %v3126 = vmax.f32 %v3106, %v3116
      %v3127 = vmax.f32 %v3107, %v3117
      %v3128 = vmax.f32 %v3108, %v3118
      %v3129 = vmax.f32 %v3109, %v3119
      %v3130 = vmax.f32 %v3110, %v3120
      %v3131 = vmax.f32 %v3111, %v3121
      %v3132 = vmax.f32 %v3112, %v3122
      %v3133 = vmax.f32 %v3113, %v3123
      %v3134 = vmax.f32 %v3114, %v3124
      %v3135 = vld [vmem:[%s674 + $0xa] sm:$0xff]
      %v3136 = vld [vmem:[%s674 + $0x12] sm:$0xff]
      %v3137 = vld [vmem:[%s674 + $0x1a] sm:$0xff]
      %v3138 = vld [vmem:[%s674 + $0x22] sm:$0xff]
      %v3139 = vld [vmem:[%s674 + $0x2a] sm:$0xff]
      %v3140 = vld [vmem:[%s674 + $0x32] sm:$0xff]
      %v3141 = vld [vmem:[%s674 + $0x3a] sm:$0xff]
      %v3142 = vld [vmem:[%s674 + $0x42] sm:$0xff]
      %v3143 = vld [vmem:[%s674 + $0x4a] sm:$0xff]
      %v3144 = vld [vmem:[%s674 + $0x52] sm:$0xff]
      %v3145 = vmax.f32 %v3125, %v3135
      %v3146 = vmax.f32 %v3126, %v3136
      %v3147 = vmax.f32 %v3127, %v3137
      %v3148 = vmax.f32 %v3128, %v3138
      %v3149 = vmax.f32 %v3129, %v3139
      %v3150 = vmax.f32 %v3130, %v3140
      %v3151 = vmax.f32 %v3131, %v3141
      %v3152 = vmax.f32 %v3132, %v3142
      %v3153 = vmax.f32 %v3133, %v3143
      %v3154 = vmax.f32 %v3134, %v3144
      %v3155 = vld [vmem:[%s354 + $0xb] sm:$0xff]
      %v3156 = vld [vmem:[%s354 + $0x13] sm:$0xff]
      %v3157 = vld [vmem:[%s354 + $0x1b] sm:$0xff]
      %v3158 = vld [vmem:[%s354 + $0x23] sm:$0xff]
      %v3159 = vld [vmem:[%s354 + $0x2b] sm:$0xff]
      %v3160 = vld [vmem:[%s354 + $0x33] sm:$0xff]
      %v3161 = vld [vmem:[%s354 + $0x3b] sm:$0xff]
      %v3162 = vld [vmem:[%s354 + $0x43] sm:$0xff]
      %v3163 = vld [vmem:[%s354 + $0x4b] sm:$0xff]
      %v3164 = vld [vmem:[%s354 + $0x53] sm:$0xff]
      %v3165 = vmax.f32 %v3145, %v3155
      %v3166 = vmax.f32 %v3146, %v3156
      %v3167 = vmax.f32 %v3147, %v3157
      %v3168 = vmax.f32 %v3148, %v3158
      %v3169 = vmax.f32 %v3149, %v3159
      %v3170 = vmax.f32 %v3150, %v3160
      %v3171 = vmax.f32 %v3151, %v3161
      %v3172 = vmax.f32 %v3152, %v3162
      %v3173 = vmax.f32 %v3153, %v3163
      %v3174 = vmax.f32 %v3154, %v3164
      %v3175 = vpack.c.bf16 %v3096, %v3095
      %v3176 = vpack.c.bf16 %v3098, %v3097
      %v3177 = vpack.c.bf16 %v3100, %v3099
      %v3178 = vpack.c.bf16 %v3102, %v3101
      %v3179 = vpack.c.bf16 %v3104, %v3103
      %v3180 = vld [vmem:[%s8] sm:$0xf]
      %v3181 = vld [vmem:[%s8 + $0x4] sm:$0xf]
      %v3182 = vld [vmem:[%s8 + $0x8] sm:$0xf]
      %v3183 = vld [vmem:[%s8 + $0xc] sm:$0xf]
      %v3184 = vld [vmem:[%s8 + $0x10] sm:$0xf]
      %v3185 = vld [vmem:[%s8 + $0x14] sm:$0xf]
      %v3186 = vld [vmem:[%s8 + $0x18] sm:$0xf]
      %v3187 = vld [vmem:[%s8 + $0x1c] sm:$0xf]
      %v3188 = vld [vmem:[%s8 + $0x20] sm:$0xf]
      %v3189 = vld [vmem:[%s8 + $0x24] sm:$0xf]
      %v3190 = vld [vmem:[%s8 + $0x28] sm:$0xf]
      %v3191 = vld [vmem:[%s8 + $0x2c] sm:$0xf]
      %v3192 = vld [vmem:[%s8 + $0x30] sm:$0xf]
      %v3193 = vld [vmem:[%s8 + $0x34] sm:$0xf]
      %v3194 = vld [vmem:[%s8 + $0x38] sm:$0xf]
      %v3195 = vld [vmem:[%s8 + $0x3c] sm:$0xf]
      %v3196 = vpack.c.bf16 %v3166, %v3165
      %v3197 = vpack.c.bf16 %v3168, %v3167
      %v3198 = vpack.c.bf16 %v3170, %v3169
      %v3199 = vpack.c.bf16 %v3172, %v3171
      %v3200 = vpack.c.bf16 %v3174, %v3173
      %v3201 = vld [vmem:[%s8 + $0x40] sm:$0xf]
      %v3202 = vld [vmem:[%s8 + $0x44] sm:$0xf]
      %v3203 = vld [vmem:[%s8 + $0x48] sm:$0xf]
      %v3204 = vld [vmem:[%s8 + $0x4c] sm:$0xf]
      %v3205 = vld [vmem:[%s8 + $0x50] sm:$0xf]
      %v3206 = vld [vmem:[%s8 + $0x54] sm:$0xf]
      %v3207 = vld [vmem:[%s8 + $0x58] sm:$0xf]
      %v3208 = vld [vmem:[%s8 + $0x5c] sm:$0xf]
      %v3209 = vld [vmem:[%s8 + $0x60] sm:$0xf]
      %v3210 = vld [vmem:[%s8 + $0x64] sm:$0xf]
      %v3211 = vld [vmem:[%s8 + $0x68] sm:$0xf]
      %v3212 = vld [vmem:[%s8 + $0x6c] sm:$0xf]
      %v3213 = vld [vmem:[%s8 + $0x70] sm:$0xf]
      %v3214 = vld [vmem:[%s8 + $0x74] sm:$0xf]
      %v3215 = vld [vmem:[%s8 + $0x78] sm:$0xf]
      %v3216 = vld [vmem:[%s8 + $0x7c] sm:$0xf]
      %v3233 = vunpack.c.l.b16 %v3201
      %v3234 = vunpack.c.l.b16 %v3202
      %v3235 = vunpack.c.l.b16 %v3203
      %v3236 = vunpack.c.l.b16 %v3204
      %v3237 = vunpack.c.l.b16 %v3205
      %v3238 = vunpack.c.l.b16 %v3206
      %v3239 = vunpack.c.l.b16 %v3207
      %v3240 = vunpack.c.l.b16 %v3208
      %v3241 = vunpack.c.l.b16 %v3209
      %v3242 = vunpack.c.l.b16 %v3210
      %v3243 = vunpack.c.l.b16 %v3211
      %v3244 = vunpack.c.l.b16 %v3212
      %v3245 = vunpack.c.l.b16 %v3213
      %v3246 = vunpack.c.l.b16 %v3214
      %v3247 = vunpack.c.l.b16 %v3215
      %v3248 = vunpack.c.l.b16 %v3216
      %v3249 = vpack.c.b16 %v3234, %v3233
      %v3250 = vpack.c.b16 %v3236, %v3235
      %v3251 = vpack.c.b16 %v3238, %v3237
      %v3252 = vpack.c.b16 %v3240, %v3239
      %v3253 = vpack.c.b16 %v3242, %v3241
      %v3254 = vpack.c.b16 %v3244, %v3243
      %v3255 = vpack.c.b16 %v3246, %v3245
      %v3256 = vpack.c.b16 %v3248, %v3247
      %3265 = vmatpush.bf16.msra.mxu0 %v3256
      %3266 = vmatpush.bf16.msra.mxu0 %v3255
      %3267 = vmatpush.bf16.msra.mxu0 %v3254
      %3268 = vmatpush.bf16.msra.mxu0 %v3253
      %3269 = vmatpush.bf16.msra.mxu0 %v3252
      %3270 = vmatpush.bf16.msra.mxu0 %v3251
      %3271 = vmatpush.bf16.msra.mxu0 %v3250
      %3272 = vmatpush.bf16.msra.mxu0 %v3249
      %3273 = vmatmul.bf16.gmra.mxu0 %v3196
      %v3274 = vpop.f32.mrf.mxu0
      %v3275 = vadd.f32 0.0, %v3274
      %v3276 = vpop.f32.mrf.mxu0
      %v3277 = vadd.f32 0.0, %v3276
      %3278 = vmatmul.bf16.gmra.mxu0 %v3197
      %v3279 = vpop.f32.mrf.mxu0
      %v3280 = vadd.f32 0.0, %v3279
      %v3281 = vpop.f32.mrf.mxu0
      %v3282 = vadd.f32 0.0, %v3281
      %3283 = vmatmul.bf16.gmra.mxu0 %v3198
      %v3284 = vpop.f32.mrf.mxu0
      %v3285 = vadd.f32 0.0, %v3284
      %v3286 = vpop.f32.mrf.mxu0
      %v3287 = vadd.f32 0.0, %v3286
      %3288 = vmatmul.bf16.gmra.mxu0 %v3199
      %v3289 = vpop.f32.mrf.mxu0
      %v3290 = vadd.f32 0.0, %v3289
      %v3291 = vpop.f32.mrf.mxu0
      %v3292 = vadd.f32 0.0, %v3291
      %3293 = vmatmul.bf16.gmra.mxu0 %v3200
      %v3294 = vpop.f32.mrf.mxu0
      %v3295 = vadd.f32 0.0, %v3294
      %v3296 = vpop.f32.mrf.mxu0
      %v3297 = vadd.f32 0.0, %v3296
      %3298 = vdwg.mxu0
      %v3315 = vunpack.c.l.b16 %v3180
      %v3316 = vunpack.c.l.b16 %v3181
      %v3317 = vunpack.c.l.b16 %v3182
      %v3318 = vunpack.c.l.b16 %v3183
      %v3319 = vunpack.c.l.b16 %v3184
      %v3320 = vunpack.c.l.b16 %v3185
      %v3321 = vunpack.c.l.b16 %v3186
      %v3322 = vunpack.c.l.b16 %v3187
      %v3323 = vunpack.c.l.b16 %v3188
      %v3324 = vunpack.c.l.b16 %v3189
      %v3325 = vunpack.c.l.b16 %v3190
      %v3326 = vunpack.c.l.b16 %v3191
      %v3327 = vunpack.c.l.b16 %v3192
      %v3328 = vunpack.c.l.b16 %v3193
      %v3329 = vunpack.c.l.b16 %v3194
      %v3330 = vunpack.c.l.b16 %v3195
      %v3331 = vpack.c.b16 %v3316, %v3315
      %v3332 = vpack.c.b16 %v3318, %v3317
      %v3333 = vpack.c.b16 %v3320, %v3319
      %v3334 = vpack.c.b16 %v3322, %v3321
      %v3335 = vpack.c.b16 %v3324, %v3323
      %v3336 = vpack.c.b16 %v3326, %v3325
      %v3337 = vpack.c.b16 %v3328, %v3327
      %v3338 = vpack.c.b16 %v3330, %v3329
      %3347 = vmatpush.bf16.msra.mxu0 %v3338
      %3348 = vmatpush.bf16.msra.mxu0 %v3337
      %3349 = vmatpush.bf16.msra.mxu0 %v3336
      %3350 = vmatpush.bf16.msra.mxu0 %v3335
      %3351 = vmatpush.bf16.msra.mxu0 %v3334
      %3352 = vmatpush.bf16.msra.mxu0 %v3333
      %3353 = vmatpush.bf16.msra.mxu0 %v3332
      %3354 = vmatpush.bf16.msra.mxu0 %v3331
      %3355 = vmatmul.bf16.gmra.mxu0 %v3175
      %v3356 = vpop.f32.mrf.mxu0
      %v3357 = vadd.f32 %v3275, %v3356
      %v3358 = vpop.f32.mrf.mxu0
      %v3359 = vadd.f32 %v3277, %v3358
      %3360 = vmatmul.bf16.gmra.mxu0 %v3176
      %v3361 = vpop.f32.mrf.mxu0
      %v3362 = vadd.f32 %v3280, %v3361
      %v3363 = vpop.f32.mrf.mxu0
      %v3364 = vadd.f32 %v3282, %v3363
      %3365 = vmatmul.bf16.gmra.mxu0 %v3177
      %v3366 = vpop.f32.mrf.mxu0
      %v3367 = vadd.f32 %v3285, %v3366
      %v3368 = vpop.f32.mrf.mxu0
      %v3369 = vadd.f32 %v3287, %v3368
      %3370 = vmatmul.bf16.gmra.mxu0 %v3178
      %v3371 = vpop.f32.mrf.mxu0
      %v3372 = vadd.f32 %v3290, %v3371
      %v3373 = vpop.f32.mrf.mxu0
      %v3374 = vadd.f32 %v3292, %v3373
      %3375 = vmatmul.bf16.gmra.mxu0 %v3179
      %v3376 = vpop.f32.mrf.mxu0
      %v3377 = vadd.f32 %v3295, %v3376
      %v3378 = vpop.f32.mrf.mxu0
      %v3379 = vadd.f32 %v3297, %v3378
      %3380 = vdwg.mxu0
      %v3381 = vld [vmem:[%s9] sm:$0x1]
      %v3383 = vperm.slane %v3381, 0
      %v3385 = vadd.f32 %v3357, %v3383
      %v3386 = vadd.f32 %v3359, %v3383
      %v3387 = vadd.f32 %v3362, %v3383
      %v3388 = vadd.f32 %v3364, %v3383
      %v3389 = vadd.f32 %v3367, %v3383
      %v3390 = vadd.f32 %v3369, %v3383
      %v3391 = vadd.f32 %v3372, %v3383
      %v3392 = vadd.f32 %v3374, %v3383
      %v3393 = vadd.f32 %v3377, %v3383
      %v3394 = vadd.f32 %v3379, %v3383
      %3395 = vst [vmem:[%s359] sm:$0xf] 0
      %vm3396 = vcmask 1041408
      %vm3397 = vsmask.f32 1280
      %vm3398 = vmand %vm3396, %vm3397
      %v3399 = vld [vmem:[%s359 + $0x4] sm:$0x3]
      %v3400 = vsel %vm3398, 0, %v3399
      %3401 = vst [vmem:[%s359 + $0x4] sm:$0x3] %v3400
      %v3402 = vpack.c.bf16 %v3385, %v3385
      %v3403 = vpack.c.bf16 %v3386, %v3386
      %v3404 = vpack.c.bf16 %v3387, %v3387
      %v3405 = vpack.c.bf16 %v3388, %v3388
      %v3406 = vpack.c.bf16 %v3389, %v3389
      %v3407 = vpack.c.bf16 %v3390, %v3390
      %v3408 = vpack.c.bf16 %v3391, %v3391
      %v3409 = vpack.c.bf16 %v3392, %v3392
      %v3410 = vpack.c.bf16 %v3393, %v3393
      %v3411 = vpack.c.bf16 %v3394, %v3394
      %vm3412 = vsmask.f32 5392
      %vm3413 = vmor %vm3397, %vm3412
      %v3415 = vshrl.u32 %v3402, 16
      %v3417 = vrot.slane %v3415, 6
      %v3418 = vshll.u32 %v3402, 16
      %v3420 = vrot.slane %v3418, 7
      %v3421 = vor.u32 %v3417, %v3420
      %v3422 = vrot.slane %v3421, 4
      %v3424 = vshrl.u32 %v3403, 16
      %v3426 = vrot.slane %v3424, 6
      %v3427 = vshll.u32 %v3403, 16
      %v3429 = vrot.slane %v3427, 7
      %v3430 = vor.u32 %v3426, %v3429
      %v3431 = vsel %vm3413, %v3422, %v3430
      %v3432 = vrot.slane %v3430, 4
      %v3434 = vshrl.u32 %v3404, 16
      %v3436 = vrot.slane %v3434, 6
      %v3437 = vshll.u32 %v3404, 16
      %v3439 = vrot.slane %v3437, 7
      %v3440 = vor.u32 %v3436, %v3439
      %v3441 = vsel %vm3413, %v3432, %v3440
      %v3442 = vrot.slane %v3440, 4
      %v3444 = vshrl.u32 %v3405, 16
      %v3446 = vrot.slane %v3444, 6
      %v3447 = vshll.u32 %v3405, 16
      %v3449 = vrot.slane %v3447, 7
      %v3450 = vor.u32 %v3446, %v3449
      %v3451 = vsel %vm3413, %v3442, %v3450
      %v3452 = vrot.slane %v3450, 4
      %v3454 = vshrl.u32 %v3406, 16
      %v3456 = vrot.slane %v3454, 6
      %v3457 = vshll.u32 %v3406, 16
      %v3459 = vrot.slane %v3457, 7
      %v3460 = vor.u32 %v3456, %v3459
      %v3461 = vsel %vm3413, %v3452, %v3460
      %v3462 = vrot.slane %v3460, 4
      %v3464 = vshrl.u32 %v3407, 16
      %v3466 = vrot.slane %v3464, 6
      %v3467 = vshll.u32 %v3407, 16
      %v3469 = vrot.slane %v3467, 7
      %v3470 = vor.u32 %v3466, %v3469
      %v3471 = vsel %vm3413, %v3462, %v3470
      %v3472 = vrot.slane %v3470, 4
      %v3474 = vshrl.u32 %v3408, 16
      %v3476 = vrot.slane %v3474, 6
      %v3477 = vshll.u32 %v3408, 16
      %v3479 = vrot.slane %v3477, 7
      %v3480 = vor.u32 %v3476, %v3479
      %v3481 = vsel %vm3413, %v3472, %v3480
      %v3482 = vrot.slane %v3480, 4
      %v3484 = vshrl.u32 %v3409, 16
      %v3486 = vrot.slane %v3484, 6
      %v3487 = vshll.u32 %v3409, 16
      %v3489 = vrot.slane %v3487, 7
      %v3490 = vor.u32 %v3486, %v3489
      %v3491 = vsel %vm3413, %v3482, %v3490
      %v3492 = vrot.slane %v3490, 4
      %v3494 = vshrl.u32 %v3410, 16
      %v3496 = vrot.slane %v3494, 6
      %v3497 = vshll.u32 %v3410, 16
      %v3499 = vrot.slane %v3497, 7
      %v3500 = vor.u32 %v3496, %v3499
      %v3501 = vsel %vm3413, %v3492, %v3500
      %v3502 = vrot.slane %v3500, 4
      %v3504 = vshrl.u32 %v3411, 16
      %v3506 = vrot.slane %v3504, 6
      %v3507 = vshll.u32 %v3411, 16
      %v3509 = vrot.slane %v3507, 7
      %v3510 = vor.u32 %v3506, %v3509
      %v3511 = vsel %vm3413, %v3502, %v3510
      %v3512 = vrot.slane %v3510, 4
      %vm3524 = vcmask 1043457
      %vm3525 = vsmask.f32 7942
      %vm3526 = vmand %vm3524, %vm3525
      %v3527 = vld [vmem:[%s359 + $0x4] sm:$0xe]
      %v3528 = vsel %vm3526, %v3421, %v3527
      %3529 = vst [vmem:[%s359 + $0x4] sm:$0xe] %v3528
      %3530 = vst [vmem:[%s359 + $0x8] sm:$0xf] %v3431
      %3531 = vst [vmem:[%s359 + $0xc] sm:$0xf] %v3441
      %3532 = vst [vmem:[%s359 + $0x10] sm:$0xf] %v3451
      %3533 = vst [vmem:[%s359 + $0x14] sm:$0xf] %v3461
      %3534 = vst [vmem:[%s359 + $0x18] sm:$0xf] %v3471
      %3535 = vst [vmem:[%s359 + $0x1c] sm:$0xf] %v3481
      %3536 = vst [vmem:[%s359 + $0x20] sm:$0xf] %v3491
      %3537 = vst [vmem:[%s359 + $0x24] sm:$0xf] %v3501
      %3538 = vst [vmem:[%s359 + $0x28] sm:$0xf] %v3511
      %v3539 = vld [vmem:[%s359 + $0x2c] sm:$0x3]
      %v3540 = vsel %vm3398, %v3512, %v3539
      %3541 = vst [vmem:[%s359 + $0x2c] sm:$0x3] %v3540
      %v3542 = vld [vmem:[%s359 + $0x2c] sm:$0xe]
      %v3543 = vsel %vm3526, 0, %v3542
      %3544 = vst [vmem:[%s359 + $0x2c] sm:$0xe] %v3543
      %3545 = vst [vmem:[%s359 + $0x30] sm:$0x3] 0
      %p3546 = scmp.lt.s32.totalorder %s21, 1
      %s3547 = scalar_select %p3546, %s21, 1
      %s3548 = smul.addr %s3547, 13
      %s3549 = smul.addr %s3548, 4
      %s3550 = scalar_lea.vmem %s10, %s3549
      // Predicated region
      $region61: #{down_forward.2} parent=59 // pred_check
        %p3551 = pneg %p254
      $region62: #{down_forward.2} parent=59 // pred_check_branch
        %3553 = sbr.rel (%p3551) target = $region64
      $region63: #{down_forward.2} parent=59 // pred_region
        _
      $region64: #{down_forward.2} parent=59 // pred_fallthru
        _
    $region60: #{down_forward.2} parent=5 // pred_fallthru
      _
    %p3554 = scmp.le.s32.totalorder 2, %s16
    // Predicated region
    $region65: #{down_forward.2} parent=5 // pred_check
      %p3555 = pneg %p3554
    $region66: #{down_forward.2} parent=5 // pred_check_branch
      %3557 = sbr.rel (%p3555) target = $region68
    $region67: #{down_forward.2} parent=5 // pred_region
      %s3558 = ssub.s32 %s16, 2
      // Predicated region
      $region69: #{down_forward.2} parent=67 // pred_check
        %p3559 = pneg %p260
      $region70: #{down_forward.2} parent=67 // pred_check_branch
        %3561 = sbr.rel (%p3559) target = $region72
      $region71: #{down_forward.2} parent=67 // pred_region
        %p3562 = scmp.lt.s32.totalorder %s22, 1
        %s3563 = scalar_select %p3562, %s22, 1
        %s3564 = smul.addr %s3563, 13
        %s3565 = smul.addr %s3564, 4
        %s3566 = scalar_lea.vmem %s10, %s3565
      $region72: #{down_forward.2} parent=67 // pred_fallthru
        _
    $region68: #{down_forward.2} parent=5 // pred_fallthru
      _
  $region6: #{down_forward.2} parent=0 // loop_footer
    %s20 = sadd.s32 1, %s16
  $region7: #{down_forward.2} parent=0 // loop_footer_branch
    %15 = sbr.rel target = $region3
  $region8: #{down_forward.2} parent=0 // loop_exit
    _

</llo_original>
